<compile_context>
chip_gen: v5e
topology: v5e:2x2
jax: 0.10.0
libtpu: 0.0.40
codegen_flags: <defaults>
</compile_context>

<pallas_src>
import numpy as np
import jax
import jax.numpy as jnp
from jax.experimental import pallas as pl
from jax.experimental.pallas import tpu as pltpu

# ----------------------------- configuration -------------------------------
B = 2              # batch
C_IN = 4           # input channels
H = W = 16         # spatial
NUM_SPLITS = 2     # even, >= 2
SPLIT_C = C_IN // NUM_SPLITS
FEAT = 32          # stand-in for the 1792-channel group output
RED = 16           # DualWaveletAttention reduction_ratio
HID = FEAT // RED
N_CLASSES = 4
S = H * W
H2, W2 = H // 2, W // 2
S2 = H2 * W2
F_TOTAL = NUM_SPLITS * FEAT


# --------------------------- host-side constants ----------------------------
def _bilinear_up2_matrix(n):
    """1-D x2 bilinear upsample operator, PyTorch align_corners=False semantics."""
    U = np.zeros((2 * n, n), np.float32)
    for j in range(n):
        U[2 * j, max(j - 1, 0)] += 0.25
        U[2 * j, j] += 0.75
        U[2 * j + 1, j] += 0.75
        U[2 * j + 1, min(j + 1, n - 1)] += 0.25
    return U


UP_H_NP = _bilinear_up2_matrix(H2)           # (H, H2)
UP_W_NP = _bilinear_up2_matrix(W2)           # (W, W2)
UP_WT_NP = np.ascontiguousarray(UP_W_NP.T)   # (W2, W)


def _dwt_scramble_index():
    """Spatial permutation such that gathering the flattened (H*W) axis with it and viewing
    the result as (4, H2, W2) reproduces the reference's F.unfold(2,2)+.view(-1,2,2) quadrants
    q_j (LL = q0, LH = q1-q0, HL = q2-q0, HH = q3-q0) in band-spatial order."""
    idx = np.arange(S, dtype=np.int32).reshape(H, W)
    # unfold(kernel=2, stride=2) flat order within one channel: f = k*S2 + l with
    # k = kh*2 + kw, l = ph*W2 + pw, value = img[2*ph + kh, 2*pw + kw]
    u = idx.reshape(H2, 2, W2, 2).transpose(1, 3, 0, 2).reshape(4 * S2)
    # .view(-1, 2, 2): band-spatial position m uses flat elements [4m, 4m+4); element j of
    # that group is the source pixel of quadrant j at position m.
    return np.ascontiguousarray(u.reshape(S2, 4).T.reshape(4 * S2))


SCRAMBLE_NP = _dwt_scramble_index()          # (S,) int32 permutation


# ------------------------------- Pallas kernel ------------------------------
def _pyramid_group_kernel(
    xs_ref, xq_ref,                          # per-group inputs, channel-last
    cw_ref, cb_ref,                          # 1x1 conv (PyramidMultiScaleCNN stand-in)
    f1w_ref, f1b_ref, f2w_ref, f2b_ref,      # DWA channel-attention MLP
    sconv_ref,                               # DWA spatial-attention 1x1 conv [w_avg, w_max, bias]
    uph_ref, upwT_ref,                       # separable x2 bilinear upsample operators
    gapw_ref, gapb_ref, wavw_ref, wavb_ref,  # classifier heads (per-group weight slices)
    bng_ref, bnb_ref, bnm_ref, bnv_ref,      # BatchNorm1d (eval) per-group slices
    gap_ref, wav_ref,                        # outputs, accumulated across the group axis
):
    g = pl.program_id(0)

    cw = cw_ref[0]                           # (SPLIT_C, FEAT)
    cb = cb_ref[0]                           # (1, FEAT)

    def conv_relu(xin):                      # (..., SPLIT_C) -> (..., FEAT); VPU broadcast-FMA
        acc = xin[..., 0:1] * cw[0:1, :] + cb
        for c in range(1, SPLIT_C):
            acc = acc + xin[..., c:c + 1] * cw[c:c + 1, :]
        return jnp.maximum(acc, 0.0)

    y = conv_relu(xs_ref[0])                 # (B, H, W, FEAT)   standard spatial order
    yq = conv_relu(xq_ref[0])                # (B, 4*H2, W2, FEAT)  reference unfold/view order

    # ---- "DWT" bands (exact reference semantics via the pre-permuted input) ----
    q0 = yq[:, 0 * H2:1 * H2]                # LL                 (B, H2, W2, FEAT)
    q1 = yq[:, 1 * H2:2 * H2]
    q2 = yq[:, 2 * H2:3 * H2]
    q3 = yq[:, 3 * H2:4 * H2]
    lh = q1 - q0
    hl = q2 - q0
    hh = q3 - q0

    # ---- channel attention ----
    wc = jnp.mean(q0 + lh + hl + hh, axis=(1, 2))                               # (B, FEAT)
    h1 = jnp.maximum(
        jnp.dot(wc, f1w_ref[0], preferred_element_type=jnp.float32) + f1b_ref[0], 0.0)
    mc = jax.nn.sigmoid(
        jnp.dot(h1, f2w_ref[0], preferred_element_type=jnp.float32) + f2b_ref[0])  # (B, FEAT)

    # ---- spatial attention on the high-frequency bands ----
    avg_p = jnp.mean(lh + hl + hh, axis=-1) * (1.0 / 3.0)                       # (B, H2, W2)
    max_p = jnp.max(jnp.maximum(jnp.maximum(lh, hl), hh), axis=-1)              # (B, H2, W2)
    sc = sconv_ref[0]                                                           # (3, 1, 1)
    ms = jax.nn.sigmoid(sc[0] * avg_p + sc[1] * max_p + sc[2])                  # (B, H2, W2)

    # ---- exact x2 bilinear upsample (align_corners=False), separable W then H ----
    upw_b = jnp.broadcast_to(upwT_ref[...][None], (B, W2, W))
    uph_b = jnp.broadcast_to(uph_ref[...][None], (B, H, H2))
    r1 = jnp.einsum('bij,bjk->bik', ms, upw_b,
                    preferred_element_type=jnp.float32)                         # (B, H2, W)
    ms_up = jnp.einsum('bij,bjk->bik', uph_b, r1,
                       preferred_element_type=jnp.float32)                      # (B, H, W)

    # ---- group feature: spatial mean of (y * Mc) * Ms  ==  Mc * mean(y * Ms) ----
    feat = mc * jnp.mean(y * ms_up[..., None], axis=(1, 2))                     # (B, FEAT)

    # ---- fused classifier head, accumulated in the resident output blocks ----
    @pl.when(g == 0)
    def _init():
        gap_ref[...] = jnp.broadcast_to(gapb_ref[...], (B, N_CLASSES))
        wav_ref[...] = jnp.broadcast_to(wavb_ref[...], (B, N_CLASSES))

    gap_ref[...] += jnp.dot(feat, gapw_ref[0], preferred_element_type=jnp.float32)

    # BatchNorm1d (eval / running stats) on this group's feature slice; Dropout == identity
    xn = (feat - bnm_ref[0]) * jax.lax.rsqrt(bnv_ref[0] + 1e-5) * bng_ref[0] + bnb_ref[0]
    wav_ref[...] += jnp.dot(xn, wavw_ref[0], preferred_element_type=jnp.float32)


# ------------------------------- host wrapper --------------------------------
def forward(params, x):
    """x: (B, C_IN, H, W) NCHW, matching the PyTorch reference."""
    assert C_IN % NUM_SPLITS == 0  # channel-padding branch not exercised at this config

    up_h = jnp.asarray(UP_H_NP)              # (H, H2)
    up_wT = jnp.asarray(UP_WT_NP)            # (W2, W)

    # Host-side glue touches only the tiny raw input (split + spatial permutation); the
    # FEAT-wide activations and wavelet bands are produced and consumed entirely in VMEM.
    xg = x.reshape(B, NUM_SPLITS, SPLIT_C, H, W)
    x_std = jnp.transpose(xg, (1, 0, 3, 4, 2))                       # (G, B, H, W, SPLIT_C)
    x_perm = jnp.take(xg.reshape(B, NUM_SPLITS, SPLIT_C, S), SCRAMBLE_NP, axis=-1)
    x_scr = jnp.transpose(x_perm.reshape(B, NUM_SPLITS, SPLIT_C, 4 * H2, W2),
                          (1, 0, 3, 4, 2))                           # (G, B, 4*H2, W2, SPLIT_C)

    def idx_g5(g):
        return (g, 0, 0, 0, 0)

    def idx_g4(g):
        return (g, 0, 0, 0)

    def idx_g3(g):
        return (g, 0, 0)

    def idx_c2(g):
        return (0, 0)

    grid_spec = pltpu.PrefetchScalarGridSpec(
        num_scalar_prefetch=0,
        grid=(NUM_SPLITS,),
        in_specs=[
            pl.BlockSpec((1, B, H, W, SPLIT_C), idx_g5),             # x_std
            pl.BlockSpec((1, B, 4 * H2, W2, SPLIT_C), idx_g5),       # x_scr
            pl.BlockSpec((1, SPLIT_C, FEAT), idx_g3),                # conv_w
            pl.BlockSpec((1, 1, FEAT), idx_g3),                      # conv_b
            pl.BlockSpec((1, FEAT, HID), idx_g3),                    # fc1_w
            pl.BlockSpec((1, 1, HID), idx_g3),                       # fc1_b
            pl.BlockSpec((1, HID, FEAT), idx_g3),                    # fc2_w
            pl.BlockSpec((1, 1, FEAT), idx_g3),                      # fc2_b
            pl.BlockSpec((1, 3, 1, 1), idx_g4),                      # sconv [w_avg, w_max, b]
            pl.BlockSpec((H, H2), idx_c2),                           # up_h
            pl.BlockSpec((W2, W), idx_c2),                           # up_w^T
            pl.BlockSpec((1, FEAT, N_CLASSES), idx_g3),              # cls_gap_w slice
            pl.BlockSpec((1, N_CLASSES), idx_c2),                    # cls_gap_b
            pl.BlockSpec((1, FEAT, N_CLASSES), idx_g3),              # cls_wav_w slice
            pl.BlockSpec((1, N_CLASSES), idx_c2),                    # cls_wav_b
            pl.BlockSpec((1, 1, FEAT), idx_g3),                      # bn_gamma slice
            pl.BlockSpec((1, 1, FEAT), idx_g3),                      # bn_beta slice
            pl.BlockSpec((1, 1, FEAT), idx_g3),                      # bn_mean slice
            pl.BlockSpec((1, 1, FEAT), idx_g3),                      # bn_var slice
        ],
        out_specs=(pl.BlockSpec((B, N_CLASSES), idx_c2),
                   pl.BlockSpec((B, N_CLASSES), idx_c2)),
    )

    gap_pred, wav_pred = pl.pallas_call(
        _pyramid_group_kernel,
        out_shape=(jax.ShapeDtypeStruct((B, N_CLASSES), jnp.float32),
                   jax.ShapeDtypeStruct((B, N_CLASSES), jnp.float32)),
        grid_spec=grid_spec,
        # Group axis is a reduction into the fused head -> "arbitrary".
        compiler_params=pltpu.CompilerParams(dimension_semantics=("arbitrary",)),
    )(x_std, x_scr,
      params["conv_w"], params["conv_b"],
      params["fc1_w"], params["fc1_b"], params["fc2_w"], params["fc2_b"],
      params["sconv"], up_h, up_wT,
      params["cls_gap_w"], params["cls_gap_b"], params["cls_wav_w"], params["cls_wav_b"],
      params["bn_gamma"], params["bn_beta"], params["bn_mean"], params["bn_var"])
    return gap_pred, wav_pred


def init_params(key):
    ks = jax.random.split(key, 11)
    return {
        "conv_w": 0.3 * jax.random.normal(ks[0], (NUM_SPLITS, SPLIT_C, FEAT), jnp.float32),
        "conv_b": 0.1 * jax.random.normal(ks[1], (NUM_SPLITS, 1, FEAT), jnp.float32),
        "fc1_w": 0.3 * jax.random.normal(ks[2], (NUM_SPLITS, FEAT, HID), jnp.float32),
        "fc1_b": 0.1 * jax.random.normal(ks[3], (NUM_SPLITS, 1, HID), jnp.float32),
        "fc2_w": 0.3 * jax.random.normal(ks[4], (NUM_SPLITS, HID, FEAT), jnp.float32),
        "fc2_b": 0.1 * jax.random.normal(ks[5], (NUM_SPLITS, 1, FEAT), jnp.float32),
        "sconv": 0.3 * jax.random.normal(ks[6], (NUM_SPLITS, 3, 1, 1), jnp.float32),
        "cls_gap_w": 0.1 * jax.random.normal(ks[7], (NUM_SPLITS, FEAT, N_CLASSES), jnp.float32),
        "cls_gap_b": 0.1 * jax.random.normal(ks[8], (1, N_CLASSES), jnp.float32),
        "cls_wav_w": 0.1 * jax.random.normal(ks[9], (NUM_SPLITS, FEAT, N_CLASSES), jnp.float32),
        "cls_wav_b": 0.1 * jax.random.normal(ks[10], (1, N_CLASSES), jnp.float32),
        "bn_gamma": jnp.ones((NUM_SPLITS, 1, FEAT), jnp.float32),
        "bn_beta": jnp.zeros((NUM_SPLITS, 1, FEAT), jnp.float32),
        "bn_mean": jnp.zeros((NUM_SPLITS, 1, FEAT), jnp.float32),
        "bn_var": jnp.ones((NUM_SPLITS, 1, FEAT), jnp.float32),
    }


# -------------------- pure-JAX reference (torch-faithful) --------------------
def _reference_dwt(y):
    """Exact replication of the reference unfold(kernel=2, stride=2) + .view(-1, 2, 2)."""
    Bc, Cc, Hh, Ww = y.shape
    xr = y.reshape(Bc * Cc, Hh // 2, 2, Ww // 2, 2)
    unf = jnp.transpose(xr, (0, 2, 4, 1, 3)).reshape(Bc * Cc, 4, (Hh // 2) * (Ww // 2))
    p = unf.reshape(-1, 2, 2)
    LL = p[:, 0, 0]
    LH = p[:, 0, 1] - LL
    HL = p[:, 1, 0] - LL
    HH = p[:, 1, 1] - LL
    sh = (Bc, Cc, Hh // 2, Ww // 2)
    return LL.reshape(sh), LH.reshape(sh), HL.reshape(sh), HH.reshape(sh)


def reference_forward(params, x):
    up_h = jnp.asarray(UP_H_NP)
    up_w = jnp.asarray(UP_W_NP)
    feats = []
    for g in range(NUM_SPLITS):
        xg = x[:, g * SPLIT_C:(g + 1) * SPLIT_C]                              # (B, SPLIT_C, H, W)
        w = params["conv_w"][g]
        b = params["conv_b"][g, 0]
        y = jnp.maximum(jnp.einsum('bchw,cf->bfhw', xg, w) + b[None, :, None, None], 0.0)
        LL, LH, HL, HH = _reference_dwt(y)
        Wc = jnp.mean(LL + LH + HL + HH, axis=(2, 3))
        h1 = jnp.maximum(Wc @ params["fc1_w"][g] + params["fc1_b"][g, 0], 0.0)
        Mc = jax.nn.sigmoid(h1 @ params["fc2_w"][g] + params["fc2_b"][g, 0])
        x_att = y * Mc[:, :, None, None]
        high = jnp.concatenate([LH, HL, HH], axis=1)
        avg_p = jnp.mean(high, axis=1)
        max_p = jnp.max(high, axis=1)
        sc = params["sconv"][g][:, 0, 0]
        Ms = jax.nn.sigmoid(sc[0] * avg_p + sc[1] * max_p + sc[2])
        Ms_up = jnp.einsum('hk,bkq,wq->bhw', up_h, Ms, up_w)                  # x2 bilinear
        out = x_att * Ms_up[:, None, :, :]
        feats.append(jnp.mean(out, axis=(2, 3)))
    feat_all = jnp.concatenate(feats, axis=1)                                  # (B, F_TOTAL)
    gap_pred = feat_all @ params["cls_gap_w"].reshape(F_TOTAL, N_CLASSES) + params["cls_gap_b"]
    gamma = params["bn_gamma"].reshape(1, F_TOTAL)
    beta = params["bn_beta"].reshape(1, F_TOTAL)
    mean = params["bn_mean"].reshape(1, F_TOTAL)
    var = params["bn_var"].reshape(1, F_TOTAL)
    xn = (feat_all - mean) / jnp.sqrt(var + 1e-5) * gamma + beta
    wav_pred = xn @ params["cls_wav_w"].reshape(F_TOTAL, N_CLASSES) + params["cls_wav_b"]
    return gap_pred, wav_pred


# ----------------------------------- main ------------------------------------
if __name__ == "__main__":
    key = jax.random.PRNGKey(0)
    kx, kp = jax.random.split(key)
    x = jax.random.normal(kx, (B, C_IN, H, W), jnp.float32)
    params = init_params(kp)

    fwd = jax.jit(forward)
    gap_pred, wavelet_pred = fwd(params, x)
    jax.block_until_ready((gap_pred, wavelet_pred))

    assert gap_pred.shape == (B, N_CLASSES)
    assert wavelet_pred.shape == (B, N_CLASSES)
    assert bool(jnp.all(jnp.isfinite(gap_pred))) and bool(jnp.all(jnp.isfinite(wavelet_pred)))

    # numerical self-check against a plain-JAX, torch-faithful reference
    with jax.default_matmul_precision("highest"):
        ref_gap, ref_wav = reference_forward(params, x)
    np.testing.assert_allclose(np.asarray(gap_pred), np.asarray(ref_gap), rtol=2e-2, atol=2e-3)
    np.testing.assert_allclose(np.asarray(wavelet_pred), np.asarray(ref_wav), rtol=2e-2, atol=2e-3)

    print("KERNEL_OK")
</pallas_src>

<mosaic_0001>
module attributes {stable_mosaic.version = 11 : i64} {
  func.func @_pyramid_group_kernel(%arg0: i32, %arg1: memref<1x2x16x16x2xf32, #tpu.memory_space<vmem>>, %arg2: memref<1x2x32x8x2xf32, #tpu.memory_space<vmem>>, %arg3: memref<1x2x32xf32, #tpu.memory_space<vmem>>, %arg4: memref<1x1x32xf32, #tpu.memory_space<vmem>>, %arg5: memref<1x32x2xf32, #tpu.memory_space<vmem>>, %arg6: memref<1x1x2xf32, #tpu.memory_space<vmem>>, %arg7: memref<1x2x32xf32, #tpu.memory_space<vmem>>, %arg8: memref<1x1x32xf32, #tpu.memory_space<vmem>>, %arg9: memref<1x3x1x1xf32, #tpu.memory_space<vmem>>, %arg10: memref<16x8xf32, #tpu.memory_space<vmem>>, %arg11: memref<8x16xf32, #tpu.memory_space<vmem>>, %arg12: memref<1x32x4xf32, #tpu.memory_space<vmem>>, %arg13: memref<1x4xf32, #tpu.memory_space<vmem>>, %arg14: memref<1x32x4xf32, #tpu.memory_space<vmem>>, %arg15: memref<1x4xf32, #tpu.memory_space<vmem>>, %arg16: memref<1x1x32xf32, #tpu.memory_space<vmem>>, %arg17: memref<1x1x32xf32, #tpu.memory_space<vmem>>, %arg18: memref<1x1x32xf32, #tpu.memory_space<vmem>>, %arg19: memref<1x1x32xf32, #tpu.memory_space<vmem>>, %arg20: memref<2x4xf32, #tpu.memory_space<vmem>>, %arg21: memref<2x4xf32, #tpu.memory_space<vmem>>) attributes {dimension_semantics = [#tpu.dimension_semantics<arbitrary>], iteration_bounds = array<i64: 2>, scalar_prefetch = 0 : i64, scratch_operands = 0 : i64, tpu.core_type = #tpu.core_type<tc>, window_params = [{transform_indices = @transform_0, window_bounds = array<i64: 1, 2, 16, 16, 2>}, {transform_indices = @transform_1, window_bounds = array<i64: 1, 2, 32, 8, 2>}, {transform_indices = @transform_2, window_bounds = array<i64: 1, 2, 32>}, {transform_indices = @transform_3, window_bounds = array<i64: 1, 1, 32>}, {transform_indices = @transform_4, window_bounds = array<i64: 1, 32, 2>}, {transform_indices = @transform_5, window_bounds = array<i64: 1, 1, 2>}, {transform_indices = @transform_6, window_bounds = array<i64: 1, 2, 32>}, {transform_indices = @transform_7, window_bounds = array<i64: 1, 1, 32>}, {transform_indices = @transform_8, window_bounds = array<i64: 1, 3, 1, 1>}, {pipeline_mode = #tpu.pipeline_mode<synchronous>, transform_indices = @transform_9, window_bounds = array<i64: 16, 8>}, {pipeline_mode = #tpu.pipeline_mode<synchronous>, transform_indices = @transform_10, window_bounds = array<i64: 8, 16>}, {transform_indices = @transform_11, window_bounds = array<i64: 1, 32, 4>}, {pipeline_mode = #tpu.pipeline_mode<synchronous>, transform_indices = @transform_12, window_bounds = array<i64: 1, 4>}, {transform_indices = @transform_13, window_bounds = array<i64: 1, 32, 4>}, {pipeline_mode = #tpu.pipeline_mode<synchronous>, transform_indices = @transform_14, window_bounds = array<i64: 1, 4>}, {transform_indices = @transform_15, window_bounds = array<i64: 1, 1, 32>}, {transform_indices = @transform_16, window_bounds = array<i64: 1, 1, 32>}, {transform_indices = @transform_17, window_bounds = array<i64: 1, 1, 32>}, {transform_indices = @transform_18, window_bounds = array<i64: 1, 1, 32>}, {pipeline_mode = #tpu.pipeline_mode<synchronous>, transform_indices = @transform_19, window_bounds = array<i64: 2, 4>}, {pipeline_mode = #tpu.pipeline_mode<synchronous>, transform_indices = @transform_20, window_bounds = array<i64: 2, 4>}]} {
    %c0 = arith.constant 0 : index
    %c0_0 = arith.constant 0 : index
    %c0_1 = arith.constant 0 : index
    %0 = vector.load %arg3[%c0, %c0_0, %c0_1] : memref<1x2x32xf32, #tpu.memory_space<vmem>>, vector<1x2x32xf32>
    %1 = vector.shape_cast %0 : vector<1x2x32xf32> to vector<2x32xf32>
    %c0_2 = arith.constant 0 : index
    %c0_3 = arith.constant 0 : index
    %c0_4 = arith.constant 0 : index
    %2 = vector.load %arg4[%c0_2, %c0_3, %c0_4] : memref<1x1x32xf32, #tpu.memory_space<vmem>>, vector<1x1x32xf32>
    %3 = vector.shape_cast %2 : vector<1x1x32xf32> to vector<1x32xf32>
    %c0_5 = arith.constant 0 : index
    %c0_6 = arith.constant 0 : index
    %c0_7 = arith.constant 0 : index
    %c0_8 = arith.constant 0 : index
    %c0_9 = arith.constant 0 : index
    %4 = vector.load %arg1[%c0_5, %c0_6, %c0_7, %c0_8, %c0_9] : memref<1x2x16x16x2xf32, #tpu.memory_space<vmem>>, vector<1x2x16x16x2xf32>
    %5 = vector.shape_cast %4 : vector<1x2x16x16x2xf32> to vector<2x16x16x2xf32>
    %6 = vector.extract_strided_slice %5 {offsets = [0, 0, 0, 0], sizes = [2, 16, 16, 1], strides = [1, 1, 1, 1]} : vector<2x16x16x2xf32> to vector<2x16x16x1xf32>
    %7 = vector.extract_strided_slice %1 {offsets = [0, 0], sizes = [1, 32], strides = [1, 1]} : vector<2x32xf32> to vector<1x32xf32>
    %8 = vector.shape_cast %7 : vector<1x32xf32> to vector<1x1x1x32xf32>
    %9 = vector.broadcast %6 : vector<2x16x16x1xf32> to vector<2x16x16x32xf32>
    %10 = vector.broadcast %8 : vector<1x1x1x32xf32> to vector<2x16x16x32xf32>
    %11 = arith.mulf %9, %10 : vector<2x16x16x32xf32>
    %12 = vector.shape_cast %3 : vector<1x32xf32> to vector<1x1x1x32xf32>
    %13 = vector.broadcast %12 : vector<1x1x1x32xf32> to vector<2x16x16x32xf32>
    %14 = arith.addf %11, %13 : vector<2x16x16x32xf32>
    %15 = vector.extract_strided_slice %5 {offsets = [0, 0, 0, 1], sizes = [2, 16, 16, 1], strides = [1, 1, 1, 1]} : vector<2x16x16x2xf32> to vector<2x16x16x1xf32>
    %16 = vector.extract_strided_slice %1 {offsets = [1, 0], sizes = [1, 32], strides = [1, 1]} : vector<2x32xf32> to vector<1x32xf32>
    %17 = vector.shape_cast %16 : vector<1x32xf32> to vector<1x1x1x32xf32>
    %18 = vector.broadcast %15 : vector<2x16x16x1xf32> to vector<2x16x16x32xf32>
    %19 = vector.broadcast %17 : vector<1x1x1x32xf32> to vector<2x16x16x32xf32>
    %20 = arith.mulf %18, %19 : vector<2x16x16x32xf32>
    %21 = arith.addf %14, %20 : vector<2x16x16x32xf32>
    %cst = arith.constant 0.000000e+00 : f32
    %22 = vector.broadcast %cst : f32 to vector<2x16x16x32xf32>
    %23 = arith.maximumf %21, %22 : vector<2x16x16x32xf32>
    %c0_10 = arith.constant 0 : index
    %c0_11 = arith.constant 0 : index
    %c0_12 = arith.constant 0 : index
    %c0_13 = arith.constant 0 : index
    %c0_14 = arith.constant 0 : index
    %24 = vector.load %arg2[%c0_10, %c0_11, %c0_12, %c0_13, %c0_14] : memref<1x2x32x8x2xf32, #tpu.memory_space<vmem>>, vector<1x2x32x8x2xf32>
    %25 = vector.shape_cast %24 : vector<1x2x32x8x2xf32> to vector<2x32x8x2xf32>
    %26 = vector.extract_strided_slice %25 {offsets = [0, 0, 0, 0], sizes = [2, 32, 8, 1], strides = [1, 1, 1, 1]} : vector<2x32x8x2xf32> to vector<2x32x8x1xf32>
    %27 = vector.extract_strided_slice %1 {offsets = [0, 0], sizes = [1, 32], strides = [1, 1]} : vector<2x32xf32> to vector<1x32xf32>
    %28 = vector.shape_cast %27 : vector<1x32xf32> to vector<1x1x1x32xf32>
    %29 = vector.broadcast %26 : vector<2x32x8x1xf32> to vector<2x32x8x32xf32>
    %30 = vector.broadcast %28 : vector<1x1x1x32xf32> to vector<2x32x8x32xf32>
    %31 = arith.mulf %29, %30 : vector<2x32x8x32xf32>
    %32 = vector.shape_cast %3 : vector<1x32xf32> to vector<1x1x1x32xf32>
    %33 = vector.broadcast %32 : vector<1x1x1x32xf32> to vector<2x32x8x32xf32>
    %34 = arith.addf %31, %33 : vector<2x32x8x32xf32>
    %35 = vector.extract_strided_slice %25 {offsets = [0, 0, 0, 1], sizes = [2, 32, 8, 1], strides = [1, 1, 1, 1]} : vector<2x32x8x2xf32> to vector<2x32x8x1xf32>
    %36 = vector.extract_strided_slice %1 {offsets = [1, 0], sizes = [1, 32], strides = [1, 1]} : vector<2x32xf32> to vector<1x32xf32>
    %37 = vector.shape_cast %36 : vector<1x32xf32> to vector<1x1x1x32xf32>
    %38 = vector.broadcast %35 : vector<2x32x8x1xf32> to vector<2x32x8x32xf32>
    %39 = vector.broadcast %37 : vector<1x1x1x32xf32> to vector<2x32x8x32xf32>
    %40 = arith.mulf %38, %39 : vector<2x32x8x32xf32>
    %41 = arith.addf %34, %40 : vector<2x32x8x32xf32>
    %cst_15 = arith.constant 0.000000e+00 : f32
    %42 = vector.broadcast %cst_15 : f32 to vector<2x32x8x32xf32>
    %43 = arith.maximumf %41, %42 : vector<2x32x8x32xf32>
    %44 = vector.extract_strided_slice %43 {offsets = [0, 0, 0, 0], sizes = [2, 8, 8, 32], strides = [1, 1, 1, 1]} : vector<2x32x8x32xf32> to vector<2x8x8x32xf32>
    %45 = vector.extract_strided_slice %43 {offsets = [0, 8, 0, 0], sizes = [2, 8, 8, 32], strides = [1, 1, 1, 1]} : vector<2x32x8x32xf32> to vector<2x8x8x32xf32>
    %46 = vector.extract_strided_slice %43 {offsets = [0, 16, 0, 0], sizes = [2, 8, 8, 32], strides = [1, 1, 1, 1]} : vector<2x32x8x32xf32> to vector<2x8x8x32xf32>
    %47 = vector.extract_strided_slice %43 {offsets = [0, 24, 0, 0], sizes = [2, 8, 8, 32], strides = [1, 1, 1, 1]} : vector<2x32x8x32xf32> to vector<2x8x8x32xf32>
    %48 = arith.subf %45, %44 : vector<2x8x8x32xf32>
    %49 = arith.subf %46, %44 : vector<2x8x8x32xf32>
    %50 = arith.subf %47, %44 : vector<2x8x8x32xf32>
    %51 = arith.addf %44, %48 : vector<2x8x8x32xf32>
    %52 = arith.addf %51, %49 : vector<2x8x8x32xf32>
    %53 = arith.addf %52, %50 : vector<2x8x8x32xf32>
    %cst_16 = arith.constant dense<0.000000e+00> : vector<2x32xf32>
    %54 = vector.multi_reduction <add>, %53, %cst_16 [1, 2] : vector<2x8x8x32xf32> to vector<2x32xf32>
    %cst_17 = arith.constant 6.400000e+01 : f32
    %55 = vector.broadcast %cst_17 : f32 to vector<2x32xf32>
    %56 = arith.divf %54, %55 : vector<2x32xf32>
    %c0_18 = arith.constant 0 : index
    %c0_19 = arith.constant 0 : index
    %c0_20 = arith.constant 0 : index
    %57 = vector.load %arg5[%c0_18, %c0_19, %c0_20] : memref<1x32x2xf32, #tpu.memory_space<vmem>>, vector<1x32x2xf32>
    %58 = vector.shape_cast %57 : vector<1x32x2xf32> to vector<32x2xf32>
    %cst_21 = arith.constant dense<0.000000e+00> : vector<2x2xf32>
    %59 = tpu.matmul %56, %58, %cst_21 {dimension_numbers = #tpu.dot_dimension_numbers<[1], [0], [0], [1], [0, 0, 1, 1], [], []>} : vector<2x32xf32>, vector<32x2xf32>, vector<2x2xf32> -> vector<2x2xf32>
    %c0_22 = arith.constant 0 : index
    %c0_23 = arith.constant 0 : index
    %c0_24 = arith.constant 0 : index
    %60 = vector.load %arg6[%c0_22, %c0_23, %c0_24] : memref<1x1x2xf32, #tpu.memory_space<vmem>>, vector<1x1x2xf32>
    %61 = vector.shape_cast %60 : vector<1x1x2xf32> to vector<1x2xf32>
    %62 = vector.broadcast %61 : vector<1x2xf32> to vector<2x2xf32>
    %63 = arith.addf %59, %62 : vector<2x2xf32>
    %cst_25 = arith.constant 0.000000e+00 : f32
    %64 = vector.broadcast %cst_25 : f32 to vector<2x2xf32>
    %65 = arith.maximumf %63, %64 : vector<2x2xf32>
    %c0_26 = arith.constant 0 : index
    %c0_27 = arith.constant 0 : index
    %c0_28 = arith.constant 0 : index
    %66 = vector.load %arg7[%c0_26, %c0_27, %c0_28] : memref<1x2x32xf32, #tpu.memory_space<vmem>>, vector<1x2x32xf32>
    %67 = vector.shape_cast %66 : vector<1x2x32xf32> to vector<2x32xf32>
    %cst_29 = arith.constant dense<0.000000e+00> : vector<2x32xf32>
    %68 = tpu.matmul %65, %67, %cst_29 {dimension_numbers = #tpu.dot_dimension_numbers<[1], [0], [0], [1], [0, 0, 1, 1], [], []>} : vector<2x2xf32>, vector<2x32xf32>, vector<2x32xf32> -> vector<2x32xf32>
    %c0_30 = arith.constant 0 : index
    %c0_31 = arith.constant 0 : index
    %c0_32 = arith.constant 0 : index
    %69 = vector.load %arg8[%c0_30, %c0_31, %c0_32] : memref<1x1x32xf32, #tpu.memory_space<vmem>>, vector<1x1x32xf32>
    %70 = vector.shape_cast %69 : vector<1x1x32xf32> to vector<1x32xf32>
    %71 = vector.broadcast %70 : vector<1x32xf32> to vector<2x32xf32>
    %72 = arith.addf %68, %71 : vector<2x32xf32>
    %73 = arith.negf %72 : vector<2x32xf32>
    %74 = math.exp %73 : vector<2x32xf32>
    %cst_33 = arith.constant 1.000000e+00 : f32
    %75 = vector.broadcast %cst_33 : f32 to vector<2x32xf32>
    %76 = arith.addf %75, %74 : vector<2x32xf32>
    %77 = arith.divf %75, %76 : vector<2x32xf32>
    %78 = arith.addf %48, %49 : vector<2x8x8x32xf32>
    %79 = arith.addf %78, %50 : vector<2x8x8x32xf32>
    %cst_34 = arith.constant dense<0.000000e+00> : vector<2x8x8xf32>
    %80 = vector.multi_reduction <add>, %79, %cst_34 [3] : vector<2x8x8x32xf32> to vector<2x8x8xf32>
    %cst_35 = arith.constant 3.200000e+01 : f32
    %81 = vector.broadcast %cst_35 : f32 to vector<2x8x8xf32>
    %82 = arith.divf %80, %81 : vector<2x8x8xf32>
    %cst_36 = arith.constant 0.333333343 : f32
    %83 = vector.broadcast %cst_36 : f32 to vector<2x8x8xf32>
    %84 = arith.mulf %82, %83 : vector<2x8x8xf32>
    %85 = arith.maximumf %48, %49 : vector<2x8x8x32xf32>
    %86 = arith.maximumf %85, %50 : vector<2x8x8x32xf32>
    %cst_37 = arith.constant dense<0xFF800000> : vector<2x8x8xf32>
    %87 = vector.multi_reduction <maximumf>, %86, %cst_37 [3] : vector<2x8x8x32xf32> to vector<2x8x8xf32>
    %c0_38 = arith.constant 0 : index
    %c0_39 = arith.constant 0 : index
    %c0_40 = arith.constant 0 : index
    %c0_41 = arith.constant 0 : index
    %88 = vector.load %arg9[%c0_38, %c0_39, %c0_40, %c0_41] : memref<1x3x1x1xf32, #tpu.memory_space<vmem>>, vector<1x3x1x1xf32>
    %89 = vector.shape_cast %88 : vector<1x3x1x1xf32> to vector<3x1x1xf32>
    %90 = vector.extract_strided_slice %89 {offsets = [0, 0, 0], sizes = [1, 1, 1], strides = [1, 1, 1]} : vector<3x1x1xf32> to vector<1x1x1xf32>
    %91 = vector.shape_cast %90 : vector<1x1x1xf32> to vector<1x1xf32>
    %92 = vector.shape_cast %91 : vector<1x1xf32> to vector<1x1x1xf32>
    %93 = vector.broadcast %92 : vector<1x1x1xf32> to vector<2x8x8xf32>
    %94 = arith.mulf %93, %84 : vector<2x8x8xf32>
    %95 = vector.extract_strided_slice %89 {offsets = [1, 0, 0], sizes = [1, 1, 1], strides = [1, 1, 1]} : vector<3x1x1xf32> to vector<1x1x1xf32>
    %96 = vector.shape_cast %95 : vector<1x1x1xf32> to vector<1x1xf32>
    %97 = vector.shape_cast %96 : vector<1x1xf32> to vector<1x1x1xf32>
    %98 = vector.broadcast %97 : vector<1x1x1xf32> to vector<2x8x8xf32>
    %99 = arith.mulf %98, %87 : vector<2x8x8xf32>
    %100 = arith.addf %94, %99 : vector<2x8x8xf32>
    %101 = vector.extract_strided_slice %89 {offsets = [2, 0, 0], sizes = [1, 1, 1], strides = [1, 1, 1]} : vector<3x1x1xf32> to vector<1x1x1xf32>
    %102 = vector.shape_cast %101 : vector<1x1x1xf32> to vector<1x1xf32>
    %103 = vector.shape_cast %102 : vector<1x1xf32> to vector<1x1x1xf32>
    %104 = vector.broadcast %103 : vector<1x1x1xf32> to vector<2x8x8xf32>
    %105 = arith.addf %100, %104 : vector<2x8x8xf32>
    %106 = arith.negf %105 : vector<2x8x8xf32>
    %107 = math.exp %106 : vector<2x8x8xf32>
    %cst_42 = arith.constant 1.000000e+00 : f32
    %108 = vector.broadcast %cst_42 : f32 to vector<2x8x8xf32>
    %109 = arith.addf %108, %107 : vector<2x8x8xf32>
    %110 = arith.divf %108, %109 : vector<2x8x8xf32>
    %c0_43 = arith.constant 0 : index
    %c0_44 = arith.constant 0 : index
    %111 = vector.load %arg11[%c0_43, %c0_44] : memref<8x16xf32, #tpu.memory_space<vmem>>, vector<8x16xf32>
    %112 = vector.shape_cast %111 : vector<8x16xf32> to vector<1x8x16xf32>
    %113 = vector.shape_cast %112 : vector<1x8x16xf32> to vector<1x8x16xf32>
    %114 = vector.broadcast %113 : vector<1x8x16xf32> to vector<2x8x16xf32>
    %c0_45 = arith.constant 0 : index
    %c0_46 = arith.constant 0 : index
    %115 = vector.load %arg10[%c0_45, %c0_46] : memref<16x8xf32, #tpu.memory_space<vmem>>, vector<16x8xf32>
    %116 = vector.shape_cast %115 : vector<16x8xf32> to vector<1x16x8xf32>
    %117 = vector.shape_cast %116 : vector<1x16x8xf32> to vector<1x16x8xf32>
    %118 = vector.broadcast %117 : vector<1x16x8xf32> to vector<2x16x8xf32>
    "tpu.trace_start"() <{level = 10 : i32, message = "bij,bjk->bik"}> : () -> ()
    %cst_47 = arith.constant dense<0.000000e+00> : vector<2x8x16xf32>
    %119 = tpu.matmul %110, %114, %cst_47 {dimension_numbers = #tpu.dot_dimension_numbers<[2], [1], [1], [2], [0, 0, 0, 1, 1, 2], [0], [0]>} : vector<2x8x8xf32>, vector<2x8x16xf32>, vector<2x8x16xf32> -> vector<2x8x16xf32>
    %cst_48 = arith.constant dense<0.000000e+00> : vector<2x16x16xf32>
    %120 = tpu.matmul %118, %119, %cst_48 {dimension_numbers = #tpu.dot_dimension_numbers<[2], [1], [1], [2], [0, 0, 0, 1, 1, 2], [0], [0]>} : vector<2x16x8xf32>, vector<2x8x16xf32>, vector<2x16x16xf32> -> vector<2x16x16xf32>
    "tpu.trace_stop"() : () -> ()
    %121 = vector.shape_cast %120 : vector<2x16x16xf32> to vector<2x16x16x1xf32>
    %122 = vector.broadcast %121 : vector<2x16x16x1xf32> to vector<2x16x16x32xf32>
    %123 = arith.mulf %23, %122 : vector<2x16x16x32xf32>
    %cst_49 = arith.constant dense<0.000000e+00> : vector<2x32xf32>
    %124 = vector.multi_reduction <add>, %123, %cst_49 [1, 2] : vector<2x16x16x32xf32> to vector<2x32xf32>
    %cst_50 = arith.constant 2.560000e+02 : f32
    %125 = vector.broadcast %cst_50 : f32 to vector<2x32xf32>
    %126 = arith.divf %124, %125 : vector<2x32xf32>
    %127 = arith.mulf %77, %126 : vector<2x32xf32>
    %c0_i32 = arith.constant 0 : i32
    %128 = arith.cmpi eq, %arg0, %c0_i32 : i32
    %129 = arith.extui %128 : i1 to i32
    %c0_i32_51 = arith.constant 0 : i32
    %130 = arith.cmpi ne, %129, %c0_i32_51 : i32
    scf.if %130 {
      %c0_81 = arith.constant 0 : index
      %c0_82 = arith.constant 0 : index
      %162 = vector.load %arg13[%c0_81, %c0_82] : memref<1x4xf32, #tpu.memory_space<vmem>>, vector<1x4xf32>
      %163 = vector.shape_cast %162 : vector<1x4xf32> to vector<1x4xf32>
      %164 = vector.broadcast %163 : vector<1x4xf32> to vector<2x4xf32>
      %c0_83 = arith.constant 0 : index
      %c0_84 = arith.constant 0 : index
      %165 = vector.load %arg20[%c0_83, %c0_84] : memref<2x4xf32, #tpu.memory_space<vmem>>, vector<2x4xf32>
      tpu.vector_store %arg20[%c0_83, %c0_84], %164 {strides = array<i32>} : memref<2x4xf32, #tpu.memory_space<vmem>>, vector<2x4xf32>,
      %c0_85 = arith.constant 0 : index
      %c0_86 = arith.constant 0 : index
      %166 = vector.load %arg15[%c0_85, %c0_86] : memref<1x4xf32, #tpu.memory_space<vmem>>, vector<1x4xf32>
      %167 = vector.shape_cast %166 : vector<1x4xf32> to vector<1x4xf32>
      %168 = vector.broadcast %167 : vector<1x4xf32> to vector<2x4xf32>
      %c0_87 = arith.constant 0 : index
      %c0_88 = arith.constant 0 : index
      %169 = vector.load %arg21[%c0_87, %c0_88] : memref<2x4xf32, #tpu.memory_space<vmem>>, vector<2x4xf32>
      tpu.vector_store %arg21[%c0_87, %c0_88], %168 {strides = array<i32>} : memref<2x4xf32, #tpu.memory_space<vmem>>, vector<2x4xf32>,
    } else {
    }
    %c0_52 = arith.constant 0 : index
    %c0_53 = arith.constant 0 : index
    %131 = vector.load %arg20[%c0_52, %c0_53] : memref<2x4xf32, #tpu.memory_space<vmem>>, vector<2x4xf32>
    %c0_54 = arith.constant 0 : index
    %c0_55 = arith.constant 0 : index
    %c0_56 = arith.constant 0 : index
    %132 = vector.load %arg12[%c0_54, %c0_55, %c0_56] : memref<1x32x4xf32, #tpu.memory_space<vmem>>, vector<1x32x4xf32>
    %133 = vector.shape_cast %132 : vector<1x32x4xf32> to vector<32x4xf32>
    %cst_57 = arith.constant dense<0.000000e+00> : vector<2x4xf32>
    %134 = tpu.matmul %127, %133, %cst_57 {dimension_numbers = #tpu.dot_dimension_numbers<[1], [0], [0], [1], [0, 0, 1, 1], [], []>} : vector<2x32xf32>, vector<32x4xf32>, vector<2x4xf32> -> vector<2x4xf32>
    %135 = arith.addf %131, %134 : vector<2x4xf32>
    %c0_58 = arith.constant 0 : index
    %c0_59 = arith.constant 0 : index
    %136 = vector.load %arg20[%c0_58, %c0_59] : memref<2x4xf32, #tpu.memory_space<vmem>>, vector<2x4xf32>
    tpu.vector_store %arg20[%c0_58, %c0_59], %135 {strides = array<i32>} : memref<2x4xf32, #tpu.memory_space<vmem>>, vector<2x4xf32>,
    %c0_60 = arith.constant 0 : index
    %c0_61 = arith.constant 0 : index
    %c0_62 = arith.constant 0 : index
    %137 = vector.load %arg18[%c0_60, %c0_61, %c0_62] : memref<1x1x32xf32, #tpu.memory_space<vmem>>, vector<1x1x32xf32>
    %138 = vector.shape_cast %137 : vector<1x1x32xf32> to vector<1x32xf32>
    %139 = vector.broadcast %138 : vector<1x32xf32> to vector<2x32xf32>
    %140 = arith.subf %127, %139 : vector<2x32xf32>
    %c0_63 = arith.constant 0 : index
    %c0_64 = arith.constant 0 : index
    %c0_65 = arith.constant 0 : index
    %141 = vector.load %arg19[%c0_63, %c0_64, %c0_65] : memref<1x1x32xf32, #tpu.memory_space<vmem>>, vector<1x1x32xf32>
    %142 = vector.shape_cast %141 : vector<1x1x32xf32> to vector<1x32xf32>
    %cst_66 = arith.constant 9.99999974E-6 : f32
    %143 = vector.broadcast %cst_66 : f32 to vector<1x32xf32>
    %144 = arith.addf %142, %143 : vector<1x32xf32>
    %145 = math.rsqrt %144 : vector<1x32xf32>
    %146 = vector.broadcast %145 : vector<1x32xf32> to vector<2x32xf32>
    %147 = arith.mulf %140, %146 : vector<2x32xf32>
    %c0_67 = arith.constant 0 : index
    %c0_68 = arith.constant 0 : index
    %c0_69 = arith.constant 0 : index
    %148 = vector.load %arg16[%c0_67, %c0_68, %c0_69] : memref<1x1x32xf32, #tpu.memory_space<vmem>>, vector<1x1x32xf32>
    %149 = vector.shape_cast %148 : vector<1x1x32xf32> to vector<1x32xf32>
    %150 = vector.broadcast %149 : vector<1x32xf32> to vector<2x32xf32>
    %151 = arith.mulf %147, %150 : vector<2x32xf32>
    %c0_70 = arith.constant 0 : index
    %c0_71 = arith.constant 0 : index
    %c0_72 = arith.constant 0 : index
    %152 = vector.load %arg17[%c0_70, %c0_71, %c0_72] : memref<1x1x32xf32, #tpu.memory_space<vmem>>, vector<1x1x32xf32>
    %153 = vector.shape_cast %152 : vector<1x1x32xf32> to vector<1x32xf32>
    %154 = vector.broadcast %153 : vector<1x32xf32> to vector<2x32xf32>
    %155 = arith.addf %151, %154 : vector<2x32xf32>
    %c0_73 = arith.constant 0 : index
    %c0_74 = arith.constant 0 : index
    %156 = vector.load %arg21[%c0_73, %c0_74] : memref<2x4xf32, #tpu.memory_space<vmem>>, vector<2x4xf32>
    %c0_75 = arith.constant 0 : index
    %c0_76 = arith.constant 0 : index
    %c0_77 = arith.constant 0 : index
    %157 = vector.load %arg14[%c0_75, %c0_76, %c0_77] : memref<1x32x4xf32, #tpu.memory_space<vmem>>, vector<1x32x4xf32>
    %158 = vector.shape_cast %157 : vector<1x32x4xf32> to vector<32x4xf32>
    %cst_78 = arith.constant dense<0.000000e+00> : vector<2x4xf32>
    %159 = tpu.matmul %155, %158, %cst_78 {dimension_numbers = #tpu.dot_dimension_numbers<[1], [0], [0], [1], [0, 0, 1, 1], [], []>} : vector<2x32xf32>, vector<32x4xf32>, vector<2x4xf32> -> vector<2x4xf32>
    %160 = arith.addf %156, %159 : vector<2x4xf32>
    %c0_79 = arith.constant 0 : index
    %c0_80 = arith.constant 0 : index
    %161 = vector.load %arg21[%c0_79, %c0_80] : memref<2x4xf32, #tpu.memory_space<vmem>>, vector<2x4xf32>
    tpu.vector_store %arg21[%c0_79, %c0_80], %160 {strides = array<i32>} : memref<2x4xf32, #tpu.memory_space<vmem>>, vector<2x4xf32>,
    return
  }
  func.func @transform_0(%arg0: i32) -> (i32, i32, i32, i32, i32) {
    %c0_i32 = arith.constant 0 : i32
    %c0_i32_0 = arith.constant 0 : i32
    %c0_i32_1 = arith.constant 0 : i32
    %c0_i32_2 = arith.constant 0 : i32
    %c0_i32_3 = arith.constant 0 : i32
    return %arg0, %c0_i32, %c0_i32_0, %c0_i32_1, %c0_i32_2 : i32, i32, i32, i32, i32
  }
  func.func @transform_1(%arg0: i32) -> (i32, i32, i32, i32, i32) {
    %c0_i32 = arith.constant 0 : i32
    %c0_i32_0 = arith.constant 0 : i32
    %c0_i32_1 = arith.constant 0 : i32
    %c0_i32_2 = arith.constant 0 : i32
    %c0_i32_3 = arith.constant 0 : i32
    return %arg0, %c0_i32, %c0_i32_0, %c0_i32_1, %c0_i32_2 : i32, i32, i32, i32, i32
  }
  func.func @transform_2(%arg0: i32) -> (i32, i32, i32) {
    %c0_i32 = arith.constant 0 : i32
    %c0_i32_0 = arith.constant 0 : i32
    %c0_i32_1 = arith.constant 0 : i32
    return %arg0, %c0_i32, %c0_i32_0 : i32, i32, i32
  }
  func.func @transform_3(%arg0: i32) -> (i32, i32, i32) {
    %c0_i32 = arith.constant 0 : i32
    %c0_i32_0 = arith.constant 0 : i32
    %c0_i32_1 = arith.constant 0 : i32
    return %arg0, %c0_i32, %c0_i32_0 : i32, i32, i32
  }
  func.func @transform_4(%arg0: i32) -> (i32, i32, i32) {
    %c0_i32 = arith.constant 0 : i32
    %c0_i32_0 = arith.constant 0 : i32
    %c0_i32_1 = arith.constant 0 : i32
    return %arg0, %c0_i32, %c0_i32_0 : i32, i32, i32
  }
  func.func @transform_5(%arg0: i32) -> (i32, i32, i32) {
    %c0_i32 = arith.constant 0 : i32
    %c0_i32_0 = arith.constant 0 : i32
    %c0_i32_1 = arith.constant 0 : i32
    return %arg0, %c0_i32, %c0_i32_0 : i32, i32, i32
  }
  func.func @transform_6(%arg0: i32) -> (i32, i32, i32) {
    %c0_i32 = arith.constant 0 : i32
    %c0_i32_0 = arith.constant 0 : i32
    %c0_i32_1 = arith.constant 0 : i32
    return %arg0, %c0_i32, %c0_i32_0 : i32, i32, i32
  }
  func.func @transform_7(%arg0: i32) -> (i32, i32, i32) {
    %c0_i32 = arith.constant 0 : i32
    %c0_i32_0 = arith.constant 0 : i32
    %c0_i32_1 = arith.constant 0 : i32
    return %arg0, %c0_i32, %c0_i32_0 : i32, i32, i32
  }
  func.func @transform_8(%arg0: i32) -> (i32, i32, i32, i32) {
    %c0_i32 = arith.constant 0 : i32
    %c0_i32_0 = arith.constant 0 : i32
    %c0_i32_1 = arith.constant 0 : i32
    %c0_i32_2 = arith.constant 0 : i32
    return %arg0, %c0_i32, %c0_i32_0, %c0_i32_1 : i32, i32, i32, i32
  }
  func.func @transform_9(%arg0: i32) -> (i32, i32) {
    %c0_i32 = arith.constant 0 : i32
    %c0_i32_0 = arith.constant 0 : i32
    %c0_i32_1 = arith.constant 0 : i32
    return %c0_i32, %c0_i32_0 : i32, i32
  }
  func.func @transform_10(%arg0: i32) -> (i32, i32) {
    %c0_i32 = arith.constant 0 : i32
    %c0_i32_0 = arith.constant 0 : i32
    %c0_i32_1 = arith.constant 0 : i32
    return %c0_i32, %c0_i32_0 : i32, i32
  }
  func.func @transform_11(%arg0: i32) -> (i32, i32, i32) {
    %c0_i32 = arith.constant 0 : i32
    %c0_i32_0 = arith.constant 0 : i32
    %c0_i32_1 = arith.constant 0 : i32
    return %arg0, %c0_i32, %c0_i32_0 : i32, i32, i32
  }
  func.func @transform_12(%arg0: i32) -> (i32, i32) {
    %c0_i32 = arith.constant 0 : i32
    %c0_i32_0 = arith.constant 0 : i32
    %c0_i32_1 = arith.constant 0 : i32
    return %c0_i32, %c0_i32_0 : i32, i32
  }
  func.func @transform_13(%arg0: i32) -> (i32, i32, i32) {
    %c0_i32 = arith.constant 0 : i32
    %c0_i32_0 = arith.constant 0 : i32
    %c0_i32_1 = arith.constant 0 : i32
    return %arg0, %c0_i32, %c0_i32_0 : i32, i32, i32
  }
  func.func @transform_14(%arg0: i32) -> (i32, i32) {
    %c0_i32 = arith.constant 0 : i32
    %c0_i32_0 = arith.constant 0 : i32
    %c0_i32_1 = arith.constant 0 : i32
    return %c0_i32, %c0_i32_0 : i32, i32
  }
  func.func @transform_15(%arg0: i32) -> (i32, i32, i32) {
    %c0_i32 = arith.constant 0 : i32
    %c0_i32_0 = arith.constant 0 : i32
    %c0_i32_1 = arith.constant 0 : i32
    return %arg0, %c0_i32, %c0_i32_0 : i32, i32, i32
  }
  func.func @transform_16(%arg0: i32) -> (i32, i32, i32) {
    %c0_i32 = arith.constant 0 : i32
    %c0_i32_0 = arith.constant 0 : i32
    %c0_i32_1 = arith.constant 0 : i32
    return %arg0, %c0_i32, %c0_i32_0 : i32, i32, i32
  }
  func.func @transform_17(%arg0: i32) -> (i32, i32, i32) {
    %c0_i32 = arith.constant 0 : i32
    %c0_i32_0 = arith.constant 0 : i32
    %c0_i32_1 = arith.constant 0 : i32
    return %arg0, %c0_i32, %c0_i32_0 : i32, i32, i32
  }
  func.func @transform_18(%arg0: i32) -> (i32, i32, i32) {
    %c0_i32 = arith.constant 0 : i32
    %c0_i32_0 = arith.constant 0 : i32
    %c0_i32_1 = arith.constant 0 : i32
    return %arg0, %c0_i32, %c0_i32_0 : i32, i32, i32
  }
  func.func @transform_19(%arg0: i32) -> (i32, i32) {
    %c0_i32 = arith.constant 0 : i32
    %c0_i32_0 = arith.constant 0 : i32
    %c0_i32_1 = arith.constant 0 : i32
    return %c0_i32, %c0_i32_0 : i32, i32
  }
  func.func @transform_20(%arg0: i32) -> (i32, i32) {
    %c0_i32 = arith.constant 0 : i32
    %c0_i32_0 = arith.constant 0 : i32
    %c0_i32_1 = arith.constant 0 : i32
    return %c0_i32, %c0_i32_0 : i32, i32
  }
}

</mosaic_0001>

<llo_original>
// kernel: forward.1
$region0: #{forward.1}
  #allocation0 [shape = 'u32[]', space=smem, size = 0x4, offset = 0x4, fixed_abs, tag = 'smem constant byte address 0x4 - core index']
  #allocation1 [shape = 'u32[72,128]{1,0:T(1,128)}', space=vmem, size = 0x9000, scoped, tag = 'internal scratch']
  %s0 = inlined_call_operand.vmem [shape: f32[2,2,16,16,2], index: 0, kind: input, shape index: {}]
  %s1 = inlined_call_operand.vmem [shape: f32[2,2,32,8,2], index: 1, kind: input, shape index: {}]
  %s2 = inlined_call_operand.vmem [shape: f32[2,2,32], index: 2, kind: input, shape index: {}]
  %s3 = inlined_call_operand.vmem [shape: f32[2,1,32], index: 3, kind: input, shape index: {}]
  %s4 = inlined_call_operand.vmem [shape: f32[2,32,2], index: 4, kind: input, shape index: {}]
  %s5 = inlined_call_operand.vmem [shape: f32[2,1,2], index: 5, kind: input, shape index: {}]
  %s6 = inlined_call_operand.vmem [shape: f32[2,2,32], index: 6, kind: input, shape index: {}]
  %s7 = inlined_call_operand.vmem [shape: f32[2,1,32], index: 7, kind: input, shape index: {}]
  %s8 = inlined_call_operand.vmem [shape: f32[2,3,1,1], index: 8, kind: input, shape index: {}]
  %s9 = inlined_call_operand.vmem [shape: f32[16,8], index: 9, kind: input, shape index: {}]
  %s10 = inlined_call_operand.vmem [shape: f32[8,16], index: 10, kind: input, shape index: {}]
  %s11 = inlined_call_operand.vmem [shape: f32[2,32,4], index: 11, kind: input, shape index: {}]
  %s12 = inlined_call_operand.vmem [shape: f32[1,4], index: 12, kind: input, shape index: {}]
  %s13 = inlined_call_operand.vmem [shape: f32[2,32,4], index: 13, kind: input, shape index: {}]
  %s14 = inlined_call_operand.vmem [shape: f32[1,4], index: 14, kind: input, shape index: {}]
  %s15 = inlined_call_operand.vmem [shape: f32[2,1,32], index: 15, kind: input, shape index: {}]
  %s16 = inlined_call_operand.vmem [shape: f32[2,1,32], index: 16, kind: input, shape index: {}]
  %s17 = inlined_call_operand.vmem [shape: f32[2,1,32], index: 17, kind: input, shape index: {}]
  %s18 = inlined_call_operand.vmem [shape: f32[2,1,32], index: 18, kind: input, shape index: {}]
  %s19 = inlined_call_operand.hbm [shape: f32[2,4], index: 19, kind: output, shape index: {0}]
  %s20 = inlined_call_operand.hbm [shape: f32[2,4], index: 20, kind: output, shape index: {1}]
  %21 = xla_tuple %s19, %s20
  %s22 = sld [smem:[#allocation0]]
  $region121: #{forward.1} parent=0
    _
  %s24 = ssub.s32 1, %s22
  %s25 = scalar_select 0, %s24, %s22
  $region1: #{forward.1} parent=0
    #allocation2 [shape = 'u8[1024]{0}', space=vmem, size = 0x400, scoped, tag = 'output window, operand 0, single buffered']
    #allocation3 [shape = 's32[2]{0}', space=sflag, size = 0x8, scoped, tag = 'scoped memory for forward.1']
    #allocation4 [shape = 'u8[1024]{0}', space=vmem, size = 0x400, scoped, tag = 'output window, operand 1, single buffered']
    #allocation5 [shape = 's32[1]{0}', space=sflag, size = 0x4, scoped, tag = 'scoped memory for forward.1']
    %26 = vsyncpa [#allocation3], 0
    %27 = vsyncpa [#allocation5], 0
    loop: start=0, step=1, limit=4
    $region2: #{forward.1} parent=1 // loop_pre_header
      _
    $region3: #{forward.1} parent=1 // loop_header
      %s29 = sphi 0, %s33
      %p30 = scmp.ge.s32.totalorder %s29, 4
      %s39 = sphi 0, %s41
      %s42 = sphi 0, %s39
      %s43 = sphi 0, %s42
      %s59 = sphi 0, %s43
      %s65 = sphi 0, %s67
      %s68 = sphi 0, %s65
      %s69 = sphi 0, %s68
      %s85 = sphi 0, %s69
      %s91 = sphi 0, %s93
      %s94 = sphi 0, %s91
      %s95 = sphi 0, %s94
      %s111 = sphi 0, %s95
      %s117 = sphi 0, %s119
      %s120 = sphi 0, %s117
      %s121 = sphi 0, %s120
      %s137 = sphi 0, %s121
      %s143 = sphi 0, %s145
      %s146 = sphi 0, %s143
      %s147 = sphi 0, %s146
      %s163 = sphi 0, %s147
      %s169 = sphi 0, %s171
      %s172 = sphi 0, %s169
      %s173 = sphi 0, %s172
      %s189 = sphi 0, %s173
      %s195 = sphi 0, %s197
      %s198 = sphi 0, %s195
      %s199 = sphi 0, %s198
      %s215 = sphi 0, %s199
      %s221 = sphi 0, %s223
      %s224 = sphi 0, %s221
      %s225 = sphi 0, %s224
      %s241 = sphi 0, %s225
      %s247 = sphi 0, %s249
      %s250 = sphi 0, %s247
      %s251 = sphi 0, %s250
      %s267 = sphi 0, %s251
      %s271 = sphi 0, %s271
      %s273 = sphi 0, %s271
      %s274 = sphi 0, %s273
      %s288 = sphi 0, %s274
      %s292 = sphi 0, %s292
      %s294 = sphi 0, %s292
      %s295 = sphi 0, %s294
      %s309 = sphi 0, %s295
      %s315 = sphi 0, %s317
      %s318 = sphi 0, %s315
      %s319 = sphi 0, %s318
      %s335 = sphi 0, %s319
      %s339 = sphi 0, %s339
      %s341 = sphi 0, %s339
      %s342 = sphi 0, %s341
      %s356 = sphi 0, %s342
      %s362 = sphi 0, %s364
      %s365 = sphi 0, %s362
      %s366 = sphi 0, %s365
      %s382 = sphi 0, %s366
      %s386 = sphi 0, %s386
      %s388 = sphi 0, %s386
      %s389 = sphi 0, %s388
      %s403 = sphi 0, %s389
      %s409 = sphi 0, %s411
      %s412 = sphi 0, %s409
      %s413 = sphi 0, %s412
      %s429 = sphi 0, %s413
      %s435 = sphi 0, %s437
      %s438 = sphi 0, %s435
      %s439 = sphi 0, %s438
      %s455 = sphi 0, %s439
      %s461 = sphi 0, %s463
      %s464 = sphi 0, %s461
      %s465 = sphi 0, %s464
      %s481 = sphi 0, %s465
      %s487 = sphi 0, %s489
      %s490 = sphi 0, %s487
      %s491 = sphi 0, %s490
      %s507 = sphi 0, %s491
      %s511 = sphi 0, %s511
      %s513 = sphi 0, %s511
      %s514 = sphi 0, %s513
      %s528 = sphi 0, %s514
      %s532 = sphi 0, %s532
      %s534 = sphi 0, %s532
      %s535 = sphi 0, %s534
      %s549 = sphi 0, %s535
    $region4: #{forward.1} parent=1 // loop_header_branch
      %32 = sbr.rel (%p30) target = $region8
    $region5: #{forward.1} parent=1 // loop_body
      %s34 = ssub.s32 %s29, 1
      %s35 = ssub.s32 %s29, 2
      %s36 = sadd.s32 %s29, 1
      %s37 = ssub.s32 %s29, %s36
      %p38 = scmp.eq.s32.totalorder %s37, 0
      %s40 = sadd.s32 %s39, 1
      %s41 = scalar_select %p38, %s39, %s40
      %p44 = pneg %p38
      %p45 = scmp.eq.s32.totalorder %s29, 1
      %p46 = por %p44, %p45
      %p47 = scmp.ne.s32.totalorder %s39, %s42
      %p48 = scmp.eq.s32.totalorder %s29, 0
      %p49 = por %p47, %p48
      %p50 = scmp.ne.s32.totalorder %s39, %s42
      %p51 = scmp.eq.s32.totalorder %s34, 1
      %p52 = por %p50, %p51
      %p53 = scmp.ne.s32.totalorder %s42, %s43
      %p54 = scmp.eq.s32.totalorder %s34, 0
      %p55 = por %p53, %p54
      %p56 = scmp.ne.s32.totalorder %s42, %s43
      %p57 = scmp.eq.s32.totalorder %s35, 1
      %p58 = por %p56, %p57
      %p60 = scmp.ne.s32.totalorder %s43, %s59
      %p61 = scmp.eq.s32.totalorder %s35, 0
      %p62 = por %p60, %p61
      %s63 = ssub.s32 %s29, %s36
      %p64 = scmp.eq.s32.totalorder %s63, 0
      %s66 = sadd.s32 %s65, 1
      %s67 = scalar_select %p64, %s65, %s66
      %p70 = pneg %p64
      %p71 = scmp.eq.s32.totalorder %s29, 1
      %p72 = por %p70, %p71
      %p73 = scmp.ne.s32.totalorder %s65, %s68
      %p74 = scmp.eq.s32.totalorder %s29, 0
      %p75 = por %p73, %p74
      %p76 = scmp.ne.s32.totalorder %s65, %s68
      %p77 = scmp.eq.s32.totalorder %s34, 1
      %p78 = por %p76, %p77
      %p79 = scmp.ne.s32.totalorder %s68, %s69
      %p80 = scmp.eq.s32.totalorder %s34, 0
      %p81 = por %p79, %p80
      %p82 = scmp.ne.s32.totalorder %s68, %s69
      %p83 = scmp.eq.s32.totalorder %s35, 1
      %p84 = por %p82, %p83
      %p86 = scmp.ne.s32.totalorder %s69, %s85
      %p87 = scmp.eq.s32.totalorder %s35, 0
      %p88 = por %p86, %p87
      %s89 = ssub.s32 %s29, %s36
      %p90 = scmp.eq.s32.totalorder %s89, 0
      %s92 = sadd.s32 %s91, 1
      %s93 = scalar_select %p90, %s91, %s92
      %p96 = pneg %p90
      %p97 = scmp.eq.s32.totalorder %s29, 1
      %p98 = por %p96, %p97
      %p99 = scmp.ne.s32.totalorder %s91, %s94
      %p100 = scmp.eq.s32.totalorder %s29, 0
      %p101 = por %p99, %p100
      %p102 = scmp.ne.s32.totalorder %s91, %s94
      %p103 = scmp.eq.s32.totalorder %s34, 1
      %p104 = por %p102, %p103
      %p105 = scmp.ne.s32.totalorder %s94, %s95
      %p106 = scmp.eq.s32.totalorder %s34, 0
      %p107 = por %p105, %p106
      %p108 = scmp.ne.s32.totalorder %s94, %s95
      %p109 = scmp.eq.s32.totalorder %s35, 1
      %p110 = por %p108, %p109
      %p112 = scmp.ne.s32.totalorder %s95, %s111
      %p113 = scmp.eq.s32.totalorder %s35, 0
      %p114 = por %p112, %p113
      %s115 = ssub.s32 %s29, %s36
      %p116 = scmp.eq.s32.totalorder %s115, 0
      %s118 = sadd.s32 %s117, 1
      %s119 = scalar_select %p116, %s117, %s118
      %p122 = pneg %p116
      %p123 = scmp.eq.s32.totalorder %s29, 1
      %p124 = por %p122, %p123
      %p125 = scmp.ne.s32.totalorder %s117, %s120
      %p126 = scmp.eq.s32.totalorder %s29, 0
      %p127 = por %p125, %p126
      %p128 = scmp.ne.s32.totalorder %s117, %s120
      %p129 = scmp.eq.s32.totalorder %s34, 1
      %p130 = por %p128, %p129
      %p131 = scmp.ne.s32.totalorder %s120, %s121
      %p132 = scmp.eq.s32.totalorder %s34, 0
      %p133 = por %p131, %p132
      %p134 = scmp.ne.s32.totalorder %s120, %s121
      %p135 = scmp.eq.s32.totalorder %s35, 1
      %p136 = por %p134, %p135
      %p138 = scmp.ne.s32.totalorder %s121, %s137
      %p139 = scmp.eq.s32.totalorder %s35, 0
      %p140 = por %p138, %p139
      %s141 = ssub.s32 %s29, %s36
      %p142 = scmp.eq.s32.totalorder %s141, 0
      %s144 = sadd.s32 %s143, 1
      %s145 = scalar_select %p142, %s143, %s144
      %p148 = pneg %p142
      %p149 = scmp.eq.s32.totalorder %s29, 1
      %p150 = por %p148, %p149
      %p151 = scmp.ne.s32.totalorder %s143, %s146
      %p152 = scmp.eq.s32.totalorder %s29, 0
      %p153 = por %p151, %p152
      %p154 = scmp.ne.s32.totalorder %s143, %s146
      %p155 = scmp.eq.s32.totalorder %s34, 1
      %p156 = por %p154, %p155
      %p157 = scmp.ne.s32.totalorder %s146, %s147
      %p158 = scmp.eq.s32.totalorder %s34, 0
      %p159 = por %p157, %p158
      %p160 = scmp.ne.s32.totalorder %s146, %s147
      %p161 = scmp.eq.s32.totalorder %s35, 1
      %p162 = por %p160, %p161
      %p164 = scmp.ne.s32.totalorder %s147, %s163
      %p165 = scmp.eq.s32.totalorder %s35, 0
      %p166 = por %p164, %p165
      %s167 = ssub.s32 %s29, %s36
      %p168 = scmp.eq.s32.totalorder %s167, 0
      %s170 = sadd.s32 %s169, 1
      %s171 = scalar_select %p168, %s169, %s170
      %p174 = pneg %p168
      %p175 = scmp.eq.s32.totalorder %s29, 1
      %p176 = por %p174, %p175
      %p177 = scmp.ne.s32.totalorder %s169, %s172
      %p178 = scmp.eq.s32.totalorder %s29, 0
      %p179 = por %p177, %p178
      %p180 = scmp.ne.s32.totalorder %s169, %s172
      %p181 = scmp.eq.s32.totalorder %s34, 1
      %p182 = por %p180, %p181
      %p183 = scmp.ne.s32.totalorder %s172, %s173
      %p184 = scmp.eq.s32.totalorder %s34, 0
      %p185 = por %p183, %p184
      %p186 = scmp.ne.s32.totalorder %s172, %s173
      %p187 = scmp.eq.s32.totalorder %s35, 1
      %p188 = por %p186, %p187
      %p190 = scmp.ne.s32.totalorder %s173, %s189
      %p191 = scmp.eq.s32.totalorder %s35, 0
      %p192 = por %p190, %p191
      %s193 = ssub.s32 %s29, %s36
      %p194 = scmp.eq.s32.totalorder %s193, 0
      %s196 = sadd.s32 %s195, 1
      %s197 = scalar_select %p194, %s195, %s196
      %p200 = pneg %p194
      %p201 = scmp.eq.s32.totalorder %s29, 1
      %p202 = por %p200, %p201
      %p203 = scmp.ne.s32.totalorder %s195, %s198
      %p204 = scmp.eq.s32.totalorder %s29, 0
      %p205 = por %p203, %p204
      %p206 = scmp.ne.s32.totalorder %s195, %s198
      %p207 = scmp.eq.s32.totalorder %s34, 1
      %p208 = por %p206, %p207
      %p209 = scmp.ne.s32.totalorder %s198, %s199
      %p210 = scmp.eq.s32.totalorder %s34, 0
      %p211 = por %p209, %p210
      %p212 = scmp.ne.s32.totalorder %s198, %s199
      %p213 = scmp.eq.s32.totalorder %s35, 1
      %p214 = por %p212, %p213
      %p216 = scmp.ne.s32.totalorder %s199, %s215
      %p217 = scmp.eq.s32.totalorder %s35, 0
      %p218 = por %p216, %p217
      %s219 = ssub.s32 %s29, %s36
      %p220 = scmp.eq.s32.totalorder %s219, 0
      %s222 = sadd.s32 %s221, 1
      %s223 = scalar_select %p220, %s221, %s222
      %p226 = pneg %p220
      %p227 = scmp.eq.s32.totalorder %s29, 1
      %p228 = por %p226, %p227
      %p229 = scmp.ne.s32.totalorder %s221, %s224
      %p230 = scmp.eq.s32.totalorder %s29, 0
      %p231 = por %p229, %p230
      %p232 = scmp.ne.s32.totalorder %s221, %s224
      %p233 = scmp.eq.s32.totalorder %s34, 1
      %p234 = por %p232, %p233
      %p235 = scmp.ne.s32.totalorder %s224, %s225
      %p236 = scmp.eq.s32.totalorder %s34, 0
      %p237 = por %p235, %p236
      %p238 = scmp.ne.s32.totalorder %s224, %s225
      %p239 = scmp.eq.s32.totalorder %s35, 1
      %p240 = por %p238, %p239
      %p242 = scmp.ne.s32.totalorder %s225, %s241
      %p243 = scmp.eq.s32.totalorder %s35, 0
      %p244 = por %p242, %p243
      %s245 = ssub.s32 %s29, %s36
      %p246 = scmp.eq.s32.totalorder %s245, 0
      %s248 = sadd.s32 %s247, 1
      %s249 = scalar_select %p246, %s247, %s248
      %p252 = pneg %p246
      %p253 = scmp.eq.s32.totalorder %s29, 1
      %p254 = por %p252, %p253
      %p255 = scmp.ne.s32.totalorder %s247, %s250
      %p256 = scmp.eq.s32.totalorder %s29, 0
      %p257 = por %p255, %p256
      %p258 = scmp.ne.s32.totalorder %s247, %s250
      %p259 = scmp.eq.s32.totalorder %s34, 1
      %p260 = por %p258, %p259
      %p261 = scmp.ne.s32.totalorder %s250, %s251
      %p262 = scmp.eq.s32.totalorder %s34, 0
      %p263 = por %p261, %p262
      %p264 = scmp.ne.s32.totalorder %s250, %s251
      %p265 = scmp.eq.s32.totalorder %s35, 1
      %p266 = por %p264, %p265
      %p268 = scmp.ne.s32.totalorder %s251, %s267
      %p269 = scmp.eq.s32.totalorder %s35, 0
      %p270 = por %p268, %p269
      %s272 = sadd.s32 %s271, 1
      %p275 = scmp.eq.s32.totalorder %s29, 1
      %p276 = scmp.ne.s32.totalorder %s271, %s273
      %p277 = scmp.eq.s32.totalorder %s29, 0
      %p278 = por %p276, %p277
      %p279 = scmp.ne.s32.totalorder %s271, %s273
      %p280 = scmp.eq.s32.totalorder %s34, 1
      %p281 = por %p279, %p280
      %p282 = scmp.ne.s32.totalorder %s273, %s274
      %p283 = scmp.eq.s32.totalorder %s34, 0
      %p284 = por %p282, %p283
      %p285 = scmp.ne.s32.totalorder %s273, %s274
      %p286 = scmp.eq.s32.totalorder %s35, 1
      %p287 = por %p285, %p286
      %p289 = scmp.ne.s32.totalorder %s274, %s288
      %p290 = scmp.eq.s32.totalorder %s35, 0
      %p291 = por %p289, %p290
      %s293 = sadd.s32 %s292, 1
      %p296 = scmp.eq.s32.totalorder %s29, 1
      %p297 = scmp.ne.s32.totalorder %s292, %s294
      %p298 = scmp.eq.s32.totalorder %s29, 0
      %p299 = por %p297, %p298
      %p300 = scmp.ne.s32.totalorder %s292, %s294
      %p301 = scmp.eq.s32.totalorder %s34, 1
      %p302 = por %p300, %p301
      %p303 = scmp.ne.s32.totalorder %s294, %s295
      %p304 = scmp.eq.s32.totalorder %s34, 0
      %p305 = por %p303, %p304
      %p306 = scmp.ne.s32.totalorder %s294, %s295
      %p307 = scmp.eq.s32.totalorder %s35, 1
      %p308 = por %p306, %p307
      %p310 = scmp.ne.s32.totalorder %s295, %s309
      %p311 = scmp.eq.s32.totalorder %s35, 0
      %p312 = por %p310, %p311
      %s313 = ssub.s32 %s29, %s36
      %p314 = scmp.eq.s32.totalorder %s313, 0
      %s316 = sadd.s32 %s315, 1
      %s317 = scalar_select %p314, %s315, %s316
      %p320 = pneg %p314
      %p321 = scmp.eq.s32.totalorder %s29, 1
      %p322 = por %p320, %p321
      %p323 = scmp.ne.s32.totalorder %s315, %s318
      %p324 = scmp.eq.s32.totalorder %s29, 0
      %p325 = por %p323, %p324
      %p326 = scmp.ne.s32.totalorder %s315, %s318
      %p327 = scmp.eq.s32.totalorder %s34, 1
      %p328 = por %p326, %p327
      %p329 = scmp.ne.s32.totalorder %s318, %s319
      %p330 = scmp.eq.s32.totalorder %s34, 0
      %p331 = por %p329, %p330
      %p332 = scmp.ne.s32.totalorder %s318, %s319
      %p333 = scmp.eq.s32.totalorder %s35, 1
      %p334 = por %p332, %p333
      %p336 = scmp.ne.s32.totalorder %s319, %s335
      %p337 = scmp.eq.s32.totalorder %s35, 0
      %p338 = por %p336, %p337
      %s340 = sadd.s32 %s339, 1
      %p343 = scmp.eq.s32.totalorder %s29, 1
      %p344 = scmp.ne.s32.totalorder %s339, %s341
      %p345 = scmp.eq.s32.totalorder %s29, 0
      %p346 = por %p344, %p345
      %p347 = scmp.ne.s32.totalorder %s339, %s341
      %p348 = scmp.eq.s32.totalorder %s34, 1
      %p349 = por %p347, %p348
      %p350 = scmp.ne.s32.totalorder %s341, %s342
      %p351 = scmp.eq.s32.totalorder %s34, 0
      %p352 = por %p350, %p351
      %p353 = scmp.ne.s32.totalorder %s341, %s342
      %p354 = scmp.eq.s32.totalorder %s35, 1
      %p355 = por %p353, %p354
      %p357 = scmp.ne.s32.totalorder %s342, %s356
      %p358 = scmp.eq.s32.totalorder %s35, 0
      %p359 = por %p357, %p358
      %s360 = ssub.s32 %s29, %s36
      %p361 = scmp.eq.s32.totalorder %s360, 0
      %s363 = sadd.s32 %s362, 1
      %s364 = scalar_select %p361, %s362, %s363
      %p367 = pneg %p361
      %p368 = scmp.eq.s32.totalorder %s29, 1
      %p369 = por %p367, %p368
      %p370 = scmp.ne.s32.totalorder %s362, %s365
      %p371 = scmp.eq.s32.totalorder %s29, 0
      %p372 = por %p370, %p371
      %p373 = scmp.ne.s32.totalorder %s362, %s365
      %p374 = scmp.eq.s32.totalorder %s34, 1
      %p375 = por %p373, %p374
      %p376 = scmp.ne.s32.totalorder %s365, %s366
      %p377 = scmp.eq.s32.totalorder %s34, 0
      %p378 = por %p376, %p377
      %p379 = scmp.ne.s32.totalorder %s365, %s366
      %p380 = scmp.eq.s32.totalorder %s35, 1
      %p381 = por %p379, %p380
      %p383 = scmp.ne.s32.totalorder %s366, %s382
      %p384 = scmp.eq.s32.totalorder %s35, 0
      %p385 = por %p383, %p384
      %s387 = sadd.s32 %s386, 1
      %p390 = scmp.eq.s32.totalorder %s29, 1
      %p391 = scmp.ne.s32.totalorder %s386, %s388
      %p392 = scmp.eq.s32.totalorder %s29, 0
      %p393 = por %p391, %p392
      %p394 = scmp.ne.s32.totalorder %s386, %s388
      %p395 = scmp.eq.s32.totalorder %s34, 1
      %p396 = por %p394, %p395
      %p397 = scmp.ne.s32.totalorder %s388, %s389
      %p398 = scmp.eq.s32.totalorder %s34, 0
      %p399 = por %p397, %p398
      %p400 = scmp.ne.s32.totalorder %s388, %s389
      %p401 = scmp.eq.s32.totalorder %s35, 1
      %p402 = por %p400, %p401
      %p404 = scmp.ne.s32.totalorder %s389, %s403
      %p405 = scmp.eq.s32.totalorder %s35, 0
      %p406 = por %p404, %p405
      %s407 = ssub.s32 %s29, %s36
      %p408 = scmp.eq.s32.totalorder %s407, 0
      %s410 = sadd.s32 %s409, 1
      %s411 = scalar_select %p408, %s409, %s410
      %p414 = pneg %p408
      %p415 = scmp.eq.s32.totalorder %s29, 1
      %p416 = por %p414, %p415
      %p417 = scmp.ne.s32.totalorder %s409, %s412
      %p418 = scmp.eq.s32.totalorder %s29, 0
      %p419 = por %p417, %p418
      %p420 = scmp.ne.s32.totalorder %s409, %s412
      %p421 = scmp.eq.s32.totalorder %s34, 1
      %p422 = por %p420, %p421
      %p423 = scmp.ne.s32.totalorder %s412, %s413
      %p424 = scmp.eq.s32.totalorder %s34, 0
      %p425 = por %p423, %p424
      %p426 = scmp.ne.s32.totalorder %s412, %s413
      %p427 = scmp.eq.s32.totalorder %s35, 1
      %p428 = por %p426, %p427
      %p430 = scmp.ne.s32.totalorder %s413, %s429
      %p431 = scmp.eq.s32.totalorder %s35, 0
      %p432 = por %p430, %p431
      %s433 = ssub.s32 %s29, %s36
      %p434 = scmp.eq.s32.totalorder %s433, 0
      %s436 = sadd.s32 %s435, 1
      %s437 = scalar_select %p434, %s435, %s436
      %p440 = pneg %p434
      %p441 = scmp.eq.s32.totalorder %s29, 1
      %p442 = por %p440, %p441
      %p443 = scmp.ne.s32.totalorder %s435, %s438
      %p444 = scmp.eq.s32.totalorder %s29, 0
      %p445 = por %p443, %p444
      %p446 = scmp.ne.s32.totalorder %s435, %s438
      %p447 = scmp.eq.s32.totalorder %s34, 1
      %p448 = por %p446, %p447
      %p449 = scmp.ne.s32.totalorder %s438, %s439
      %p450 = scmp.eq.s32.totalorder %s34, 0
      %p451 = por %p449, %p450
      %p452 = scmp.ne.s32.totalorder %s438, %s439
      %p453 = scmp.eq.s32.totalorder %s35, 1
      %p454 = por %p452, %p453
      %p456 = scmp.ne.s32.totalorder %s439, %s455
      %p457 = scmp.eq.s32.totalorder %s35, 0
      %p458 = por %p456, %p457
      %s459 = ssub.s32 %s29, %s36
      %p460 = scmp.eq.s32.totalorder %s459, 0
      %s462 = sadd.s32 %s461, 1
      %s463 = scalar_select %p460, %s461, %s462
      %p466 = pneg %p460
      %p467 = scmp.eq.s32.totalorder %s29, 1
      %p468 = por %p466, %p467
      %p469 = scmp.ne.s32.totalorder %s461, %s464
      %p470 = scmp.eq.s32.totalorder %s29, 0
      %p471 = por %p469, %p470
      %p472 = scmp.ne.s32.totalorder %s461, %s464
      %p473 = scmp.eq.s32.totalorder %s34, 1
      %p474 = por %p472, %p473
      %p475 = scmp.ne.s32.totalorder %s464, %s465
      %p476 = scmp.eq.s32.totalorder %s34, 0
      %p477 = por %p475, %p476
      %p478 = scmp.ne.s32.totalorder %s464, %s465
      %p479 = scmp.eq.s32.totalorder %s35, 1
      %p480 = por %p478, %p479
      %p482 = scmp.ne.s32.totalorder %s465, %s481
      %p483 = scmp.eq.s32.totalorder %s35, 0
      %p484 = por %p482, %p483
      %s485 = ssub.s32 %s29, %s36
      %p486 = scmp.eq.s32.totalorder %s485, 0
      %s488 = sadd.s32 %s487, 1
      %s489 = scalar_select %p486, %s487, %s488
      %p492 = pneg %p486
      %p493 = scmp.eq.s32.totalorder %s29, 1
      %p494 = por %p492, %p493
      %p495 = scmp.ne.s32.totalorder %s487, %s490
      %p496 = scmp.eq.s32.totalorder %s29, 0
      %p497 = por %p495, %p496
      %p498 = scmp.ne.s32.totalorder %s487, %s490
      %p499 = scmp.eq.s32.totalorder %s34, 1
      %p500 = por %p498, %p499
      %p501 = scmp.ne.s32.totalorder %s490, %s491
      %p502 = scmp.eq.s32.totalorder %s34, 0
      %p503 = por %p501, %p502
      %p504 = scmp.ne.s32.totalorder %s490, %s491
      %p505 = scmp.eq.s32.totalorder %s35, 1
      %p506 = por %p504, %p505
      %p508 = scmp.ne.s32.totalorder %s491, %s507
      %p509 = scmp.eq.s32.totalorder %s35, 0
      %p510 = por %p508, %p509
      %s512 = sadd.s32 %s511, 1
      %p515 = scmp.eq.s32.totalorder %s29, 1
      %p516 = scmp.ne.s32.totalorder %s511, %s513
      %p517 = scmp.eq.s32.totalorder %s29, 0
      %p518 = por %p516, %p517
      %p519 = scmp.ne.s32.totalorder %s511, %s513
      %p520 = scmp.eq.s32.totalorder %s34, 1
      %p521 = por %p519, %p520
      %p522 = scmp.ne.s32.totalorder %s513, %s514
      %p523 = scmp.eq.s32.totalorder %s34, 0
      %p524 = por %p522, %p523
      %p525 = scmp.ne.s32.totalorder %s513, %s514
      %p526 = scmp.eq.s32.totalorder %s35, 1
      %p527 = por %p525, %p526
      %p529 = scmp.ne.s32.totalorder %s514, %s528
      %p530 = scmp.eq.s32.totalorder %s35, 0
      %p531 = por %p529, %p530
      %s533 = sadd.s32 %s532, 1
      %p536 = scmp.eq.s32.totalorder %s29, 1
      %p537 = scmp.ne.s32.totalorder %s532, %s534
      %p538 = scmp.eq.s32.totalorder %s29, 0
      %p539 = por %p537, %p538
      %p540 = scmp.ne.s32.totalorder %s532, %s534
      %p541 = scmp.eq.s32.totalorder %s34, 1
      %p542 = por %p540, %p541
      %p543 = scmp.ne.s32.totalorder %s534, %s535
      %p544 = scmp.eq.s32.totalorder %s34, 0
      %p545 = por %p543, %p544
      %p546 = scmp.ne.s32.totalorder %s534, %s535
      %p547 = scmp.eq.s32.totalorder %s35, 1
      %p548 = por %p546, %p547
      %p550 = scmp.ne.s32.totalorder %s535, %s549
      %p551 = scmp.eq.s32.totalorder %s35, 0
      %p552 = por %p550, %p551
      %p553 = scmp.le.s32.totalorder 1, %s29
      %p554 = scmp.lt.s32.totalorder %s29, 3
      %p555 = pnand %p553, %p554
      %p556 = pneg %p555
      // Predicated region
      $region9: #{forward.1} parent=5 // pred_check
        _
      $region10: #{forward.1} parent=5 // pred_check_branch
        %558 = sbr.rel (%p555) target = $region12
      $region11: #{forward.1} parent=5 // pred_region
        %s559 = ssub.s32 %s29, 1
        // Predicated region
        $region13: #{forward.1} parent=11 // pred_check
          %p560 = pneg %p284
        $region14: #{forward.1} parent=11 // pred_check_branch
          %562 = sbr.rel (%p560) target = $region16
        $region15: #{forward.1} parent=11 // pred_region
          _
        $region16: #{forward.1} parent=11 // pred_fallthru
          _
        // Predicated region
        $region17: #{forward.1} parent=11 // pred_check
          %p563 = pneg %p305
        $region18: #{forward.1} parent=11 // pred_check_branch
          %565 = sbr.rel (%p563) target = $region20
        $region19: #{forward.1} parent=11 // pred_region
          _
        $region20: #{forward.1} parent=11 // pred_fallthru
          _
        // Predicated region
        $region21: #{forward.1} parent=11 // pred_check
          %p566 = pneg %p352
        $region22: #{forward.1} parent=11 // pred_check_branch
          %568 = sbr.rel (%p566) target = $region24
        $region23: #{forward.1} parent=11 // pred_region
          _
        $region24: #{forward.1} parent=11 // pred_fallthru
          _
        // Predicated region
        $region25: #{forward.1} parent=11 // pred_check
          %p569 = pneg %p399
        $region26: #{forward.1} parent=11 // pred_check_branch
          %571 = sbr.rel (%p569) target = $region28
        $region27: #{forward.1} parent=11 // pred_region
          _
        $region28: #{forward.1} parent=11 // pred_fallthru
          _
      $region12: #{forward.1} parent=5 // pred_fallthru
        _
      %p572 = scmp.lt.s32.totalorder %s29, 2
      // Predicated region
      $region29: #{forward.1} parent=5 // pred_check
        %p573 = pneg %p572
      $region30: #{forward.1} parent=5 // pred_check_branch
        %575 = sbr.rel (%p573) target = $region32
      $region31: #{forward.1} parent=5 // pred_region
        // Predicated region
        $region33: #{forward.1} parent=31 // pred_check
          %p576 = pneg %p49
        $region34: #{forward.1} parent=31 // pred_check_branch
          %578 = sbr.rel (%p576) target = $region36
        $region35: #{forward.1} parent=31 // pred_region
          %p579 = scmp.lt.s32.totalorder %s29, 1
          %s580 = scalar_select %p579, %s29, 1
          %s581 = smul.addr %s580, 64
          %s582 = smul.addr %s581, 8
          %s583 = scalar_lea.vmem %s0, %s582
        $region36: #{forward.1} parent=31 // pred_fallthru
          _
        // Predicated region
        $region37: #{forward.1} parent=31 // pred_check
          %p584 = pneg %p75
        $region38: #{forward.1} parent=31 // pred_check_branch
          %586 = sbr.rel (%p584) target = $region40
        $region39: #{forward.1} parent=31 // pred_region
          %p587 = scmp.lt.s32.totalorder %s29, 1
          %s588 = scalar_select %p587, %s29, 1
          %s589 = smul.addr %s588, 64
          %s590 = smul.addr %s589, 8
          %s591 = scalar_lea.vmem %s1, %s590
        $region40: #{forward.1} parent=31 // pred_fallthru
          _
        // Predicated region
        $region41: #{forward.1} parent=31 // pred_check
          %p592 = pneg %p101
        $region42: #{forward.1} parent=31 // pred_check_branch
          %594 = sbr.rel (%p592) target = $region44
        $region43: #{forward.1} parent=31 // pred_region
          %p595 = scmp.lt.s32.totalorder %s29, 1
          %s596 = scalar_select %p595, %s29, 1
          %s597 = smul.addr %s596, 2
          %s598 = scalar_lea.vmem %s2, %s597
        $region44: #{forward.1} parent=31 // pred_fallthru
          _
        // Predicated region
        $region45: #{forward.1} parent=31 // pred_check
          %p599 = pneg %p127
        $region46: #{forward.1} parent=31 // pred_check_branch
          %601 = sbr.rel (%p599) target = $region48
        $region47: #{forward.1} parent=31 // pred_region
          %p602 = scmp.lt.s32.totalorder %s29, 1
          %s603 = scalar_select %p602, %s29, 1
          %s604 = scalar_lea.vmem %s3, %s603
        $region48: #{forward.1} parent=31 // pred_fallthru
          _
        // Predicated region
        $region49: #{forward.1} parent=31 // pred_check
          %p605 = pneg %p153
        $region50: #{forward.1} parent=31 // pred_check_branch
          %607 = sbr.rel (%p605) target = $region52
        $region51: #{forward.1} parent=31 // pred_region
          %p608 = scmp.lt.s32.totalorder %s29, 1
          %s609 = scalar_select %p608, %s29, 1
          %s610 = smul.addr %s609, 4
          %s611 = smul.addr %s610, 8
          %s612 = scalar_lea.vmem %s4, %s611
        $region52: #{forward.1} parent=31 // pred_fallthru
          _
        // Predicated region
        $region53: #{forward.1} parent=31 // pred_check
          %p613 = pneg %p179
        $region54: #{forward.1} parent=31 // pred_check_branch
          %615 = sbr.rel (%p613) target = $region56
        $region55: #{forward.1} parent=31 // pred_region
          %p616 = scmp.lt.s32.totalorder %s29, 1
          %s617 = scalar_select %p616, %s29, 1
          %s618 = scalar_lea.vmem %s5, %s617
        $region56: #{forward.1} parent=31 // pred_fallthru
          _
        // Predicated region
        $region57: #{forward.1} parent=31 // pred_check
          %p619 = pneg %p205
        $region58: #{forward.1} parent=31 // pred_check_branch
          %621 = sbr.rel (%p619) target = $region60
        $region59: #{forward.1} parent=31 // pred_region
          %p622 = scmp.lt.s32.totalorder %s29, 1
          %s623 = scalar_select %p622, %s29, 1
          %s624 = smul.addr %s623, 2
          %s625 = scalar_lea.vmem %s6, %s624
        $region60: #{forward.1} parent=31 // pred_fallthru
          _
        // Predicated region
        $region61: #{forward.1} parent=31 // pred_check
          %p626 = pneg %p231
        $region62: #{forward.1} parent=31 // pred_check_branch
          %628 = sbr.rel (%p626) target = $region64
        $region63: #{forward.1} parent=31 // pred_region
          %p629 = scmp.lt.s32.totalorder %s29, 1
          %s630 = scalar_select %p629, %s29, 1
          %s631 = scalar_lea.vmem %s7, %s630
        $region64: #{forward.1} parent=31 // pred_fallthru
          _
        // Predicated region
        $region65: #{forward.1} parent=31 // pred_check
          %p632 = pneg %p257
        $region66: #{forward.1} parent=31 // pred_check_branch
          %634 = sbr.rel (%p632) target = $region68
        $region67: #{forward.1} parent=31 // pred_region
          %p635 = scmp.lt.s32.totalorder %s29, 1
          %s636 = scalar_select %p635, %s29, 1
          %s637 = smul.addr %s636, 3
          %s638 = scalar_lea.vmem %s8, %s637
        $region68: #{forward.1} parent=31 // pred_fallthru
          _
        // Predicated region
        $region69: #{forward.1} parent=31 // pred_check
          %p639 = pneg %p325
        $region70: #{forward.1} parent=31 // pred_check_branch
          %641 = sbr.rel (%p639) target = $region72
        $region71: #{forward.1} parent=31 // pred_region
          %p642 = scmp.lt.s32.totalorder %s29, 1
          %s643 = scalar_select %p642, %s29, 1
          %s644 = smul.addr %s643, 4
          %s645 = smul.addr %s644, 8
          %s646 = scalar_lea.vmem %s11, %s645
        $region72: #{forward.1} parent=31 // pred_fallthru
          _
        // Predicated region
        $region73: #{forward.1} parent=31 // pred_check
          %p647 = pneg %p372
        $region74: #{forward.1} parent=31 // pred_check_branch
          %649 = sbr.rel (%p647) target = $region76
        $region75: #{forward.1} parent=31 // pred_region
          %p650 = scmp.lt.s32.totalorder %s29, 1
          %s651 = scalar_select %p650, %s29, 1
          %s652 = smul.addr %s651, 4
          %s653 = smul.addr %s652, 8
          %s654 = scalar_lea.vmem %s13, %s653
        $region76: #{forward.1} parent=31 // pred_fallthru
          _
        // Predicated region
        $region77: #{forward.1} parent=31 // pred_check
          %p655 = pneg %p419
        $region78: #{forward.1} parent=31 // pred_check_branch
          %657 = sbr.rel (%p655) target = $region80
        $region79: #{forward.1} parent=31 // pred_region
          %p658 = scmp.lt.s32.totalorder %s29, 1
          %s659 = scalar_select %p658, %s29, 1
          %s660 = scalar_lea.vmem %s15, %s659
        $region80: #{forward.1} parent=31 // pred_fallthru
          _
        // Predicated region
        $region81: #{forward.1} parent=31 // pred_check
          %p661 = pneg %p445
        $region82: #{forward.1} parent=31 // pred_check_branch
          %663 = sbr.rel (%p661) target = $region84
        $region83: #{forward.1} parent=31 // pred_region
          %p664 = scmp.lt.s32.totalorder %s29, 1
          %s665 = scalar_select %p664, %s29, 1
          %s666 = scalar_lea.vmem %s16, %s665
        $region84: #{forward.1} parent=31 // pred_fallthru
          _
        // Predicated region
        $region85: #{forward.1} parent=31 // pred_check
          %p667 = pneg %p471
        $region86: #{forward.1} parent=31 // pred_check_branch
          %669 = sbr.rel (%p667) target = $region88
        $region87: #{forward.1} parent=31 // pred_region
          %p670 = scmp.lt.s32.totalorder %s29, 1
          %s671 = scalar_select %p670, %s29, 1
          %s672 = scalar_lea.vmem %s17, %s671
        $region88: #{forward.1} parent=31 // pred_fallthru
          _
        // Predicated region
        $region89: #{forward.1} parent=31 // pred_check
          %p673 = pneg %p497
        $region90: #{forward.1} parent=31 // pred_check_branch
          %675 = sbr.rel (%p673) target = $region92
        $region91: #{forward.1} parent=31 // pred_region
          %p676 = scmp.lt.s32.totalorder %s29, 1
          %s677 = scalar_select %p676, %s29, 1
          %s678 = scalar_lea.vmem %s18, %s677
        $region92: #{forward.1} parent=31 // pred_fallthru
          _
      $region32: #{forward.1} parent=5 // pred_fallthru
        _
      %p679 = scmp.le.s32.totalorder 1, %s29
      %p680 = scmp.lt.s32.totalorder %s29, 3
      %p681 = pnand %p679, %p680
      %p682 = pneg %p681
      // Predicated region
      $region93: #{forward.1} parent=5 // pred_check
        _
      $region94: #{forward.1} parent=5 // pred_check_branch
        %684 = sbr.rel (%p681) target = $region96
      $region95: #{forward.1} parent=5 // pred_region
        %s685 = ssub.s32 %s29, 1
        %p686 = scmp.lt.s32.totalorder %s34, 1
        %s687 = scalar_select %p686, %s34, 1
        %s688 = smul.addr %s687, 64
        %s689 = smul.addr %s688, 8
        %s690 = scalar_lea.vmem %s0, %s689
        %p691 = pneg %p55
        %p692 = pneg %p52
        %p693 = scmp.lt.s32.totalorder %s34, 1
        %s694 = scalar_select %p693, %s34, 1
        %s695 = smul.addr %s694, 64
        %s696 = smul.addr %s695, 8
        %s697 = scalar_lea.vmem %s1, %s696
        %p698 = pneg %p81
        %p699 = pneg %p78
        %p700 = scmp.lt.s32.totalorder %s34, 1
        %s701 = scalar_select %p700, %s34, 1
        %s702 = smul.addr %s701, 2
        %s703 = scalar_lea.vmem %s2, %s702
        %p704 = pneg %p107
        %p705 = pneg %p104
        %p706 = scmp.lt.s32.totalorder %s34, 1
        %s707 = scalar_select %p706, %s34, 1
        %s708 = scalar_lea.vmem %s3, %s707
        %p709 = pneg %p133
        %p710 = pneg %p130
        %p711 = scmp.lt.s32.totalorder %s34, 1
        %s712 = scalar_select %p711, %s34, 1
        %s713 = smul.addr %s712, 4
        %s714 = smul.addr %s713, 8
        %s715 = scalar_lea.vmem %s4, %s714
        %p716 = pneg %p159
        %p717 = pneg %p156
        %p718 = scmp.lt.s32.totalorder %s34, 1
        %s719 = scalar_select %p718, %s34, 1
        %s720 = scalar_lea.vmem %s5, %s719
        %p721 = pneg %p185
        %p722 = pneg %p182
        %p723 = scmp.lt.s32.totalorder %s34, 1
        %s724 = scalar_select %p723, %s34, 1
        %s725 = smul.addr %s724, 2
        %s726 = scalar_lea.vmem %s6, %s725
        %p727 = pneg %p211
        %p728 = pneg %p208
        %p729 = scmp.lt.s32.totalorder %s34, 1
        %s730 = scalar_select %p729, %s34, 1
        %s731 = scalar_lea.vmem %s7, %s730
        %p732 = pneg %p237
        %p733 = pneg %p234
        %p734 = scmp.lt.s32.totalorder %s34, 1
        %s735 = scalar_select %p734, %s34, 1
        %s736 = smul.addr %s735, 3
        %s737 = scalar_lea.vmem %s8, %s736
        %p738 = pneg %p263
        %p739 = pneg %p260
        %p740 = pneg %p284
        %p741 = pneg %p281
        %p742 = pneg %p305
        %p743 = pneg %p302
        %p744 = scmp.lt.s32.totalorder %s34, 1
        %s745 = scalar_select %p744, %s34, 1
        %s746 = smul.addr %s745, 4
        %s747 = smul.addr %s746, 8
        %s748 = scalar_lea.vmem %s11, %s747
        %p749 = pneg %p331
        %p750 = pneg %p328
        %p751 = pneg %p352
        %p752 = pneg %p349
        %p753 = scmp.lt.s32.totalorder %s34, 1
        %s754 = scalar_select %p753, %s34, 1
        %s755 = smul.addr %s754, 4
        %s756 = smul.addr %s755, 8
        %s757 = scalar_lea.vmem %s13, %s756
        %p758 = pneg %p378
        %p759 = pneg %p375
        %p760 = pneg %p399
        %p761 = pneg %p396
        %p762 = scmp.lt.s32.totalorder %s34, 1
        %s763 = scalar_select %p762, %s34, 1
        %s764 = scalar_lea.vmem %s15, %s763
        %p765 = pneg %p425
        %p766 = pneg %p422
        %p767 = scmp.lt.s32.totalorder %s34, 1
        %s768 = scalar_select %p767, %s34, 1
        %s769 = scalar_lea.vmem %s16, %s768
        %p770 = pneg %p451
        %p771 = pneg %p448
        %p772 = scmp.lt.s32.totalorder %s34, 1
        %s773 = scalar_select %p772, %s34, 1
        %s774 = scalar_lea.vmem %s17, %s773
        %p775 = pneg %p477
        %p776 = pneg %p474
        %p777 = scmp.lt.s32.totalorder %s34, 1
        %s778 = scalar_select %p777, %s34, 1
        %s779 = scalar_lea.vmem %s18, %s778
        %p780 = pneg %p503
        %p781 = pneg %p500
        %p782 = pneg %p524
        %p783 = pneg %p521
        %p784 = pneg %p545
        %p785 = pneg %p542
        %p786 = scmp.lt.s32.totalorder %s34, 1
        %s787 = scalar_select %p786, %s34, 1
        %s788 = smul.addr %s787, 64
        %s789 = smul.addr %s788, 8
        %s790 = scalar_lea.vmem %s0, %s789
        %p791 = scmp.lt.s32.totalorder %s34, 1
        %s792 = scalar_select %p791, %s34, 1
        %s793 = smul.addr %s792, 64
        %s794 = smul.addr %s793, 8
        %s795 = scalar_lea.vmem %s1, %s794
        %p796 = scmp.lt.s32.totalorder %s34, 1
        %s797 = scalar_select %p796, %s34, 1
        %s798 = smul.addr %s797, 2
        %s799 = scalar_lea.vmem %s2, %s798
        %p800 = scmp.lt.s32.totalorder %s34, 1
        %s801 = scalar_select %p800, %s34, 1
        %s802 = scalar_lea.vmem %s3, %s801
        %p803 = scmp.lt.s32.totalorder %s34, 1
        %s804 = scalar_select %p803, %s34, 1
        %s805 = smul.addr %s804, 4
        %s806 = smul.addr %s805, 8
        %s807 = scalar_lea.vmem %s4, %s806
        %p808 = scmp.lt.s32.totalorder %s34, 1
        %s809 = scalar_select %p808, %s34, 1
        %s810 = scalar_lea.vmem %s5, %s809
        %p811 = scmp.lt.s32.totalorder %s34, 1
        %s812 = scalar_select %p811, %s34, 1
        %s813 = smul.addr %s812, 2
        %s814 = scalar_lea.vmem %s6, %s813
        %p815 = scmp.lt.s32.totalorder %s34, 1
        %s816 = scalar_select %p815, %s34, 1
        %s817 = scalar_lea.vmem %s7, %s816
        %p818 = scmp.lt.s32.totalorder %s34, 1
        %s819 = scalar_select %p818, %s34, 1
        %s820 = smul.addr %s819, 3
        %s821 = scalar_lea.vmem %s8, %s820
        %p822 = scmp.lt.s32.totalorder %s34, 1
        %s823 = scalar_select %p822, %s34, 1
        %s824 = smul.addr %s823, 4
        %s825 = smul.addr %s824, 8
        %s826 = scalar_lea.vmem %s11, %s825
        %p827 = scmp.lt.s32.totalorder %s34, 1
        %s828 = scalar_select %p827, %s34, 1
        %s829 = smul.addr %s828, 4
        %s830 = smul.addr %s829, 8
        %s831 = scalar_lea.vmem %s13, %s830
        %p832 = scmp.lt.s32.totalorder %s34, 1
        %s833 = scalar_select %p832, %s34, 1
        %s834 = scalar_lea.vmem %s15, %s833
        %p835 = scmp.lt.s32.totalorder %s34, 1
        %s836 = scalar_select %p835, %s34, 1
        %s837 = scalar_lea.vmem %s16, %s836
        %p838 = scmp.lt.s32.totalorder %s34, 1
        %s839 = scalar_select %p838, %s34, 1
        %s840 = scalar_lea.vmem %s17, %s839
        %p841 = scmp.lt.s32.totalorder %s34, 1
        %s842 = scalar_select %p841, %s34, 1
        %s843 = scalar_lea.vmem %s18, %s842
        %v844 = vld [vmem:[%s799] sm:$0x3]
        %v845 = vld [vmem:[%s802] sm:$0x1]
        %v846 = vld [vmem:[%s790] sm:$0xff]
        %v847 = vld [vmem:[%s790 + $0x8] sm:$0xff]
        %v848 = vld [vmem:[%s790 + $0x10] sm:$0xff]
        %v849 = vld [vmem:[%s790 + $0x18] sm:$0xff]
        %v850 = vld [vmem:[%s790 + $0x20] sm:$0xff]
        %v851 = vld [vmem:[%s790 + $0x28] sm:$0xff]
        %v852 = vld [vmem:[%s790 + $0x30] sm:$0xff]
        %v853 = vld [vmem:[%s790 + $0x38] sm:$0xff]
        %v854 = vld [vmem:[%s790 + $0x40] sm:$0xff]
        %v855 = vld [vmem:[%s790 + $0x48] sm:$0xff]
        %v856 = vld [vmem:[%s790 + $0x50] sm:$0xff]
        %v857 = vld [vmem:[%s790 + $0x58] sm:$0xff]
        %v858 = vld [vmem:[%s790 + $0x60] sm:$0xff]
        %v859 = vld [vmem:[%s790 + $0x68] sm:$0xff]
        %v860 = vld [vmem:[%s790 + $0x70] sm:$0xff]
        %v861 = vld [vmem:[%s790 + $0x78] sm:$0xff]
        %v862 = vld [vmem:[%s790 + $0x80] sm:$0xff]
        %v863 = vld [vmem:[%s790 + $0x88] sm:$0xff]
        %v864 = vld [vmem:[%s790 + $0x90] sm:$0xff]
        %v865 = vld [vmem:[%s790 + $0x98] sm:$0xff]
        %v866 = vld [vmem:[%s790 + $0xa0] sm:$0xff]
        %v867 = vld [vmem:[%s790 + $0xa8] sm:$0xff]
        %v868 = vld [vmem:[%s790 + $0xb0] sm:$0xff]
        %v869 = vld [vmem:[%s790 + $0xb8] sm:$0xff]
        %v870 = vld [vmem:[%s790 + $0xc0] sm:$0xff]
        %v871 = vld [vmem:[%s790 + $0xc8] sm:$0xff]
        %v872 = vld [vmem:[%s790 + $0xd0] sm:$0xff]
        %v873 = vld [vmem:[%s790 + $0xd8] sm:$0xff]
        %v874 = vld [vmem:[%s790 + $0xe0] sm:$0xff]
        %v875 = vld [vmem:[%s790 + $0xe8] sm:$0xff]
        %v876 = vld [vmem:[%s790 + $0xf0] sm:$0xff]
        %v877 = vld [vmem:[%s790 + $0xf8] sm:$0xff]
        %v878 = vld [vmem:[%s790 + $0x100] sm:$0xff]
        %v879 = vld [vmem:[%s790 + $0x108] sm:$0xff]
        %v880 = vld [vmem:[%s790 + $0x110] sm:$0xff]
        %v881 = vld [vmem:[%s790 + $0x118] sm:$0xff]
        %v882 = vld [vmem:[%s790 + $0x120] sm:$0xff]
        %v883 = vld [vmem:[%s790 + $0x128] sm:$0xff]
        %v884 = vld [vmem:[%s790 + $0x130] sm:$0xff]
        %v885 = vld [vmem:[%s790 + $0x138] sm:$0xff]
        %v886 = vld [vmem:[%s790 + $0x140] sm:$0xff]
        %v887 = vld [vmem:[%s790 + $0x148] sm:$0xff]
        %v888 = vld [vmem:[%s790 + $0x150] sm:$0xff]
        %v889 = vld [vmem:[%s790 + $0x158] sm:$0xff]
        %v890 = vld [vmem:[%s790 + $0x160] sm:$0xff]
        %v891 = vld [vmem:[%s790 + $0x168] sm:$0xff]
        %v892 = vld [vmem:[%s790 + $0x170] sm:$0xff]
        %v893 = vld [vmem:[%s790 + $0x178] sm:$0xff]
        %v894 = vld [vmem:[%s790 + $0x180] sm:$0xff]
        %v895 = vld [vmem:[%s790 + $0x188] sm:$0xff]
        %v896 = vld [vmem:[%s790 + $0x190] sm:$0xff]
        %v897 = vld [vmem:[%s790 + $0x198] sm:$0xff]
        %v898 = vld [vmem:[%s790 + $0x1a0] sm:$0xff]
        %v899 = vld [vmem:[%s790 + $0x1a8] sm:$0xff]
        %v900 = vld [vmem:[%s790 + $0x1b0] sm:$0xff]
        %v901 = vld [vmem:[%s790 + $0x1b8] sm:$0xff]
        %v902 = vld [vmem:[%s790 + $0x1c0] sm:$0xff]
        %v903 = vld [vmem:[%s790 + $0x1c8] sm:$0xff]
        %v904 = vld [vmem:[%s790 + $0x1d0] sm:$0xff]
        %v905 = vld [vmem:[%s790 + $0x1d8] sm:$0xff]
        %v906 = vld [vmem:[%s790 + $0x1e0] sm:$0xff]
        %v907 = vld [vmem:[%s790 + $0x1e8] sm:$0xff]
        %v908 = vld [vmem:[%s790 + $0x1f0] sm:$0xff]
        %v909 = vld [vmem:[%s790 + $0x1f8] sm:$0xff]
        %911 = vset.pattern.permute.xlu0 0
        %912 = vperm.xlu0 %911, %v846
        %v913 = vpop.permute.xlu0 %912
        %916 = vset.pattern.permute.xlu0 0
        %917 = vperm.xlu0 %916, %v847
        %v918 = vpop.permute.xlu0 %917
        %921 = vset.pattern.permute.xlu0 0
        %922 = vperm.xlu0 %921, %v848
        %v923 = vpop.permute.xlu0 %922
        %926 = vset.pattern.permute.xlu0 0
        %927 = vperm.xlu0 %926, %v849
        %v928 = vpop.permute.xlu0 %927
        %931 = vset.pattern.permute.xlu0 0
        %932 = vperm.xlu0 %931, %v850
        %v933 = vpop.permute.xlu0 %932
        %936 = vset.pattern.permute.xlu0 0
        %937 = vperm.xlu0 %936, %v851
        %v938 = vpop.permute.xlu0 %937
        %941 = vset.pattern.permute.xlu0 0
        %942 = vperm.xlu0 %941, %v852
        %v943 = vpop.permute.xlu0 %942
        %946 = vset.pattern.permute.xlu0 0
        %947 = vperm.xlu0 %946, %v853
        %v948 = vpop.permute.xlu0 %947
        %951 = vset.pattern.permute.xlu0 0
        %952 = vperm.xlu0 %951, %v854
        %v953 = vpop.permute.xlu0 %952
        %956 = vset.pattern.permute.xlu0 0
        %957 = vperm.xlu0 %956, %v855
        %v958 = vpop.permute.xlu0 %957
        %961 = vset.pattern.permute.xlu0 0
        %962 = vperm.xlu0 %961, %v856
        %v963 = vpop.permute.xlu0 %962
        %966 = vset.pattern.permute.xlu0 0
        %967 = vperm.xlu0 %966, %v857
        %v968 = vpop.permute.xlu0 %967
        %971 = vset.pattern.permute.xlu0 0
        %972 = vperm.xlu0 %971, %v858
        %v973 = vpop.permute.xlu0 %972
        %976 = vset.pattern.permute.xlu0 0
        %977 = vperm.xlu0 %976, %v859
        %v978 = vpop.permute.xlu0 %977
        %981 = vset.pattern.permute.xlu0 0
        %982 = vperm.xlu0 %981, %v860
        %v983 = vpop.permute.xlu0 %982
        %986 = vset.pattern.permute.xlu0 0
        %987 = vperm.xlu0 %986, %v861
        %v988 = vpop.permute.xlu0 %987
        %991 = vset.pattern.permute.xlu0 0
        %992 = vperm.xlu0 %991, %v862
        %v993 = vpop.permute.xlu0 %992
        %996 = vset.pattern.permute.xlu0 0
        %997 = vperm.xlu0 %996, %v863
        %v998 = vpop.permute.xlu0 %997
        %1001 = vset.pattern.permute.xlu0 0
        %1002 = vperm.xlu0 %1001, %v864
        %v1003 = vpop.permute.xlu0 %1002
        %1006 = vset.pattern.permute.xlu0 0
        %1007 = vperm.xlu0 %1006, %v865
        %v1008 = vpop.permute.xlu0 %1007
        %1011 = vset.pattern.permute.xlu0 0
        %1012 = vperm.xlu0 %1011, %v866
        %v1013 = vpop.permute.xlu0 %1012
        %1016 = vset.pattern.permute.xlu0 0
        %1017 = vperm.xlu0 %1016, %v867
        %v1018 = vpop.permute.xlu0 %1017
        %1021 = vset.pattern.permute.xlu0 0
        %1022 = vperm.xlu0 %1021, %v868
        %v1023 = vpop.permute.xlu0 %1022
        %1026 = vset.pattern.permute.xlu0 0
        %1027 = vperm.xlu0 %1026, %v869
        %v1028 = vpop.permute.xlu0 %1027
        %1031 = vset.pattern.permute.xlu0 0
        %1032 = vperm.xlu0 %1031, %v870
        %v1033 = vpop.permute.xlu0 %1032
        %1036 = vset.pattern.permute.xlu0 0
        %1037 = vperm.xlu0 %1036, %v871
        %v1038 = vpop.permute.xlu0 %1037
        %1041 = vset.pattern.permute.xlu0 0
        %1042 = vperm.xlu0 %1041, %v872
        %v1043 = vpop.permute.xlu0 %1042
        %1046 = vset.pattern.permute.xlu0 0
        %1047 = vperm.xlu0 %1046, %v873
        %v1048 = vpop.permute.xlu0 %1047
        %1051 = vset.pattern.permute.xlu0 0
        %1052 = vperm.xlu0 %1051, %v874
        %v1053 = vpop.permute.xlu0 %1052
        %1056 = vset.pattern.permute.xlu0 0
        %1057 = vperm.xlu0 %1056, %v875
        %v1058 = vpop.permute.xlu0 %1057
        %1061 = vset.pattern.permute.xlu0 0
        %1062 = vperm.xlu0 %1061, %v876
        %v1063 = vpop.permute.xlu0 %1062
        %1066 = vset.pattern.permute.xlu0 0
        %1067 = vperm.xlu0 %1066, %v877
        %v1068 = vpop.permute.xlu0 %1067
        %1071 = vset.pattern.permute.xlu0 0
        %1072 = vperm.xlu0 %1071, %v878
        %v1073 = vpop.permute.xlu0 %1072
        %1076 = vset.pattern.permute.xlu0 0
        %1077 = vperm.xlu0 %1076, %v879
        %v1078 = vpop.permute.xlu0 %1077
        %1081 = vset.pattern.permute.xlu0 0
        %1082 = vperm.xlu0 %1081, %v880
        %v1083 = vpop.permute.xlu0 %1082
        %1086 = vset.pattern.permute.xlu0 0
        %1087 = vperm.xlu0 %1086, %v881
        %v1088 = vpop.permute.xlu0 %1087
        %1091 = vset.pattern.permute.xlu0 0
        %1092 = vperm.xlu0 %1091, %v882
        %v1093 = vpop.permute.xlu0 %1092
        %1096 = vset.pattern.permute.xlu0 0
        %1097 = vperm.xlu0 %1096, %v883
        %v1098 = vpop.permute.xlu0 %1097
        %1101 = vset.pattern.permute.xlu0 0
        %1102 = vperm.xlu0 %1101, %v884
        %v1103 = vpop.permute.xlu0 %1102
        %1106 = vset.pattern.permute.xlu0 0
        %1107 = vperm.xlu0 %1106, %v885
        %v1108 = vpop.permute.xlu0 %1107
        %1111 = vset.pattern.permute.xlu0 0
        %1112 = vperm.xlu0 %1111, %v886
        %v1113 = vpop.permute.xlu0 %1112
        %1116 = vset.pattern.permute.xlu0 0
        %1117 = vperm.xlu0 %1116, %v887
        %v1118 = vpop.permute.xlu0 %1117
        %1121 = vset.pattern.permute.xlu0 0
        %1122 = vperm.xlu0 %1121, %v888
        %v1123 = vpop.permute.xlu0 %1122
        %1126 = vset.pattern.permute.xlu0 0
        %1127 = vperm.xlu0 %1126, %v889
        %v1128 = vpop.permute.xlu0 %1127
        %1131 = vset.pattern.permute.xlu0 0
        %1132 = vperm.xlu0 %1131, %v890
        %v1133 = vpop.permute.xlu0 %1132
        %1136 = vset.pattern.permute.xlu0 0
        %1137 = vperm.xlu0 %1136, %v891
        %v1138 = vpop.permute.xlu0 %1137
        %1141 = vset.pattern.permute.xlu0 0
        %1142 = vperm.xlu0 %1141, %v892
        %v1143 = vpop.permute.xlu0 %1142
        %1146 = vset.pattern.permute.xlu0 0
        %1147 = vperm.xlu0 %1146, %v893
        %v1148 = vpop.permute.xlu0 %1147
        %1151 = vset.pattern.permute.xlu0 0
        %1152 = vperm.xlu0 %1151, %v894
        %v1153 = vpop.permute.xlu0 %1152
        %1156 = vset.pattern.permute.xlu0 0
        %1157 = vperm.xlu0 %1156, %v895
        %v1158 = vpop.permute.xlu0 %1157
        %1161 = vset.pattern.permute.xlu0 0
        %1162 = vperm.xlu0 %1161, %v896
        %v1163 = vpop.permute.xlu0 %1162
        %1166 = vset.pattern.permute.xlu0 0
        %1167 = vperm.xlu0 %1166, %v897
        %v1168 = vpop.permute.xlu0 %1167
        %1171 = vset.pattern.permute.xlu0 0
        %1172 = vperm.xlu0 %1171, %v898
        %v1173 = vpop.permute.xlu0 %1172
        %1176 = vset.pattern.permute.xlu0 0
        %1177 = vperm.xlu0 %1176, %v899
        %v1178 = vpop.permute.xlu0 %1177
        %1181 = vset.pattern.permute.xlu0 0
        %1182 = vperm.xlu0 %1181, %v900
        %v1183 = vpop.permute.xlu0 %1182
        %1186 = vset.pattern.permute.xlu0 0
        %1187 = vperm.xlu0 %1186, %v901
        %v1188 = vpop.permute.xlu0 %1187
        %1191 = vset.pattern.permute.xlu0 0
        %1192 = vperm.xlu0 %1191, %v902
        %v1193 = vpop.permute.xlu0 %1192
        %1196 = vset.pattern.permute.xlu0 0
        %1197 = vperm.xlu0 %1196, %v903
        %v1198 = vpop.permute.xlu0 %1197
        %1201 = vset.pattern.permute.xlu0 0
        %1202 = vperm.xlu0 %1201, %v904
        %v1203 = vpop.permute.xlu0 %1202
        %1206 = vset.pattern.permute.xlu0 0
        %1207 = vperm.xlu0 %1206, %v905
        %v1208 = vpop.permute.xlu0 %1207
        %1211 = vset.pattern.permute.xlu0 0
        %1212 = vperm.xlu0 %1211, %v906
        %v1213 = vpop.permute.xlu0 %1212
        %1216 = vset.pattern.permute.xlu0 0
        %1217 = vperm.xlu0 %1216, %v907
        %v1218 = vpop.permute.xlu0 %1217
        %1221 = vset.pattern.permute.xlu0 0
        %1222 = vperm.xlu0 %1221, %v908
        %v1223 = vpop.permute.xlu0 %1222
        %1226 = vset.pattern.permute.xlu0 0
        %1227 = vperm.xlu0 %1226, %v909
        %v1228 = vpop.permute.xlu0 %1227
        %v1230 = vperm.slane %v844, 0
        %v1231 = vmul.f32 %v913, %v1230
        %v1232 = vmul.f32 %v918, %v1230
        %v1233 = vmul.f32 %v923, %v1230
        %v1234 = vmul.f32 %v928, %v1230
        %v1235 = vmul.f32 %v933, %v1230
        %v1236 = vmul.f32 %v938, %v1230
        %v1237 = vmul.f32 %v943, %v1230
        %v1238 = vmul.f32 %v948, %v1230
        %v1239 = vmul.f32 %v953, %v1230
        %v1240 = vmul.f32 %v958, %v1230
        %v1241 = vmul.f32 %v963, %v1230
        %v1242 = vmul.f32 %v968, %v1230
        %v1243 = vmul.f32 %v973, %v1230
        %v1244 = vmul.f32 %v978, %v1230
        %v1245 = vmul.f32 %v983, %v1230
        %v1246 = vmul.f32 %v988, %v1230
        %v1247 = vmul.f32 %v993, %v1230
        %v1248 = vmul.f32 %v998, %v1230
        %v1249 = vmul.f32 %v1003, %v1230
        %v1250 = vmul.f32 %v1008, %v1230
        %v1251 = vmul.f32 %v1013, %v1230
        %v1252 = vmul.f32 %v1018, %v1230
        %v1253 = vmul.f32 %v1023, %v1230
        %v1254 = vmul.f32 %v1028, %v1230
        %v1255 = vmul.f32 %v1033, %v1230
        %v1256 = vmul.f32 %v1038, %v1230
        %v1257 = vmul.f32 %v1043, %v1230
        %v1258 = vmul.f32 %v1048, %v1230
        %v1259 = vmul.f32 %v1053, %v1230
        %v1260 = vmul.f32 %v1058, %v1230
        %v1261 = vmul.f32 %v1063, %v1230
        %v1262 = vmul.f32 %v1068, %v1230
        %v1263 = vmul.f32 %v1073, %v1230
        %v1264 = vmul.f32 %v1078, %v1230
        %v1265 = vmul.f32 %v1083, %v1230
        %v1266 = vmul.f32 %v1088, %v1230
        %v1267 = vmul.f32 %v1093, %v1230
        %v1268 = vmul.f32 %v1098, %v1230
        %v1269 = vmul.f32 %v1103, %v1230
        %v1270 = vmul.f32 %v1108, %v1230
        %v1271 = vmul.f32 %v1113, %v1230
        %v1272 = vmul.f32 %v1118, %v1230
        %v1273 = vmul.f32 %v1123, %v1230
        %v1274 = vmul.f32 %v1128, %v1230
        %v1275 = vmul.f32 %v1133, %v1230
        %v1276 = vmul.f32 %v1138, %v1230
        %v1277 = vmul.f32 %v1143, %v1230
        %v1278 = vmul.f32 %v1148, %v1230
        %v1279 = vmul.f32 %v1153, %v1230
        %v1280 = vmul.f32 %v1158, %v1230
        %v1281 = vmul.f32 %v1163, %v1230
        %v1282 = vmul.f32 %v1168, %v1230
        %v1283 = vmul.f32 %v1173, %v1230
        %v1284 = vmul.f32 %v1178, %v1230
        %v1285 = vmul.f32 %v1183, %v1230
        %v1286 = vmul.f32 %v1188, %v1230
        %v1287 = vmul.f32 %v1193, %v1230
        %v1288 = vmul.f32 %v1198, %v1230
        %v1289 = vmul.f32 %v1203, %v1230
        %v1290 = vmul.f32 %v1208, %v1230
        %v1291 = vmul.f32 %v1213, %v1230
        %v1292 = vmul.f32 %v1218, %v1230
        %v1293 = vmul.f32 %v1223, %v1230
        %v1294 = vmul.f32 %v1228, %v1230
        %v1296 = vperm.slane %v845, 0
        %v1298 = vadd.f32 %v1231, %v1296
        %v1299 = vadd.f32 %v1232, %v1296
        %v1300 = vadd.f32 %v1233, %v1296
        %v1301 = vadd.f32 %v1234, %v1296
        %v1302 = vadd.f32 %v1235, %v1296
        %v1303 = vadd.f32 %v1236, %v1296
        %v1304 = vadd.f32 %v1237, %v1296
        %v1305 = vadd.f32 %v1238, %v1296
        %v1306 = vadd.f32 %v1239, %v1296
        %v1307 = vadd.f32 %v1240, %v1296
        %v1308 = vadd.f32 %v1241, %v1296
        %v1309 = vadd.f32 %v1242, %v1296
        %v1310 = vadd.f32 %v1243, %v1296
        %v1311 = vadd.f32 %v1244, %v1296
        %v1312 = vadd.f32 %v1245, %v1296
        %v1313 = vadd.f32 %v1246, %v1296
        %v1314 = vadd.f32 %v1247, %v1296
        %v1315 = vadd.f32 %v1248, %v1296
        %v1316 = vadd.f32 %v1249, %v1296
        %v1317 = vadd.f32 %v1250, %v1296
        %v1318 = vadd.f32 %v1251, %v1296
        %v1319 = vadd.f32 %v1252, %v1296
        %v1320 = vadd.f32 %v1253, %v1296
        %v1321 = vadd.f32 %v1254, %v1296
        %v1322 = vadd.f32 %v1255, %v1296
        %v1323 = vadd.f32 %v1256, %v1296
        %v1324 = vadd.f32 %v1257, %v1296
        %v1325 = vadd.f32 %v1258, %v1296
        %v1326 = vadd.f32 %v1259, %v1296
        %v1327 = vadd.f32 %v1260, %v1296
        %v1328 = vadd.f32 %v1261, %v1296
        %v1329 = vadd.f32 %v1262, %v1296
        %v1330 = vadd.f32 %v1263, %v1296
        %v1331 = vadd.f32 %v1264, %v1296
        %v1332 = vadd.f32 %v1265, %v1296
        %v1333 = vadd.f32 %v1266, %v1296
        %v1334 = vadd.f32 %v1267, %v1296
        %v1335 = vadd.f32 %v1268, %v1296
        %v1336 = vadd.f32 %v1269, %v1296
        %v1337 = vadd.f32 %v1270, %v1296
        %v1338 = vadd.f32 %v1271, %v1296
        %v1339 = vadd.f32 %v1272, %v1296
        %v1340 = vadd.f32 %v1273, %v1296
        %v1341 = vadd.f32 %v1274, %v1296
        %v1342 = vadd.f32 %v1275, %v1296
        %v1343 = vadd.f32 %v1276, %v1296
        %v1344 = vadd.f32 %v1277, %v1296
        %v1345 = vadd.f32 %v1278, %v1296
        %v1346 = vadd.f32 %v1279, %v1296
        %v1347 = vadd.f32 %v1280, %v1296
        %v1348 = vadd.f32 %v1281, %v1296
        %v1349 = vadd.f32 %v1282, %v1296
        %v1350 = vadd.f32 %v1283, %v1296
        %v1351 = vadd.f32 %v1284, %v1296
        %v1352 = vadd.f32 %v1285, %v1296
        %v1353 = vadd.f32 %v1286, %v1296
        %v1354 = vadd.f32 %v1287, %v1296
        %v1355 = vadd.f32 %v1288, %v1296
        %v1356 = vadd.f32 %v1289, %v1296
        %v1357 = vadd.f32 %v1290, %v1296
        %v1358 = vadd.f32 %v1291, %v1296
        %v1359 = vadd.f32 %v1292, %v1296
        %v1360 = vadd.f32 %v1293, %v1296
        %v1361 = vadd.f32 %v1294, %v1296
        %1362 = vset.pattern.permute.xlu0 1
        %1363 = vperm.xlu0 %1362, %v846
        %v1364 = vpop.permute.xlu0 %1363
        %1366 = vset.pattern.permute.xlu0 1
        %1367 = vperm.xlu0 %1366, %v847
        %v1368 = vpop.permute.xlu0 %1367
        %1370 = vset.pattern.permute.xlu0 1
        %1371 = vperm.xlu0 %1370, %v848
        %v1372 = vpop.permute.xlu0 %1371
        %1374 = vset.pattern.permute.xlu0 1
        %1375 = vperm.xlu0 %1374, %v849
        %v1376 = vpop.permute.xlu0 %1375
        %1378 = vset.pattern.permute.xlu0 1
        %1379 = vperm.xlu0 %1378, %v850
        %v1380 = vpop.permute.xlu0 %1379
        %1382 = vset.pattern.permute.xlu0 1
        %1383 = vperm.xlu0 %1382, %v851
        %v1384 = vpop.permute.xlu0 %1383
        %1386 = vset.pattern.permute.xlu0 1
        %1387 = vperm.xlu0 %1386, %v852
        %v1388 = vpop.permute.xlu0 %1387
        %1390 = vset.pattern.permute.xlu0 1
        %1391 = vperm.xlu0 %1390, %v853
        %v1392 = vpop.permute.xlu0 %1391
        %1394 = vset.pattern.permute.xlu0 1
        %1395 = vperm.xlu0 %1394, %v854
        %v1396 = vpop.permute.xlu0 %1395
        %1398 = vset.pattern.permute.xlu0 1
        %1399 = vperm.xlu0 %1398, %v855
        %v1400 = vpop.permute.xlu0 %1399
        %1402 = vset.pattern.permute.xlu0 1
        %1403 = vperm.xlu0 %1402, %v856
        %v1404 = vpop.permute.xlu0 %1403
        %1406 = vset.pattern.permute.xlu0 1
        %1407 = vperm.xlu0 %1406, %v857
        %v1408 = vpop.permute.xlu0 %1407
        %1410 = vset.pattern.permute.xlu0 1
        %1411 = vperm.xlu0 %1410, %v858
        %v1412 = vpop.permute.xlu0 %1411
        %1414 = vset.pattern.permute.xlu0 1
        %1415 = vperm.xlu0 %1414, %v859
        %v1416 = vpop.permute.xlu0 %1415
        %1418 = vset.pattern.permute.xlu0 1
        %1419 = vperm.xlu0 %1418, %v860
        %v1420 = vpop.permute.xlu0 %1419
        %1422 = vset.pattern.permute.xlu0 1
        %1423 = vperm.xlu0 %1422, %v861
        %v1424 = vpop.permute.xlu0 %1423
        %1426 = vset.pattern.permute.xlu0 1
        %1427 = vperm.xlu0 %1426, %v862
        %v1428 = vpop.permute.xlu0 %1427
        %1430 = vset.pattern.permute.xlu0 1
        %1431 = vperm.xlu0 %1430, %v863
        %v1432 = vpop.permute.xlu0 %1431
        %1434 = vset.pattern.permute.xlu0 1
        %1435 = vperm.xlu0 %1434, %v864
        %v1436 = vpop.permute.xlu0 %1435
        %1438 = vset.pattern.permute.xlu0 1
        %1439 = vperm.xlu0 %1438, %v865
        %v1440 = vpop.permute.xlu0 %1439
        %1442 = vset.pattern.permute.xlu0 1
        %1443 = vperm.xlu0 %1442, %v866
        %v1444 = vpop.permute.xlu0 %1443
        %1446 = vset.pattern.permute.xlu0 1
        %1447 = vperm.xlu0 %1446, %v867
        %v1448 = vpop.permute.xlu0 %1447
        %1450 = vset.pattern.permute.xlu0 1
        %1451 = vperm.xlu0 %1450, %v868
        %v1452 = vpop.permute.xlu0 %1451
        %1454 = vset.pattern.permute.xlu0 1
        %1455 = vperm.xlu0 %1454, %v869
        %v1456 = vpop.permute.xlu0 %1455
        %1458 = vset.pattern.permute.xlu0 1
        %1459 = vperm.xlu0 %1458, %v870
        %v1460 = vpop.permute.xlu0 %1459
        %1462 = vset.pattern.permute.xlu0 1
        %1463 = vperm.xlu0 %1462, %v871
        %v1464 = vpop.permute.xlu0 %1463
        %1466 = vset.pattern.permute.xlu0 1
        %1467 = vperm.xlu0 %1466, %v872
        %v1468 = vpop.permute.xlu0 %1467
        %1470 = vset.pattern.permute.xlu0 1
        %1471 = vperm.xlu0 %1470, %v873
        %v1472 = vpop.permute.xlu0 %1471
        %1474 = vset.pattern.permute.xlu0 1
        %1475 = vperm.xlu0 %1474, %v874
        %v1476 = vpop.permute.xlu0 %1475
        %1478 = vset.pattern.permute.xlu0 1
        %1479 = vperm.xlu0 %1478, %v875
        %v1480 = vpop.permute.xlu0 %1479
        %1482 = vset.pattern.permute.xlu0 1
        %1483 = vperm.xlu0 %1482, %v876
        %v1484 = vpop.permute.xlu0 %1483
        %1486 = vset.pattern.permute.xlu0 1
        %1487 = vperm.xlu0 %1486, %v877
        %v1488 = vpop.permute.xlu0 %1487
        %1490 = vset.pattern.permute.xlu0 1
        %1491 = vperm.xlu0 %1490, %v878
        %v1492 = vpop.permute.xlu0 %1491
        %1494 = vset.pattern.permute.xlu0 1
        %1495 = vperm.xlu0 %1494, %v879
        %v1496 = vpop.permute.xlu0 %1495
        %1498 = vset.pattern.permute.xlu0 1
        %1499 = vperm.xlu0 %1498, %v880
        %v1500 = vpop.permute.xlu0 %1499
        %1502 = vset.pattern.permute.xlu0 1
        %1503 = vperm.xlu0 %1502, %v881
        %v1504 = vpop.permute.xlu0 %1503
        %1506 = vset.pattern.permute.xlu0 1
        %1507 = vperm.xlu0 %1506, %v882
        %v1508 = vpop.permute.xlu0 %1507
        %1510 = vset.pattern.permute.xlu0 1
        %1511 = vperm.xlu0 %1510, %v883
        %v1512 = vpop.permute.xlu0 %1511
        %1514 = vset.pattern.permute.xlu0 1
        %1515 = vperm.xlu0 %1514, %v884
        %v1516 = vpop.permute.xlu0 %1515
        %1518 = vset.pattern.permute.xlu0 1
        %1519 = vperm.xlu0 %1518, %v885
        %v1520 = vpop.permute.xlu0 %1519
        %1522 = vset.pattern.permute.xlu0 1
        %1523 = vperm.xlu0 %1522, %v886
        %v1524 = vpop.permute.xlu0 %1523
        %1526 = vset.pattern.permute.xlu0 1
        %1527 = vperm.xlu0 %1526, %v887
        %v1528 = vpop.permute.xlu0 %1527
        %1530 = vset.pattern.permute.xlu0 1
        %1531 = vperm.xlu0 %1530, %v888
        %v1532 = vpop.permute.xlu0 %1531
        %1534 = vset.pattern.permute.xlu0 1
        %1535 = vperm.xlu0 %1534, %v889
        %v1536 = vpop.permute.xlu0 %1535
        %1538 = vset.pattern.permute.xlu0 1
        %1539 = vperm.xlu0 %1538, %v890
        %v1540 = vpop.permute.xlu0 %1539
        %1542 = vset.pattern.permute.xlu0 1
        %1543 = vperm.xlu0 %1542, %v891
        %v1544 = vpop.permute.xlu0 %1543
        %1546 = vset.pattern.permute.xlu0 1
        %1547 = vperm.xlu0 %1546, %v892
        %v1548 = vpop.permute.xlu0 %1547
        %1550 = vset.pattern.permute.xlu0 1
        %1551 = vperm.xlu0 %1550, %v893
        %v1552 = vpop.permute.xlu0 %1551
        %1554 = vset.pattern.permute.xlu0 1
        %1555 = vperm.xlu0 %1554, %v894
        %v1556 = vpop.permute.xlu0 %1555
        %1558 = vset.pattern.permute.xlu0 1
        %1559 = vperm.xlu0 %1558, %v895
        %v1560 = vpop.permute.xlu0 %1559
        %1562 = vset.pattern.permute.xlu0 1
        %1563 = vperm.xlu0 %1562, %v896
        %v1564 = vpop.permute.xlu0 %1563
        %1566 = vset.pattern.permute.xlu0 1
        %1567 = vperm.xlu0 %1566, %v897
        %v1568 = vpop.permute.xlu0 %1567
        %1570 = vset.pattern.permute.xlu0 1
        %1571 = vperm.xlu0 %1570, %v898
        %v1572 = vpop.permute.xlu0 %1571
        %1574 = vset.pattern.permute.xlu0 1
        %1575 = vperm.xlu0 %1574, %v899
        %v1576 = vpop.permute.xlu0 %1575
        %1578 = vset.pattern.permute.xlu0 1
        %1579 = vperm.xlu0 %1578, %v900
        %v1580 = vpop.permute.xlu0 %1579
        %1582 = vset.pattern.permute.xlu0 1
        %1583 = vperm.xlu0 %1582, %v901
        %v1584 = vpop.permute.xlu0 %1583
        %1586 = vset.pattern.permute.xlu0 1
        %1587 = vperm.xlu0 %1586, %v902
        %v1588 = vpop.permute.xlu0 %1587
        %1590 = vset.pattern.permute.xlu0 1
        %1591 = vperm.xlu0 %1590, %v903
        %v1592 = vpop.permute.xlu0 %1591
        %1594 = vset.pattern.permute.xlu0 1
        %1595 = vperm.xlu0 %1594, %v904
        %v1596 = vpop.permute.xlu0 %1595
        %1598 = vset.pattern.permute.xlu0 1
        %1599 = vperm.xlu0 %1598, %v905
        %v1600 = vpop.permute.xlu0 %1599
        %1602 = vset.pattern.permute.xlu0 1
        %1603 = vperm.xlu0 %1602, %v906
        %v1604 = vpop.permute.xlu0 %1603
        %1606 = vset.pattern.permute.xlu0 1
        %1607 = vperm.xlu0 %1606, %v907
        %v1608 = vpop.permute.xlu0 %1607
        %1610 = vset.pattern.permute.xlu0 1
        %1611 = vperm.xlu0 %1610, %v908
        %v1612 = vpop.permute.xlu0 %1611
        %1614 = vset.pattern.permute.xlu0 1
        %1615 = vperm.xlu0 %1614, %v909
        %v1616 = vpop.permute.xlu0 %1615
        %v1618 = vperm.slane %v844, 1
        %v1619 = vmul.f32 %v1364, %v1618
        %v1620 = vmul.f32 %v1368, %v1618
        %v1621 = vmul.f32 %v1372, %v1618
        %v1622 = vmul.f32 %v1376, %v1618
        %v1623 = vmul.f32 %v1380, %v1618
        %v1624 = vmul.f32 %v1384, %v1618
        %v1625 = vmul.f32 %v1388, %v1618
        %v1626 = vmul.f32 %v1392, %v1618
        %v1627 = vmul.f32 %v1396, %v1618
        %v1628 = vmul.f32 %v1400, %v1618
        %v1629 = vmul.f32 %v1404, %v1618
        %v1630 = vmul.f32 %v1408, %v1618
        %v1631 = vmul.f32 %v1412, %v1618
        %v1632 = vmul.f32 %v1416, %v1618
        %v1633 = vmul.f32 %v1420, %v1618
        %v1634 = vmul.f32 %v1424, %v1618
        %v1635 = vmul.f32 %v1428, %v1618
        %v1636 = vmul.f32 %v1432, %v1618
        %v1637 = vmul.f32 %v1436, %v1618
        %v1638 = vmul.f32 %v1440, %v1618
        %v1639 = vmul.f32 %v1444, %v1618
        %v1640 = vmul.f32 %v1448, %v1618
        %v1641 = vmul.f32 %v1452, %v1618
        %v1642 = vmul.f32 %v1456, %v1618
        %v1643 = vmul.f32 %v1460, %v1618
        %v1644 = vmul.f32 %v1464, %v1618
        %v1645 = vmul.f32 %v1468, %v1618
        %v1646 = vmul.f32 %v1472, %v1618
        %v1647 = vmul.f32 %v1476, %v1618
        %v1648 = vmul.f32 %v1480, %v1618
        %v1649 = vmul.f32 %v1484, %v1618
        %v1650 = vmul.f32 %v1488, %v1618
        %v1651 = vmul.f32 %v1492, %v1618
        %v1652 = vmul.f32 %v1496, %v1618
        %v1653 = vmul.f32 %v1500, %v1618
        %v1654 = vmul.f32 %v1504, %v1618
        %v1655 = vmul.f32 %v1508, %v1618
        %v1656 = vmul.f32 %v1512, %v1618
        %v1657 = vmul.f32 %v1516, %v1618
        %v1658 = vmul.f32 %v1520, %v1618
        %v1659 = vmul.f32 %v1524, %v1618
        %v1660 = vmul.f32 %v1528, %v1618
        %v1661 = vmul.f32 %v1532, %v1618
        %v1662 = vmul.f32 %v1536, %v1618
        %v1663 = vmul.f32 %v1540, %v1618
        %v1664 = vmul.f32 %v1544, %v1618
        %v1665 = vmul.f32 %v1548, %v1618
        %v1666 = vmul.f32 %v1552, %v1618
        %v1667 = vmul.f32 %v1556, %v1618
        %v1668 = vmul.f32 %v1560, %v1618
        %v1669 = vmul.f32 %v1564, %v1618
        %v1670 = vmul.f32 %v1568, %v1618
        %v1671 = vmul.f32 %v1572, %v1618
        %v1672 = vmul.f32 %v1576, %v1618
        %v1673 = vmul.f32 %v1580, %v1618
        %v1674 = vmul.f32 %v1584, %v1618
        %v1675 = vmul.f32 %v1588, %v1618
        %v1676 = vmul.f32 %v1592, %v1618
        %v1677 = vmul.f32 %v1596, %v1618
        %v1678 = vmul.f32 %v1600, %v1618
        %v1679 = vmul.f32 %v1604, %v1618
        %v1680 = vmul.f32 %v1608, %v1618
        %v1681 = vmul.f32 %v1612, %v1618
        %v1682 = vmul.f32 %v1616, %v1618
        %v1683 = vadd.f32 %v1298, %v1619
        %v1684 = vadd.f32 %v1299, %v1620
        %v1685 = vadd.f32 %v1300, %v1621
        %v1686 = vadd.f32 %v1301, %v1622
        %v1687 = vadd.f32 %v1302, %v1623
        %v1688 = vadd.f32 %v1303, %v1624
        %v1689 = vadd.f32 %v1304, %v1625
        %v1690 = vadd.f32 %v1305, %v1626
        %v1691 = vadd.f32 %v1306, %v1627
        %v1692 = vadd.f32 %v1307, %v1628
        %v1693 = vadd.f32 %v1308, %v1629
        %v1694 = vadd.f32 %v1309, %v1630
        %v1695 = vadd.f32 %v1310, %v1631
        %v1696 = vadd.f32 %v1311, %v1632
        %v1697 = vadd.f32 %v1312, %v1633
        %v1698 = vadd.f32 %v1313, %v1634
        %v1699 = vadd.f32 %v1314, %v1635
        %v1700 = vadd.f32 %v1315, %v1636
        %v1701 = vadd.f32 %v1316, %v1637
        %v1702 = vadd.f32 %v1317, %v1638
        %v1703 = vadd.f32 %v1318, %v1639
        %v1704 = vadd.f32 %v1319, %v1640
        %v1705 = vadd.f32 %v1320, %v1641
        %v1706 = vadd.f32 %v1321, %v1642
        %v1707 = vadd.f32 %v1322, %v1643
        %v1708 = vadd.f32 %v1323, %v1644
        %v1709 = vadd.f32 %v1324, %v1645
        %v1710 = vadd.f32 %v1325, %v1646
        %v1711 = vadd.f32 %v1326, %v1647
        %v1712 = vadd.f32 %v1327, %v1648
        %v1713 = vadd.f32 %v1328, %v1649
        %v1714 = vadd.f32 %v1329, %v1650
        %v1715 = vadd.f32 %v1330, %v1651
        %v1716 = vadd.f32 %v1331, %v1652
        %v1717 = vadd.f32 %v1332, %v1653
        %v1718 = vadd.f32 %v1333, %v1654
        %v1719 = vadd.f32 %v1334, %v1655
        %v1720 = vadd.f32 %v1335, %v1656
        %v1721 = vadd.f32 %v1336, %v1657
        %v1722 = vadd.f32 %v1337, %v1658
        %v1723 = vadd.f32 %v1338, %v1659
        %v1724 = vadd.f32 %v1339, %v1660
        %v1725 = vadd.f32 %v1340, %v1661
        %v1726 = vadd.f32 %v1341, %v1662
        %v1727 = vadd.f32 %v1342, %v1663
        %v1728 = vadd.f32 %v1343, %v1664
        %v1729 = vadd.f32 %v1344, %v1665
        %v1730 = vadd.f32 %v1345, %v1666
        %v1731 = vadd.f32 %v1346, %v1667
        %v1732 = vadd.f32 %v1347, %v1668
        %v1733 = vadd.f32 %v1348, %v1669
        %v1734 = vadd.f32 %v1349, %v1670
        %v1735 = vadd.f32 %v1350, %v1671
        %v1736 = vadd.f32 %v1351, %v1672
        %v1737 = vadd.f32 %v1352, %v1673
        %v1738 = vadd.f32 %v1353, %v1674
        %v1739 = vadd.f32 %v1354, %v1675
        %v1740 = vadd.f32 %v1355, %v1676
        %v1741 = vadd.f32 %v1356, %v1677
        %v1742 = vadd.f32 %v1357, %v1678
        %v1743 = vadd.f32 %v1358, %v1679
        %v1744 = vadd.f32 %v1359, %v1680
        %v1745 = vadd.f32 %v1360, %v1681
        %v1746 = vadd.f32 %v1361, %v1682
        %v1747 = vmax.f32 %v1683, 0.0
        %v1748 = vmax.f32 %v1684, 0.0
        %v1749 = vmax.f32 %v1685, 0.0
        %v1750 = vmax.f32 %v1686, 0.0
        %v1751 = vmax.f32 %v1687, 0.0
        %v1752 = vmax.f32 %v1688, 0.0
        %v1753 = vmax.f32 %v1689, 0.0
        %v1754 = vmax.f32 %v1690, 0.0
        %v1755 = vmax.f32 %v1691, 0.0
        %v1756 = vmax.f32 %v1692, 0.0
        %v1757 = vmax.f32 %v1693, 0.0
        %v1758 = vmax.f32 %v1694, 0.0
        %v1759 = vmax.f32 %v1695, 0.0
        %v1760 = vmax.f32 %v1696, 0.0
        %v1761 = vmax.f32 %v1697, 0.0
        %v1762 = vmax.f32 %v1698, 0.0
        %v1763 = vmax.f32 %v1699, 0.0
        %v1764 = vmax.f32 %v1700, 0.0
        %v1765 = vmax.f32 %v1701, 0.0
        %v1766 = vmax.f32 %v1702, 0.0
        %v1767 = vmax.f32 %v1703, 0.0
        %v1768 = vmax.f32 %v1704, 0.0
        %v1769 = vmax.f32 %v1705, 0.0
        %v1770 = vmax.f32 %v1706, 0.0
        %v1771 = vmax.f32 %v1707, 0.0
        %v1772 = vmax.f32 %v1708, 0.0
        %v1773 = vmax.f32 %v1709, 0.0
        %v1774 = vmax.f32 %v1710, 0.0
        %v1775 = vmax.f32 %v1711, 0.0
        %v1776 = vmax.f32 %v1712, 0.0
        %v1777 = vmax.f32 %v1713, 0.0
        %v1778 = vmax.f32 %v1714, 0.0
        %v1779 = vmax.f32 %v1715, 0.0
        %v1780 = vmax.f32 %v1716, 0.0
        %v1781 = vmax.f32 %v1717, 0.0
        %v1782 = vmax.f32 %v1718, 0.0
        %v1783 = vmax.f32 %v1719, 0.0
        %v1784 = vmax.f32 %v1720, 0.0
        %v1785 = vmax.f32 %v1721, 0.0
        %v1786 = vmax.f32 %v1722, 0.0
        %v1787 = vmax.f32 %v1723, 0.0
        %v1788 = vmax.f32 %v1724, 0.0
        %v1789 = vmax.f32 %v1725, 0.0
        %v1790 = vmax.f32 %v1726, 0.0
        %v1791 = vmax.f32 %v1727, 0.0
        %v1792 = vmax.f32 %v1728, 0.0
        %v1793 = vmax.f32 %v1729, 0.0
        %v1794 = vmax.f32 %v1730, 0.0
        %v1795 = vmax.f32 %v1731, 0.0
        %v1796 = vmax.f32 %v1732, 0.0
        %v1797 = vmax.f32 %v1733, 0.0
        %v1798 = vmax.f32 %v1734, 0.0
        %v1799 = vmax.f32 %v1735, 0.0
        %v1800 = vmax.f32 %v1736, 0.0
        %v1801 = vmax.f32 %v1737, 0.0
        %v1802 = vmax.f32 %v1738, 0.0
        %v1803 = vmax.f32 %v1739, 0.0
        %v1804 = vmax.f32 %v1740, 0.0
        %v1805 = vmax.f32 %v1741, 0.0
        %v1806 = vmax.f32 %v1742, 0.0
        %v1807 = vmax.f32 %v1743, 0.0
        %v1808 = vmax.f32 %v1744, 0.0
        %v1809 = vmax.f32 %v1745, 0.0
        %v1810 = vmax.f32 %v1746, 0.0
        %v1811 = vld [vmem:[%s795] sm:$0xff]
        %v1812 = vld [vmem:[%s795 + $0x8] sm:$0xff]
        %v1813 = vld [vmem:[%s795 + $0x10] sm:$0xff]
        %v1814 = vld [vmem:[%s795 + $0x18] sm:$0xff]
        %v1815 = vld [vmem:[%s795 + $0x20] sm:$0xff]
        %v1816 = vld [vmem:[%s795 + $0x28] sm:$0xff]
        %v1817 = vld [vmem:[%s795 + $0x30] sm:$0xff]
        %v1818 = vld [vmem:[%s795 + $0x38] sm:$0xff]
        %v1819 = vld [vmem:[%s795 + $0x40] sm:$0xff]
        %v1820 = vld [vmem:[%s795 + $0x48] sm:$0xff]
        %v1821 = vld [vmem:[%s795 + $0x50] sm:$0xff]
        %v1822 = vld [vmem:[%s795 + $0x58] sm:$0xff]
        %v1823 = vld [vmem:[%s795 + $0x60] sm:$0xff]
        %v1824 = vld [vmem:[%s795 + $0x68] sm:$0xff]
        %v1825 = vld [vmem:[%s795 + $0x70] sm:$0xff]
        %v1826 = vld [vmem:[%s795 + $0x78] sm:$0xff]
        %v1827 = vld [vmem:[%s795 + $0x80] sm:$0xff]
        %v1828 = vld [vmem:[%s795 + $0x88] sm:$0xff]
        %v1829 = vld [vmem:[%s795 + $0x90] sm:$0xff]
        %v1830 = vld [vmem:[%s795 + $0x98] sm:$0xff]
        %v1831 = vld [vmem:[%s795 + $0xa0] sm:$0xff]
        %v1832 = vld [vmem:[%s795 + $0xa8] sm:$0xff]
        %v1833 = vld [vmem:[%s795 + $0xb0] sm:$0xff]
        %v1834 = vld [vmem:[%s795 + $0xb8] sm:$0xff]
        %v1835 = vld [vmem:[%s795 + $0xc0] sm:$0xff]
        %v1836 = vld [vmem:[%s795 + $0xc8] sm:$0xff]
        %v1837 = vld [vmem:[%s795 + $0xd0] sm:$0xff]
        %v1838 = vld [vmem:[%s795 + $0xd8] sm:$0xff]
        %v1839 = vld [vmem:[%s795 + $0xe0] sm:$0xff]
        %v1840 = vld [vmem:[%s795 + $0xe8] sm:$0xff]
        %v1841 = vld [vmem:[%s795 + $0xf0] sm:$0xff]
        %v1842 = vld [vmem:[%s795 + $0xf8] sm:$0xff]
        %v1843 = vld [vmem:[%s795 + $0x100] sm:$0xff]
        %v1844 = vld [vmem:[%s795 + $0x108] sm:$0xff]
        %v1845 = vld [vmem:[%s795 + $0x110] sm:$0xff]
        %v1846 = vld [vmem:[%s795 + $0x118] sm:$0xff]
        %v1847 = vld [vmem:[%s795 + $0x120] sm:$0xff]
        %v1848 = vld [vmem:[%s795 + $0x128] sm:$0xff]
        %v1849 = vld [vmem:[%s795 + $0x130] sm:$0xff]
        %v1850 = vld [vmem:[%s795 + $0x138] sm:$0xff]
        %v1851 = vld [vmem:[%s795 + $0x140] sm:$0xff]
        %v1852 = vld [vmem:[%s795 + $0x148] sm:$0xff]
        %v1853 = vld [vmem:[%s795 + $0x150] sm:$0xff]
        %v1854 = vld [vmem:[%s795 + $0x158] sm:$0xff]
        %v1855 = vld [vmem:[%s795 + $0x160] sm:$0xff]
        %v1856 = vld [vmem:[%s795 + $0x168] sm:$0xff]
        %v1857 = vld [vmem:[%s795 + $0x170] sm:$0xff]
        %v1858 = vld [vmem:[%s795 + $0x178] sm:$0xff]
        %v1859 = vld [vmem:[%s795 + $0x180] sm:$0xff]
        %v1860 = vld [vmem:[%s795 + $0x188] sm:$0xff]
        %v1861 = vld [vmem:[%s795 + $0x190] sm:$0xff]
        %v1862 = vld [vmem:[%s795 + $0x198] sm:$0xff]
        %v1863 = vld [vmem:[%s795 + $0x1a0] sm:$0xff]
        %v1864 = vld [vmem:[%s795 + $0x1a8] sm:$0xff]
        %v1865 = vld [vmem:[%s795 + $0x1b0] sm:$0xff]
        %v1866 = vld [vmem:[%s795 + $0x1b8] sm:$0xff]
        %v1867 = vld [vmem:[%s795 + $0x1c0] sm:$0xff]
        %v1868 = vld [vmem:[%s795 + $0x1c8] sm:$0xff]
        %v1869 = vld [vmem:[%s795 + $0x1d0] sm:$0xff]
        %v1870 = vld [vmem:[%s795 + $0x1d8] sm:$0xff]
        %v1871 = vld [vmem:[%s795 + $0x1e0] sm:$0xff]
        %v1872 = vld [vmem:[%s795 + $0x1e8] sm:$0xff]
        %v1873 = vld [vmem:[%s795 + $0x1f0] sm:$0xff]
        %v1874 = vld [vmem:[%s795 + $0x1f8] sm:$0xff]
        %1876 = vset.pattern.permute.xlu0 0
        %1877 = vperm.xlu0 %1876, %v1811
        %v1878 = vpop.permute.xlu0 %1877
        %1881 = vset.pattern.permute.xlu0 0
        %1882 = vperm.xlu0 %1881, %v1812
        %v1883 = vpop.permute.xlu0 %1882
        %1886 = vset.pattern.permute.xlu0 0
        %1887 = vperm.xlu0 %1886, %v1813
        %v1888 = vpop.permute.xlu0 %1887
        %1891 = vset.pattern.permute.xlu0 0
        %1892 = vperm.xlu0 %1891, %v1814
        %v1893 = vpop.permute.xlu0 %1892
        %1896 = vset.pattern.permute.xlu0 0
        %1897 = vperm.xlu0 %1896, %v1815
        %v1898 = vpop.permute.xlu0 %1897
        %1901 = vset.pattern.permute.xlu0 0
        %1902 = vperm.xlu0 %1901, %v1816
        %v1903 = vpop.permute.xlu0 %1902
        %1906 = vset.pattern.permute.xlu0 0
        %1907 = vperm.xlu0 %1906, %v1817
        %v1908 = vpop.permute.xlu0 %1907
        %1911 = vset.pattern.permute.xlu0 0
        %1912 = vperm.xlu0 %1911, %v1818
        %v1913 = vpop.permute.xlu0 %1912
        %1916 = vset.pattern.permute.xlu0 0
        %1917 = vperm.xlu0 %1916, %v1819
        %v1918 = vpop.permute.xlu0 %1917
        %1921 = vset.pattern.permute.xlu0 0
        %1922 = vperm.xlu0 %1921, %v1820
        %v1923 = vpop.permute.xlu0 %1922
        %1926 = vset.pattern.permute.xlu0 0
        %1927 = vperm.xlu0 %1926, %v1821
        %v1928 = vpop.permute.xlu0 %1927
        %1931 = vset.pattern.permute.xlu0 0
        %1932 = vperm.xlu0 %1931, %v1822
        %v1933 = vpop.permute.xlu0 %1932
        %1936 = vset.pattern.permute.xlu0 0
        %1937 = vperm.xlu0 %1936, %v1823
        %v1938 = vpop.permute.xlu0 %1937
        %1941 = vset.pattern.permute.xlu0 0
        %1942 = vperm.xlu0 %1941, %v1824
        %v1943 = vpop.permute.xlu0 %1942
        %1946 = vset.pattern.permute.xlu0 0
        %1947 = vperm.xlu0 %1946, %v1825
        %v1948 = vpop.permute.xlu0 %1947
        %1951 = vset.pattern.permute.xlu0 0
        %1952 = vperm.xlu0 %1951, %v1826
        %v1953 = vpop.permute.xlu0 %1952
        %1956 = vset.pattern.permute.xlu0 0
        %1957 = vperm.xlu0 %1956, %v1827
        %v1958 = vpop.permute.xlu0 %1957
        %1961 = vset.pattern.permute.xlu0 0
        %1962 = vperm.xlu0 %1961, %v1828
        %v1963 = vpop.permute.xlu0 %1962
        %1966 = vset.pattern.permute.xlu0 0
        %1967 = vperm.xlu0 %1966, %v1829
        %v1968 = vpop.permute.xlu0 %1967
        %1971 = vset.pattern.permute.xlu0 0
        %1972 = vperm.xlu0 %1971, %v1830
        %v1973 = vpop.permute.xlu0 %1972
        %1976 = vset.pattern.permute.xlu0 0
        %1977 = vperm.xlu0 %1976, %v1831
        %v1978 = vpop.permute.xlu0 %1977
        %1981 = vset.pattern.permute.xlu0 0
        %1982 = vperm.xlu0 %1981, %v1832
        %v1983 = vpop.permute.xlu0 %1982
        %1986 = vset.pattern.permute.xlu0 0
        %1987 = vperm.xlu0 %1986, %v1833
        %v1988 = vpop.permute.xlu0 %1987
        %1991 = vset.pattern.permute.xlu0 0
        %1992 = vperm.xlu0 %1991, %v1834
        %v1993 = vpop.permute.xlu0 %1992
        %1996 = vset.pattern.permute.xlu0 0
        %1997 = vperm.xlu0 %1996, %v1835
        %v1998 = vpop.permute.xlu0 %1997
        %2001 = vset.pattern.permute.xlu0 0
        %2002 = vperm.xlu0 %2001, %v1836
        %v2003 = vpop.permute.xlu0 %2002
        %2006 = vset.pattern.permute.xlu0 0
        %2007 = vperm.xlu0 %2006, %v1837
        %v2008 = vpop.permute.xlu0 %2007
        %2011 = vset.pattern.permute.xlu0 0
        %2012 = vperm.xlu0 %2011, %v1838
        %v2013 = vpop.permute.xlu0 %2012
        %2016 = vset.pattern.permute.xlu0 0
        %2017 = vperm.xlu0 %2016, %v1839
        %v2018 = vpop.permute.xlu0 %2017
        %2021 = vset.pattern.permute.xlu0 0
        %2022 = vperm.xlu0 %2021, %v1840
        %v2023 = vpop.permute.xlu0 %2022
        %2026 = vset.pattern.permute.xlu0 0
        %2027 = vperm.xlu0 %2026, %v1841
        %v2028 = vpop.permute.xlu0 %2027
        %2031 = vset.pattern.permute.xlu0 0
        %2032 = vperm.xlu0 %2031, %v1842
        %v2033 = vpop.permute.xlu0 %2032
        %2036 = vset.pattern.permute.xlu0 0
        %2037 = vperm.xlu0 %2036, %v1843
        %v2038 = vpop.permute.xlu0 %2037
        %2041 = vset.pattern.permute.xlu0 0
        %2042 = vperm.xlu0 %2041, %v1844
        %v2043 = vpop.permute.xlu0 %2042
        %2046 = vset.pattern.permute.xlu0 0
        %2047 = vperm.xlu0 %2046, %v1845
        %v2048 = vpop.permute.xlu0 %2047
        %2051 = vset.pattern.permute.xlu0 0
        %2052 = vperm.xlu0 %2051, %v1846
        %v2053 = vpop.permute.xlu0 %2052
        %2056 = vset.pattern.permute.xlu0 0
        %2057 = vperm.xlu0 %2056, %v1847
        %v2058 = vpop.permute.xlu0 %2057
        %2061 = vset.pattern.permute.xlu0 0
        %2062 = vperm.xlu0 %2061, %v1848
        %v2063 = vpop.permute.xlu0 %2062
        %2066 = vset.pattern.permute.xlu0 0
        %2067 = vperm.xlu0 %2066, %v1849
        %v2068 = vpop.permute.xlu0 %2067
        %2071 = vset.pattern.permute.xlu0 0
        %2072 = vperm.xlu0 %2071, %v1850
        %v2073 = vpop.permute.xlu0 %2072
        %2076 = vset.pattern.permute.xlu0 0
        %2077 = vperm.xlu0 %2076, %v1851
        %v2078 = vpop.permute.xlu0 %2077
        %2081 = vset.pattern.permute.xlu0 0
        %2082 = vperm.xlu0 %2081, %v1852
        %v2083 = vpop.permute.xlu0 %2082
        %2086 = vset.pattern.permute.xlu0 0
        %2087 = vperm.xlu0 %2086, %v1853
        %v2088 = vpop.permute.xlu0 %2087
        %2091 = vset.pattern.permute.xlu0 0
        %2092 = vperm.xlu0 %2091, %v1854
        %v2093 = vpop.permute.xlu0 %2092
        %2096 = vset.pattern.permute.xlu0 0
        %2097 = vperm.xlu0 %2096, %v1855
        %v2098 = vpop.permute.xlu0 %2097
        %2101 = vset.pattern.permute.xlu0 0
        %2102 = vperm.xlu0 %2101, %v1856
        %v2103 = vpop.permute.xlu0 %2102
        %2106 = vset.pattern.permute.xlu0 0
        %2107 = vperm.xlu0 %2106, %v1857
        %v2108 = vpop.permute.xlu0 %2107
        %2111 = vset.pattern.permute.xlu0 0
        %2112 = vperm.xlu0 %2111, %v1858
        %v2113 = vpop.permute.xlu0 %2112
        %2116 = vset.pattern.permute.xlu0 0
        %2117 = vperm.xlu0 %2116, %v1859
        %v2118 = vpop.permute.xlu0 %2117
        %2121 = vset.pattern.permute.xlu0 0
        %2122 = vperm.xlu0 %2121, %v1860
        %v2123 = vpop.permute.xlu0 %2122
        %2126 = vset.pattern.permute.xlu0 0
        %2127 = vperm.xlu0 %2126, %v1861
        %v2128 = vpop.permute.xlu0 %2127
        %2131 = vset.pattern.permute.xlu0 0
        %2132 = vperm.xlu0 %2131, %v1862
        %v2133 = vpop.permute.xlu0 %2132
        %2136 = vset.pattern.permute.xlu0 0
        %2137 = vperm.xlu0 %2136, %v1863
        %v2138 = vpop.permute.xlu0 %2137
        %2141 = vset.pattern.permute.xlu0 0
        %2142 = vperm.xlu0 %2141, %v1864
        %v2143 = vpop.permute.xlu0 %2142
        %2146 = vset.pattern.permute.xlu0 0
        %2147 = vperm.xlu0 %2146, %v1865
        %v2148 = vpop.permute.xlu0 %2147
        %2151 = vset.pattern.permute.xlu0 0
        %2152 = vperm.xlu0 %2151, %v1866
        %v2153 = vpop.permute.xlu0 %2152
        %2156 = vset.pattern.permute.xlu0 0
        %2157 = vperm.xlu0 %2156, %v1867
        %v2158 = vpop.permute.xlu0 %2157
        %2161 = vset.pattern.permute.xlu0 0
        %2162 = vperm.xlu0 %2161, %v1868
        %v2163 = vpop.permute.xlu0 %2162
        %2166 = vset.pattern.permute.xlu0 0
        %2167 = vperm.xlu0 %2166, %v1869
        %v2168 = vpop.permute.xlu0 %2167
        %2171 = vset.pattern.permute.xlu0 0
        %2172 = vperm.xlu0 %2171, %v1870
        %v2173 = vpop.permute.xlu0 %2172
        %2176 = vset.pattern.permute.xlu0 0
        %2177 = vperm.xlu0 %2176, %v1871
        %v2178 = vpop.permute.xlu0 %2177
        %2181 = vset.pattern.permute.xlu0 0
        %2182 = vperm.xlu0 %2181, %v1872
        %v2183 = vpop.permute.xlu0 %2182
        %2186 = vset.pattern.permute.xlu0 0
        %2187 = vperm.xlu0 %2186, %v1873
        %v2188 = vpop.permute.xlu0 %2187
        %2191 = vset.pattern.permute.xlu0 0
        %2192 = vperm.xlu0 %2191, %v1874
        %v2193 = vpop.permute.xlu0 %2192
        %v2195 = vmul.f32 %v1878, %v1230
        %v2196 = vmul.f32 %v1883, %v1230
        %v2197 = vmul.f32 %v1888, %v1230
        %v2198 = vmul.f32 %v1893, %v1230
        %v2199 = vmul.f32 %v1898, %v1230
        %v2200 = vmul.f32 %v1903, %v1230
        %v2201 = vmul.f32 %v1908, %v1230
        %v2202 = vmul.f32 %v1913, %v1230
        %v2203 = vmul.f32 %v1918, %v1230
        %v2204 = vmul.f32 %v1923, %v1230
        %v2205 = vmul.f32 %v1928, %v1230
        %v2206 = vmul.f32 %v1933, %v1230
        %v2207 = vmul.f32 %v1938, %v1230
        %v2208 = vmul.f32 %v1943, %v1230
        %v2209 = vmul.f32 %v1948, %v1230
        %v2210 = vmul.f32 %v1953, %v1230
        %v2211 = vmul.f32 %v1958, %v1230
        %v2212 = vmul.f32 %v1963, %v1230
        %v2213 = vmul.f32 %v1968, %v1230
        %v2214 = vmul.f32 %v1973, %v1230
        %v2215 = vmul.f32 %v1978, %v1230
        %v2216 = vmul.f32 %v1983, %v1230
        %v2217 = vmul.f32 %v1988, %v1230
        %v2218 = vmul.f32 %v1993, %v1230
        %v2219 = vmul.f32 %v1998, %v1230
        %v2220 = vmul.f32 %v2003, %v1230
        %v2221 = vmul.f32 %v2008, %v1230
        %v2222 = vmul.f32 %v2013, %v1230
        %v2223 = vmul.f32 %v2018, %v1230
        %v2224 = vmul.f32 %v2023, %v1230
        %v2225 = vmul.f32 %v2028, %v1230
        %v2226 = vmul.f32 %v2033, %v1230
        %v2227 = vmul.f32 %v2038, %v1230
        %v2228 = vmul.f32 %v2043, %v1230
        %v2229 = vmul.f32 %v2048, %v1230
        %v2230 = vmul.f32 %v2053, %v1230
        %v2231 = vmul.f32 %v2058, %v1230
        %v2232 = vmul.f32 %v2063, %v1230
        %v2233 = vmul.f32 %v2068, %v1230
        %v2234 = vmul.f32 %v2073, %v1230
        %v2235 = vmul.f32 %v2078, %v1230
        %v2236 = vmul.f32 %v2083, %v1230
        %v2237 = vmul.f32 %v2088, %v1230
        %v2238 = vmul.f32 %v2093, %v1230
        %v2239 = vmul.f32 %v2098, %v1230
        %v2240 = vmul.f32 %v2103, %v1230
        %v2241 = vmul.f32 %v2108, %v1230
        %v2242 = vmul.f32 %v2113, %v1230
        %v2243 = vmul.f32 %v2118, %v1230
        %v2244 = vmul.f32 %v2123, %v1230
        %v2245 = vmul.f32 %v2128, %v1230
        %v2246 = vmul.f32 %v2133, %v1230
        %v2247 = vmul.f32 %v2138, %v1230
        %v2248 = vmul.f32 %v2143, %v1230
        %v2249 = vmul.f32 %v2148, %v1230
        %v2250 = vmul.f32 %v2153, %v1230
        %v2251 = vmul.f32 %v2158, %v1230
        %v2252 = vmul.f32 %v2163, %v1230
        %v2253 = vmul.f32 %v2168, %v1230
        %v2254 = vmul.f32 %v2173, %v1230
        %v2255 = vmul.f32 %v2178, %v1230
        %v2256 = vmul.f32 %v2183, %v1230
        %v2257 = vmul.f32 %v2188, %v1230
        %v2258 = vmul.f32 %v2193, %v1230
        %v2259 = vadd.f32 %v2195, %v1296
        %v2260 = vadd.f32 %v2196, %v1296
        %v2261 = vadd.f32 %v2197, %v1296
        %v2262 = vadd.f32 %v2198, %v1296
        %v2263 = vadd.f32 %v2199, %v1296
        %v2264 = vadd.f32 %v2200, %v1296
        %v2265 = vadd.f32 %v2201, %v1296
        %v2266 = vadd.f32 %v2202, %v1296
        %v2267 = vadd.f32 %v2203, %v1296
        %v2268 = vadd.f32 %v2204, %v1296
        %v2269 = vadd.f32 %v2205, %v1296
        %v2270 = vadd.f32 %v2206, %v1296
        %v2271 = vadd.f32 %v2207, %v1296
        %v2272 = vadd.f32 %v2208, %v1296
        %v2273 = vadd.f32 %v2209, %v1296
        %v2274 = vadd.f32 %v2210, %v1296
        %v2275 = vadd.f32 %v2211, %v1296
        %v2276 = vadd.f32 %v2212, %v1296
        %v2277 = vadd.f32 %v2213, %v1296
        %v2278 = vadd.f32 %v2214, %v1296
        %v2279 = vadd.f32 %v2215, %v1296
        %v2280 = vadd.f32 %v2216, %v1296
        %v2281 = vadd.f32 %v2217, %v1296
        %v2282 = vadd.f32 %v2218, %v1296
        %v2283 = vadd.f32 %v2219, %v1296
        %v2284 = vadd.f32 %v2220, %v1296
        %v2285 = vadd.f32 %v2221, %v1296
        %v2286 = vadd.f32 %v2222, %v1296
        %v2287 = vadd.f32 %v2223, %v1296
        %v2288 = vadd.f32 %v2224, %v1296
        %v2289 = vadd.f32 %v2225, %v1296
        %v2290 = vadd.f32 %v2226, %v1296
        %v2291 = vadd.f32 %v2227, %v1296
        %v2292 = vadd.f32 %v2228, %v1296
        %v2293 = vadd.f32 %v2229, %v1296
        %v2294 = vadd.f32 %v2230, %v1296
        %v2295 = vadd.f32 %v2231, %v1296
        %v2296 = vadd.f32 %v2232, %v1296
        %v2297 = vadd.f32 %v2233, %v1296
        %v2298 = vadd.f32 %v2234, %v1296
        %v2299 = vadd.f32 %v2235, %v1296
        %v2300 = vadd.f32 %v2236, %v1296
        %v2301 = vadd.f32 %v2237, %v1296
        %v2302 = vadd.f32 %v2238, %v1296
        %v2303 = vadd.f32 %v2239, %v1296
        %v2304 = vadd.f32 %v2240, %v1296
        %v2305 = vadd.f32 %v2241, %v1296
        %v2306 = vadd.f32 %v2242, %v1296
        %v2307 = vadd.f32 %v2243, %v1296
        %v2308 = vadd.f32 %v2244, %v1296
        %v2309 = vadd.f32 %v2245, %v1296
        %v2310 = vadd.f32 %v2246, %v1296
        %v2311 = vadd.f32 %v2247, %v1296
        %v2312 = vadd.f32 %v2248, %v1296
        %v2313 = vadd.f32 %v2249, %v1296
        %v2314 = vadd.f32 %v2250, %v1296
        %v2315 = vadd.f32 %v2251, %v1296
        %v2316 = vadd.f32 %v2252, %v1296
        %v2317 = vadd.f32 %v2253, %v1296
        %v2318 = vadd.f32 %v2254, %v1296
        %v2319 = vadd.f32 %v2255, %v1296
        %v2320 = vadd.f32 %v2256, %v1296
        %v2321 = vadd.f32 %v2257, %v1296
        %v2322 = vadd.f32 %v2258, %v1296
        %2323 = vset.pattern.permute.xlu0 1
        %2324 = vperm.xlu0 %2323, %v1811
        %v2325 = vpop.permute.xlu0 %2324
        %2327 = vset.pattern.permute.xlu0 1
        %2328 = vperm.xlu0 %2327, %v1812
        %v2329 = vpop.permute.xlu0 %2328
        %2331 = vset.pattern.permute.xlu0 1
        %2332 = vperm.xlu0 %2331, %v1813
        %v2333 = vpop.permute.xlu0 %2332
        %2335 = vset.pattern.permute.xlu0 1
        %2336 = vperm.xlu0 %2335, %v1814
        %v2337 = vpop.permute.xlu0 %2336
        %2339 = vset.pattern.permute.xlu0 1
        %2340 = vperm.xlu0 %2339, %v1815
        %v2341 = vpop.permute.xlu0 %2340
        %2343 = vset.pattern.permute.xlu0 1
        %2344 = vperm.xlu0 %2343, %v1816
        %v2345 = vpop.permute.xlu0 %2344
        %2347 = vset.pattern.permute.xlu0 1
        %2348 = vperm.xlu0 %2347, %v1817
        %v2349 = vpop.permute.xlu0 %2348
        %2351 = vset.pattern.permute.xlu0 1
        %2352 = vperm.xlu0 %2351, %v1818
        %v2353 = vpop.permute.xlu0 %2352
        %2355 = vset.pattern.permute.xlu0 1
        %2356 = vperm.xlu0 %2355, %v1819
        %v2357 = vpop.permute.xlu0 %2356
        %2359 = vset.pattern.permute.xlu0 1
        %2360 = vperm.xlu0 %2359, %v1820
        %v2361 = vpop.permute.xlu0 %2360
        %2363 = vset.pattern.permute.xlu0 1
        %2364 = vperm.xlu0 %2363, %v1821
        %v2365 = vpop.permute.xlu0 %2364
        %2367 = vset.pattern.permute.xlu0 1
        %2368 = vperm.xlu0 %2367, %v1822
        %v2369 = vpop.permute.xlu0 %2368
        %2371 = vset.pattern.permute.xlu0 1
        %2372 = vperm.xlu0 %2371, %v1823
        %v2373 = vpop.permute.xlu0 %2372
        %2375 = vset.pattern.permute.xlu0 1
        %2376 = vperm.xlu0 %2375, %v1824
        %v2377 = vpop.permute.xlu0 %2376
        %2379 = vset.pattern.permute.xlu0 1
        %2380 = vperm.xlu0 %2379, %v1825
        %v2381 = vpop.permute.xlu0 %2380
        %2383 = vset.pattern.permute.xlu0 1
        %2384 = vperm.xlu0 %2383, %v1826
        %v2385 = vpop.permute.xlu0 %2384
        %2387 = vset.pattern.permute.xlu0 1
        %2388 = vperm.xlu0 %2387, %v1827
        %v2389 = vpop.permute.xlu0 %2388
        %2391 = vset.pattern.permute.xlu0 1
        %2392 = vperm.xlu0 %2391, %v1828
        %v2393 = vpop.permute.xlu0 %2392
        %2395 = vset.pattern.permute.xlu0 1
        %2396 = vperm.xlu0 %2395, %v1829
        %v2397 = vpop.permute.xlu0 %2396
        %2399 = vset.pattern.permute.xlu0 1
        %2400 = vperm.xlu0 %2399, %v1830
        %v2401 = vpop.permute.xlu0 %2400
        %2403 = vset.pattern.permute.xlu0 1
        %2404 = vperm.xlu0 %2403, %v1831
        %v2405 = vpop.permute.xlu0 %2404
        %2407 = vset.pattern.permute.xlu0 1
        %2408 = vperm.xlu0 %2407, %v1832
        %v2409 = vpop.permute.xlu0 %2408
        %2411 = vset.pattern.permute.xlu0 1
        %2412 = vperm.xlu0 %2411, %v1833
        %v2413 = vpop.permute.xlu0 %2412
        %2415 = vset.pattern.permute.xlu0 1
        %2416 = vperm.xlu0 %2415, %v1834
        %v2417 = vpop.permute.xlu0 %2416
        %2419 = vset.pattern.permute.xlu0 1
        %2420 = vperm.xlu0 %2419, %v1835
        %v2421 = vpop.permute.xlu0 %2420
        %2423 = vset.pattern.permute.xlu0 1
        %2424 = vperm.xlu0 %2423, %v1836
        %v2425 = vpop.permute.xlu0 %2424
        %2427 = vset.pattern.permute.xlu0 1
        %2428 = vperm.xlu0 %2427, %v1837
        %v2429 = vpop.permute.xlu0 %2428
        %2431 = vset.pattern.permute.xlu0 1
        %2432 = vperm.xlu0 %2431, %v1838
        %v2433 = vpop.permute.xlu0 %2432
        %2435 = vset.pattern.permute.xlu0 1
        %2436 = vperm.xlu0 %2435, %v1839
        %v2437 = vpop.permute.xlu0 %2436
        %2439 = vset.pattern.permute.xlu0 1
        %2440 = vperm.xlu0 %2439, %v1840
        %v2441 = vpop.permute.xlu0 %2440
        %2443 = vset.pattern.permute.xlu0 1
        %2444 = vperm.xlu0 %2443, %v1841
        %v2445 = vpop.permute.xlu0 %2444
        %2447 = vset.pattern.permute.xlu0 1
        %2448 = vperm.xlu0 %2447, %v1842
        %v2449 = vpop.permute.xlu0 %2448
        %2451 = vset.pattern.permute.xlu0 1
        %2452 = vperm.xlu0 %2451, %v1843
        %v2453 = vpop.permute.xlu0 %2452
        %2455 = vset.pattern.permute.xlu0 1
        %2456 = vperm.xlu0 %2455, %v1844
        %v2457 = vpop.permute.xlu0 %2456
        %2459 = vset.pattern.permute.xlu0 1
        %2460 = vperm.xlu0 %2459, %v1845
        %v2461 = vpop.permute.xlu0 %2460
        %2463 = vset.pattern.permute.xlu0 1
        %2464 = vperm.xlu0 %2463, %v1846
        %v2465 = vpop.permute.xlu0 %2464
        %2467 = vset.pattern.permute.xlu0 1
        %2468 = vperm.xlu0 %2467, %v1847
        %v2469 = vpop.permute.xlu0 %2468
        %2471 = vset.pattern.permute.xlu0 1
        %2472 = vperm.xlu0 %2471, %v1848
        %v2473 = vpop.permute.xlu0 %2472
        %2475 = vset.pattern.permute.xlu0 1
        %2476 = vperm.xlu0 %2475, %v1849
        %v2477 = vpop.permute.xlu0 %2476
        %2479 = vset.pattern.permute.xlu0 1
        %2480 = vperm.xlu0 %2479, %v1850
        %v2481 = vpop.permute.xlu0 %2480
        %2483 = vset.pattern.permute.xlu0 1
        %2484 = vperm.xlu0 %2483, %v1851
        %v2485 = vpop.permute.xlu0 %2484
        %2487 = vset.pattern.permute.xlu0 1
        %2488 = vperm.xlu0 %2487, %v1852
        %v2489 = vpop.permute.xlu0 %2488
        %2491 = vset.pattern.permute.xlu0 1
        %2492 = vperm.xlu0 %2491, %v1853
        %v2493 = vpop.permute.xlu0 %2492
        %2495 = vset.pattern.permute.xlu0 1
        %2496 = vperm.xlu0 %2495, %v1854
        %v2497 = vpop.permute.xlu0 %2496
        %2499 = vset.pattern.permute.xlu0 1
        %2500 = vperm.xlu0 %2499, %v1855
        %v2501 = vpop.permute.xlu0 %2500
        %2503 = vset.pattern.permute.xlu0 1
        %2504 = vperm.xlu0 %2503, %v1856
        %v2505 = vpop.permute.xlu0 %2504
        %2507 = vset.pattern.permute.xlu0 1
        %2508 = vperm.xlu0 %2507, %v1857
        %v2509 = vpop.permute.xlu0 %2508
        %2511 = vset.pattern.permute.xlu0 1
        %2512 = vperm.xlu0 %2511, %v1858
        %v2513 = vpop.permute.xlu0 %2512
        %2515 = vset.pattern.permute.xlu0 1
        %2516 = vperm.xlu0 %2515, %v1859
        %v2517 = vpop.permute.xlu0 %2516
        %2519 = vset.pattern.permute.xlu0 1
        %2520 = vperm.xlu0 %2519, %v1860
        %v2521 = vpop.permute.xlu0 %2520
        %2523 = vset.pattern.permute.xlu0 1
        %2524 = vperm.xlu0 %2523, %v1861
        %v2525 = vpop.permute.xlu0 %2524
        %2527 = vset.pattern.permute.xlu0 1
        %2528 = vperm.xlu0 %2527, %v1862
        %v2529 = vpop.permute.xlu0 %2528
        %2531 = vset.pattern.permute.xlu0 1
        %2532 = vperm.xlu0 %2531, %v1863
        %v2533 = vpop.permute.xlu0 %2532
        %2535 = vset.pattern.permute.xlu0 1
        %2536 = vperm.xlu0 %2535, %v1864
        %v2537 = vpop.permute.xlu0 %2536
        %2539 = vset.pattern.permute.xlu0 1
        %2540 = vperm.xlu0 %2539, %v1865
        %v2541 = vpop.permute.xlu0 %2540
        %2543 = vset.pattern.permute.xlu0 1
        %2544 = vperm.xlu0 %2543, %v1866
        %v2545 = vpop.permute.xlu0 %2544
        %2547 = vset.pattern.permute.xlu0 1
        %2548 = vperm.xlu0 %2547, %v1867
        %v2549 = vpop.permute.xlu0 %2548
        %2551 = vset.pattern.permute.xlu0 1
        %2552 = vperm.xlu0 %2551, %v1868
        %v2553 = vpop.permute.xlu0 %2552
        %2555 = vset.pattern.permute.xlu0 1
        %2556 = vperm.xlu0 %2555, %v1869
        %v2557 = vpop.permute.xlu0 %2556
        %2559 = vset.pattern.permute.xlu0 1
        %2560 = vperm.xlu0 %2559, %v1870
        %v2561 = vpop.permute.xlu0 %2560
        %2563 = vset.pattern.permute.xlu0 1
        %2564 = vperm.xlu0 %2563, %v1871
        %v2565 = vpop.permute.xlu0 %2564
        %2567 = vset.pattern.permute.xlu0 1
        %2568 = vperm.xlu0 %2567, %v1872
        %v2569 = vpop.permute.xlu0 %2568
        %2571 = vset.pattern.permute.xlu0 1
        %2572 = vperm.xlu0 %2571, %v1873
        %v2573 = vpop.permute.xlu0 %2572
        %2575 = vset.pattern.permute.xlu0 1
        %2576 = vperm.xlu0 %2575, %v1874
        %v2577 = vpop.permute.xlu0 %2576
        %v2579 = vmul.f32 %v2325, %v1618
        %v2580 = vmul.f32 %v2329, %v1618
        %v2581 = vmul.f32 %v2333, %v1618
        %v2582 = vmul.f32 %v2337, %v1618
        %v2583 = vmul.f32 %v2341, %v1618
        %v2584 = vmul.f32 %v2345, %v1618
        %v2585 = vmul.f32 %v2349, %v1618
        %v2586 = vmul.f32 %v2353, %v1618
        %v2587 = vmul.f32 %v2357, %v1618
        %v2588 = vmul.f32 %v2361, %v1618
        %v2589 = vmul.f32 %v2365, %v1618
        %v2590 = vmul.f32 %v2369, %v1618
        %v2591 = vmul.f32 %v2373, %v1618
        %v2592 = vmul.f32 %v2377, %v1618
        %v2593 = vmul.f32 %v2381, %v1618
        %v2594 = vmul.f32 %v2385, %v1618
        %v2595 = vmul.f32 %v2389, %v1618
        %v2596 = vmul.f32 %v2393, %v1618
        %v2597 = vmul.f32 %v2397, %v1618
        %v2598 = vmul.f32 %v2401, %v1618
        %v2599 = vmul.f32 %v2405, %v1618
        %v2600 = vmul.f32 %v2409, %v1618
        %v2601 = vmul.f32 %v2413, %v1618
        %v2602 = vmul.f32 %v2417, %v1618
        %v2603 = vmul.f32 %v2421, %v1618
        %v2604 = vmul.f32 %v2425, %v1618
        %v2605 = vmul.f32 %v2429, %v1618
        %v2606 = vmul.f32 %v2433, %v1618
        %v2607 = vmul.f32 %v2437, %v1618
        %v2608 = vmul.f32 %v2441, %v1618
        %v2609 = vmul.f32 %v2445, %v1618
        %v2610 = vmul.f32 %v2449, %v1618
        %v2611 = vmul.f32 %v2453, %v1618
        %v2612 = vmul.f32 %v2457, %v1618
        %v2613 = vmul.f32 %v2461, %v1618
        %v2614 = vmul.f32 %v2465, %v1618
        %v2615 = vmul.f32 %v2469, %v1618
        %v2616 = vmul.f32 %v2473, %v1618
        %v2617 = vmul.f32 %v2477, %v1618
        %v2618 = vmul.f32 %v2481, %v1618
        %v2619 = vmul.f32 %v2485, %v1618
        %v2620 = vmul.f32 %v2489, %v1618
        %v2621 = vmul.f32 %v2493, %v1618
        %v2622 = vmul.f32 %v2497, %v1618
        %v2623 = vmul.f32 %v2501, %v1618
        %v2624 = vmul.f32 %v2505, %v1618
        %v2625 = vmul.f32 %v2509, %v1618
        %v2626 = vmul.f32 %v2513, %v1618
        %v2627 = vmul.f32 %v2517, %v1618
        %v2628 = vmul.f32 %v2521, %v1618
        %v2629 = vmul.f32 %v2525, %v1618
        %v2630 = vmul.f32 %v2529, %v1618
        %v2631 = vmul.f32 %v2533, %v1618
        %v2632 = vmul.f32 %v2537, %v1618
        %v2633 = vmul.f32 %v2541, %v1618
        %v2634 = vmul.f32 %v2545, %v1618
        %v2635 = vmul.f32 %v2549, %v1618
        %v2636 = vmul.f32 %v2553, %v1618
        %v2637 = vmul.f32 %v2557, %v1618
        %v2638 = vmul.f32 %v2561, %v1618
        %v2639 = vmul.f32 %v2565, %v1618
        %v2640 = vmul.f32 %v2569, %v1618
        %v2641 = vmul.f32 %v2573, %v1618
        %v2642 = vmul.f32 %v2577, %v1618
        %v2643 = vadd.f32 %v2259, %v2579
        %v2644 = vadd.f32 %v2260, %v2580
        %v2645 = vadd.f32 %v2261, %v2581
        %v2646 = vadd.f32 %v2262, %v2582
        %v2647 = vadd.f32 %v2263, %v2583
        %v2648 = vadd.f32 %v2264, %v2584
        %v2649 = vadd.f32 %v2265, %v2585
        %v2650 = vadd.f32 %v2266, %v2586
        %v2651 = vadd.f32 %v2267, %v2587
        %v2652 = vadd.f32 %v2268, %v2588
        %v2653 = vadd.f32 %v2269, %v2589
        %v2654 = vadd.f32 %v2270, %v2590
        %v2655 = vadd.f32 %v2271, %v2591
        %v2656 = vadd.f32 %v2272, %v2592
        %v2657 = vadd.f32 %v2273, %v2593
        %v2658 = vadd.f32 %v2274, %v2594
        %v2659 = vadd.f32 %v2275, %v2595
        %v2660 = vadd.f32 %v2276, %v2596
        %v2661 = vadd.f32 %v2277, %v2597
        %v2662 = vadd.f32 %v2278, %v2598
        %v2663 = vadd.f32 %v2279, %v2599
        %v2664 = vadd.f32 %v2280, %v2600
        %v2665 = vadd.f32 %v2281, %v2601
        %v2666 = vadd.f32 %v2282, %v2602
        %v2667 = vadd.f32 %v2283, %v2603
        %v2668 = vadd.f32 %v2284, %v2604
        %v2669 = vadd.f32 %v2285, %v2605
        %v2670 = vadd.f32 %v2286, %v2606
        %v2671 = vadd.f32 %v2287, %v2607
        %v2672 = vadd.f32 %v2288, %v2608
        %v2673 = vadd.f32 %v2289, %v2609
        %v2674 = vadd.f32 %v2290, %v2610
        %v2675 = vadd.f32 %v2291, %v2611
        %v2676 = vadd.f32 %v2292, %v2612
        %v2677 = vadd.f32 %v2293, %v2613
        %v2678 = vadd.f32 %v2294, %v2614
        %v2679 = vadd.f32 %v2295, %v2615
        %v2680 = vadd.f32 %v2296, %v2616
        %v2681 = vadd.f32 %v2297, %v2617
        %v2682 = vadd.f32 %v2298, %v2618
        %v2683 = vadd.f32 %v2299, %v2619
        %v2684 = vadd.f32 %v2300, %v2620
        %v2685 = vadd.f32 %v2301, %v2621
        %v2686 = vadd.f32 %v2302, %v2622
        %v2687 = vadd.f32 %v2303, %v2623
        %v2688 = vadd.f32 %v2304, %v2624
        %v2689 = vadd.f32 %v2305, %v2625
        %v2690 = vadd.f32 %v2306, %v2626
        %v2691 = vadd.f32 %v2307, %v2627
        %v2692 = vadd.f32 %v2308, %v2628
        %v2693 = vadd.f32 %v2309, %v2629
        %v2694 = vadd.f32 %v2310, %v2630
        %v2695 = vadd.f32 %v2311, %v2631
        %v2696 = vadd.f32 %v2312, %v2632
        %v2697 = vadd.f32 %v2313, %v2633
        %v2698 = vadd.f32 %v2314, %v2634
        %v2699 = vadd.f32 %v2315, %v2635
        %v2700 = vadd.f32 %v2316, %v2636
        %v2701 = vadd.f32 %v2317, %v2637
        %v2702 = vadd.f32 %v2318, %v2638
        %v2703 = vadd.f32 %v2319, %v2639
        %v2704 = vadd.f32 %v2320, %v2640
        %v2705 = vadd.f32 %v2321, %v2641
        %v2706 = vadd.f32 %v2322, %v2642
        %v2707 = vmax.f32 %v2643, 0.0
        %v2708 = vmax.f32 %v2644, 0.0
        %v2709 = vmax.f32 %v2645, 0.0
        %v2710 = vmax.f32 %v2646, 0.0
        %v2711 = vmax.f32 %v2647, 0.0
        %v2712 = vmax.f32 %v2648, 0.0
        %v2713 = vmax.f32 %v2649, 0.0
        %v2714 = vmax.f32 %v2650, 0.0
        %v2715 = vmax.f32 %v2651, 0.0
        %v2716 = vmax.f32 %v2652, 0.0
        %v2717 = vmax.f32 %v2653, 0.0
        %v2718 = vmax.f32 %v2654, 0.0
        %v2719 = vmax.f32 %v2655, 0.0
        %v2720 = vmax.f32 %v2656, 0.0
        %v2721 = vmax.f32 %v2657, 0.0
        %v2722 = vmax.f32 %v2658, 0.0
        %v2723 = vmax.f32 %v2659, 0.0
        %v2724 = vmax.f32 %v2660, 0.0
        %v2725 = vmax.f32 %v2661, 0.0
        %v2726 = vmax.f32 %v2662, 0.0
        %v2727 = vmax.f32 %v2663, 0.0
        %v2728 = vmax.f32 %v2664, 0.0
        %v2729 = vmax.f32 %v2665, 0.0
        %v2730 = vmax.f32 %v2666, 0.0
        %v2731 = vmax.f32 %v2667, 0.0
        %v2732 = vmax.f32 %v2668, 0.0
        %v2733 = vmax.f32 %v2669, 0.0
        %v2734 = vmax.f32 %v2670, 0.0
        %v2735 = vmax.f32 %v2671, 0.0
        %v2736 = vmax.f32 %v2672, 0.0
        %v2737 = vmax.f32 %v2673, 0.0
        %v2738 = vmax.f32 %v2674, 0.0
        %v2739 = vmax.f32 %v2675, 0.0
        %v2740 = vmax.f32 %v2676, 0.0
        %v2741 = vmax.f32 %v2677, 0.0
        %v2742 = vmax.f32 %v2678, 0.0
        %v2743 = vmax.f32 %v2679, 0.0
        %v2744 = vmax.f32 %v2680, 0.0
        %v2745 = vmax.f32 %v2681, 0.0
        %v2746 = vmax.f32 %v2682, 0.0
        %v2747 = vmax.f32 %v2683, 0.0
        %v2748 = vmax.f32 %v2684, 0.0
        %v2749 = vmax.f32 %v2685, 0.0
        %v2750 = vmax.f32 %v2686, 0.0
        %v2751 = vmax.f32 %v2687, 0.0
        %v2752 = vmax.f32 %v2688, 0.0
        %v2753 = vmax.f32 %v2689, 0.0
        %v2754 = vmax.f32 %v2690, 0.0
        %v2755 = vmax.f32 %v2691, 0.0
        %v2756 = vmax.f32 %v2692, 0.0
        %v2757 = vmax.f32 %v2693, 0.0
        %v2758 = vmax.f32 %v2694, 0.0
        %v2759 = vmax.f32 %v2695, 0.0
        %v2760 = vmax.f32 %v2696, 0.0
        %v2761 = vmax.f32 %v2697, 0.0
        %v2762 = vmax.f32 %v2698, 0.0
        %v2763 = vmax.f32 %v2699, 0.0
        %v2764 = vmax.f32 %v2700, 0.0
        %v2765 = vmax.f32 %v2701, 0.0
        %v2766 = vmax.f32 %v2702, 0.0
        %v2767 = vmax.f32 %v2703, 0.0
        %v2768 = vmax.f32 %v2704, 0.0
        %v2769 = vmax.f32 %v2705, 0.0
        %v2770 = vmax.f32 %v2706, 0.0
        %v2771 = vsub.f32 %v2715, %v2707
        %v2772 = vsub.f32 %v2716, %v2708
        %v2773 = vsub.f32 %v2717, %v2709
        %v2774 = vsub.f32 %v2718, %v2710
        %v2775 = vsub.f32 %v2719, %v2711
        %v2776 = vsub.f32 %v2720, %v2712
        %v2777 = vsub.f32 %v2721, %v2713
        %v2778 = vsub.f32 %v2722, %v2714
        %v2779 = vsub.f32 %v2747, %v2739
        %v2780 = vsub.f32 %v2748, %v2740
        %v2781 = vsub.f32 %v2749, %v2741
        %v2782 = vsub.f32 %v2750, %v2742
        %v2783 = vsub.f32 %v2751, %v2743
        %v2784 = vsub.f32 %v2752, %v2744
        %v2785 = vsub.f32 %v2753, %v2745
        %v2786 = vsub.f32 %v2754, %v2746
        %v2787 = vsub.f32 %v2723, %v2707
        %v2788 = vsub.f32 %v2724, %v2708
        %v2789 = vsub.f32 %v2725, %v2709
        %v2790 = vsub.f32 %v2726, %v2710
        %v2791 = vsub.f32 %v2727, %v2711
        %v2792 = vsub.f32 %v2728, %v2712
        %v2793 = vsub.f32 %v2729, %v2713
        %v2794 = vsub.f32 %v2730, %v2714
        %v2795 = vsub.f32 %v2755, %v2739
        %v2796 = vsub.f32 %v2756, %v2740
        %v2797 = vsub.f32 %v2757, %v2741
        %v2798 = vsub.f32 %v2758, %v2742
        %v2799 = vsub.f32 %v2759, %v2743
        %v2800 = vsub.f32 %v2760, %v2744
        %v2801 = vsub.f32 %v2761, %v2745
        %v2802 = vsub.f32 %v2762, %v2746
        %v2803 = vsub.f32 %v2731, %v2707
        %v2804 = vsub.f32 %v2732, %v2708
        %v2805 = vsub.f32 %v2733, %v2709
        %v2806 = vsub.f32 %v2734, %v2710
        %v2807 = vsub.f32 %v2735, %v2711
        %v2808 = vsub.f32 %v2736, %v2712
        %v2809 = vsub.f32 %v2737, %v2713
        %v2810 = vsub.f32 %v2738, %v2714
        %v2811 = vsub.f32 %v2763, %v2739
        %v2812 = vsub.f32 %v2764, %v2740
        %v2813 = vsub.f32 %v2765, %v2741
        %v2814 = vsub.f32 %v2766, %v2742
        %v2815 = vsub.f32 %v2767, %v2743
        %v2816 = vsub.f32 %v2768, %v2744
        %v2817 = vsub.f32 %v2769, %v2745
        %v2818 = vsub.f32 %v2770, %v2746
        %v2819 = vadd.f32 %v2707, %v2771
        %v2820 = vadd.f32 %v2708, %v2772
        %v2821 = vadd.f32 %v2709, %v2773
        %v2822 = vadd.f32 %v2710, %v2774
        %v2823 = vadd.f32 %v2711, %v2775
        %v2824 = vadd.f32 %v2712, %v2776
        %v2825 = vadd.f32 %v2713, %v2777
        %v2826 = vadd.f32 %v2714, %v2778
        %v2827 = vadd.f32 %v2739, %v2779
        %v2828 = vadd.f32 %v2740, %v2780
        %v2829 = vadd.f32 %v2741, %v2781
        %v2830 = vadd.f32 %v2742, %v2782
        %v2831 = vadd.f32 %v2743, %v2783
        %v2832 = vadd.f32 %v2744, %v2784
        %v2833 = vadd.f32 %v2745, %v2785
        %v2834 = vadd.f32 %v2746, %v2786
        %v2835 = vadd.f32 %v2819, %v2787
        %v2836 = vadd.f32 %v2820, %v2788
        %v2837 = vadd.f32 %v2821, %v2789
        %v2838 = vadd.f32 %v2822, %v2790
        %v2839 = vadd.f32 %v2823, %v2791
        %v2840 = vadd.f32 %v2824, %v2792
        %v2841 = vadd.f32 %v2825, %v2793
        %v2842 = vadd.f32 %v2826, %v2794
        %v2843 = vadd.f32 %v2827, %v2795
        %v2844 = vadd.f32 %v2828, %v2796
        %v2845 = vadd.f32 %v2829, %v2797
        %v2846 = vadd.f32 %v2830, %v2798
        %v2847 = vadd.f32 %v2831, %v2799
        %v2848 = vadd.f32 %v2832, %v2800
        %v2849 = vadd.f32 %v2833, %v2801
        %v2850 = vadd.f32 %v2834, %v2802
        %v2851 = vadd.f32 %v2835, %v2803
        %v2852 = vadd.f32 %v2836, %v2804
        %v2853 = vadd.f32 %v2837, %v2805
        %v2854 = vadd.f32 %v2838, %v2806
        %v2855 = vadd.f32 %v2839, %v2807
        %v2856 = vadd.f32 %v2840, %v2808
        %v2857 = vadd.f32 %v2841, %v2809
        %v2858 = vadd.f32 %v2842, %v2810
        %v2859 = vadd.f32 %v2843, %v2811
        %v2860 = vadd.f32 %v2844, %v2812
        %v2861 = vadd.f32 %v2845, %v2813
        %v2862 = vadd.f32 %v2846, %v2814
        %v2863 = vadd.f32 %v2847, %v2815
        %v2864 = vadd.f32 %v2848, %v2816
        %v2865 = vadd.f32 %v2849, %v2817
        %v2866 = vadd.f32 %v2850, %v2818
        %vm2867 = vcmask 261120
        %v2868 = vsel %vm2867, %v2851, 0.0
        %v2869 = vsel %vm2867, %v2852, 0.0
        %v2870 = vadd.f32 %v2868, %v2869
        %v2871 = vsel %vm2867, %v2853, 0.0
        %v2872 = vadd.f32 %v2870, %v2871
        %v2873 = vsel %vm2867, %v2854, 0.0
        %v2874 = vadd.f32 %v2872, %v2873
        %v2875 = vsel %vm2867, %v2855, 0.0
        %v2876 = vadd.f32 %v2874, %v2875
        %v2877 = vsel %vm2867, %v2856, 0.0
        %v2878 = vadd.f32 %v2876, %v2877
        %v2879 = vsel %vm2867, %v2857, 0.0
        %v2880 = vadd.f32 %v2878, %v2879
        %v2881 = vsel %vm2867, %v2858, 0.0
        %v2882 = vadd.f32 %v2880, %v2881
        %v2883 = vrot.slane %v2882, 4
        %v2884 = vadd.f32 %v2882, %v2883
        %v2885 = vrot.slane %v2884, 2
        %v2886 = vadd.f32 %v2884, %v2885
        %v2887 = vrot.slane %v2886, 1
        %v2888 = vadd.f32 %v2886, %v2887
        %v2889 = vsel %vm2867, %v2859, 0.0
        %v2890 = vsel %vm2867, %v2860, 0.0
        %v2891 = vadd.f32 %v2889, %v2890
        %v2892 = vsel %vm2867, %v2861, 0.0
        %v2893 = vadd.f32 %v2891, %v2892
        %v2894 = vsel %vm2867, %v2862, 0.0
        %v2895 = vadd.f32 %v2893, %v2894
        %v2896 = vsel %vm2867, %v2863, 0.0
        %v2897 = vadd.f32 %v2895, %v2896
        %v2898 = vsel %vm2867, %v2864, 0.0
        %v2899 = vadd.f32 %v2897, %v2898
        %v2900 = vsel %vm2867, %v2865, 0.0
        %v2901 = vadd.f32 %v2899, %v2900
        %v2902 = vsel %vm2867, %v2866, 0.0
        %v2903 = vadd.f32 %v2901, %v2902
        %v2904 = vrot.slane %v2903, 4
        %v2905 = vadd.f32 %v2903, %v2904
        %v2906 = vrot.slane %v2905, 2
        %v2907 = vadd.f32 %v2905, %v2906
        %v2908 = vrot.slane %v2907, 1
        %v2909 = vadd.f32 %v2907, %v2908
        %v2910 = vrcp.pop 64.0
        %v2911 = vmul.f32 64.0, %v2910
        %v2912 = vsub.f32 1.0, %v2911
        %v2913 = vmul.f32 %v2910, %v2912
        %v2914 = vadd.f32 %v2910, %v2913
        %vm2915 = vweird.f32 %v2910
        %v2916 = vsel %vm2915, %v2910, %v2914
        %v2917 = vmul.f32 %v2888, %v2916
        %v2918 = vmul.f32 %v2909, %v2916
        %v2919 = vld [vmem:[%s807] sm:$0xff]
        %v2920 = vld [vmem:[%s807 + $0x8] sm:$0xff]
        %v2921 = vld [vmem:[%s807 + $0x10] sm:$0xff]
        %v2922 = vld [vmem:[%s807 + $0x18] sm:$0xff]
        %v2923 = vld [vmem:[%s810] sm:$0x1]
        %v2925 = vperm.slane %v2923, 0
        %vm2929 = vcmask 1041409
        %v2930 = vsel %vm2929, %v2918, %v2917
        %v2931 = vsel %vm2867, %v2930, 0
        %2933 = vmatpush.msra.mxu0 0.0
        %2934 = vmatpush.msra.mxu0 0.0
        %2935 = vmatpush.msra.mxu0 0.0
        %2936 = vmatpush.msra.mxu0 0.0
        %2937 = vmatpush.msra.mxu0 0.0
        %2938 = vmatpush.msra.mxu0 0.0
        %2939 = vmatpush.msra.mxu0 0.0
        %2940 = vmatpush.msra.mxu0 0.0
        %2941 = vmatpush.msra.mxu0 0.0
        %2942 = vmatpush.msra.mxu0 0.0
        %2943 = vmatpush.msra.mxu0 0.0
        %2944 = vmatpush.msra.mxu0 0.0
        %2945 = vmatpush.msra.mxu0 %v2922
        %2946 = vmatpush.msra.mxu0 %v2921
        %2947 = vmatpush.msra.mxu0 %v2920
        %2948 = vmatpush.msra.mxu0 %v2919
        %2949 = vmatmul.f32.gmra.mxu0 %v2931
        %v2950 = vpop.f32.mrf.mxu0
        %v2951 = vadd.f32 %v2925, %v2950
        %2952 = vdwg.mxu0
        %v2953 = vmax.f32 %v2951, 0.0
        %v2954 = vld [vmem:[%s814] sm:$0x3]
        %v2955 = vld [vmem:[%s817] sm:$0x1]
        %v2957 = vperm.slane %v2955, 0
        %vm2959 = vcmask 15360
        %v2961 = vsel %vm2959, %v2953, 0
        %vm2963 = vcmask 1041408
        %v2965 = vsel %vm2963, %v2954, 0
        %2967 = vmatpush.msra.mxu0 0.0
        %2968 = vmatpush.msra.mxu0 0.0
        %2969 = vmatpush.msra.mxu0 0.0
        %2970 = vmatpush.msra.mxu0 0.0
        %2971 = vmatpush.msra.mxu0 0.0
        %2972 = vmatpush.msra.mxu0 0.0
        %2973 = vmatpush.msra.mxu0 0.0
        %2974 = vmatpush.msra.mxu0 0.0
        %2975 = vmatpush.msra.mxu0 0.0
        %2976 = vmatpush.msra.mxu0 0.0
        %2977 = vmatpush.msra.mxu0 0.0
        %2978 = vmatpush.msra.mxu0 0.0
        %2979 = vmatpush.msra.mxu0 0.0
        %2980 = vmatpush.msra.mxu0 0.0
        %2981 = vmatpush.msra.mxu0 0.0
        %2982 = vmatpush.msra.mxu0 %v2965
        %2983 = vmatmul.f32.gmra.mxu0 %v2961
        %v2984 = vpop.f32.mrf.mxu0
        %v2985 = vadd.f32 %v2957, %v2984
        %2986 = vdwg.mxu0
        %v2987 = vxor.u32 %v2985, 2147483648
        %v2988 = vmul.f32 %v2987, 1.442695
        %v2989 = vpow.pop %v2988
        %v2990 = vadd.f32 %v2989, 1.0
        %v2991 = vrcp.pop %v2990
        %v2992 = vmul.f32 %v2990, %v2991
        %v2993 = vsub.f32 1.0, %v2992
        %v2994 = vmul.f32 %v2991, %v2993
        %v2995 = vadd.f32 %v2991, %v2994
        %vm2996 = vweird.f32 %v2990
        %vm2997 = vweird.f32 %v2991
        %vm2998 = vmor %vm2996, %vm2997
        %v2999 = vsel %vm2998, %v2991, %v2995
        %v3000 = vand.u32 2147483647, %v2990
        %vm3001 = vcmp.eq.f32.partialorder %v3000, 8.507059e+37
        %v3002 = vand.u32 %v2990, 2147483648
        %v3003 = vor.u32 1.1754944e-38, %v3002
        %v3004 = vsel %vm3001, %v3003, %v2999
        %v3005 = vmul.f32 1.0, %v3004
        %v3006 = vadd.f32 %v2771, %v2787
        %v3007 = vadd.f32 %v2772, %v2788
        %v3008 = vadd.f32 %v2773, %v2789
        %v3009 = vadd.f32 %v2774, %v2790
        %v3010 = vadd.f32 %v2775, %v2791
        %v3011 = vadd.f32 %v2776, %v2792
        %v3012 = vadd.f32 %v2777, %v2793
        %v3013 = vadd.f32 %v2778, %v2794
        %v3014 = vadd.f32 %v2779, %v2795
        %v3015 = vadd.f32 %v2780, %v2796
        %v3016 = vadd.f32 %v2781, %v2797
        %v3017 = vadd.f32 %v2782, %v2798
        %v3018 = vadd.f32 %v2783, %v2799
        %v3019 = vadd.f32 %v2784, %v2800
        %v3020 = vadd.f32 %v2785, %v2801
        %v3021 = vadd.f32 %v2786, %v2802
        %v3022 = vadd.f32 %v3006, %v2803
        %v3023 = vadd.f32 %v3007, %v2804
        %v3024 = vadd.f32 %v3008, %v2805
        %v3025 = vadd.f32 %v3009, %v2806
        %v3026 = vadd.f32 %v3010, %v2807
        %v3027 = vadd.f32 %v3011, %v2808
        %v3028 = vadd.f32 %v3012, %v2809
        %v3029 = vadd.f32 %v3013, %v2810
        %v3030 = vadd.f32 %v3014, %v2811
        %v3031 = vadd.f32 %v3015, %v2812
        %v3032 = vadd.f32 %v3016, %v2813
        %v3033 = vadd.f32 %v3017, %v2814
        %v3034 = vadd.f32 %v3018, %v2815
        %v3035 = vadd.f32 %v3019, %v2816
        %v3036 = vadd.f32 %v3020, %v2817
        %v3037 = vadd.f32 %v3021, %v2818
        %v3038 = vsel %vm2867, %v3022, 0.0
        %3039 = vadd.xlane.f32.xlu0 %v3038
        %v3040 = vpop.xlane.xlu0 %3039
        %v3041 = vsel %vm2867, %v3023, 0.0
        %3042 = vadd.xlane.f32.xlu0 %v3041
        %v3043 = vpop.xlane.xlu0 %3042
        %v3044 = vsel %vm2867, %v3024, 0.0
        %3045 = vadd.xlane.f32.xlu0 %v3044
        %v3046 = vpop.xlane.xlu0 %3045
        %v3047 = vsel %vm2867, %v3025, 0.0
        %3048 = vadd.xlane.f32.xlu0 %v3047
        %v3049 = vpop.xlane.xlu0 %3048
        %v3050 = vsel %vm2867, %v3026, 0.0
        %3051 = vadd.xlane.f32.xlu0 %v3050
        %v3052 = vpop.xlane.xlu0 %3051
        %v3053 = vsel %vm2867, %v3027, 0.0
        %3054 = vadd.xlane.f32.xlu0 %v3053
        %v3055 = vpop.xlane.xlu0 %3054
        %v3056 = vsel %vm2867, %v3028, 0.0
        %3057 = vadd.xlane.f32.xlu0 %v3056
        %v3058 = vpop.xlane.xlu0 %3057
        %v3059 = vsel %vm2867, %v3029, 0.0
        %3060 = vadd.xlane.f32.xlu0 %v3059
        %v3061 = vpop.xlane.xlu0 %3060
        %v3062 = vsel %vm2867, %v3030, 0.0
        %3063 = vadd.xlane.f32.xlu0 %v3062
        %v3064 = vpop.xlane.xlu0 %3063
        %v3065 = vsel %vm2867, %v3031, 0.0
        %3066 = vadd.xlane.f32.xlu0 %v3065
        %v3067 = vpop.xlane.xlu0 %3066
        %v3068 = vsel %vm2867, %v3032, 0.0
        %3069 = vadd.xlane.f32.xlu0 %v3068
        %v3070 = vpop.xlane.xlu0 %3069
        %v3071 = vsel %vm2867, %v3033, 0.0
        %3072 = vadd.xlane.f32.xlu0 %v3071
        %v3073 = vpop.xlane.xlu0 %3072
        %v3074 = vsel %vm2867, %v3034, 0.0
        %3075 = vadd.xlane.f32.xlu0 %v3074
        %v3076 = vpop.xlane.xlu0 %3075
        %v3077 = vsel %vm2867, %v3035, 0.0
        %3078 = vadd.xlane.f32.xlu0 %v3077
        %v3079 = vpop.xlane.xlu0 %3078
        %v3080 = vsel %vm2867, %v3036, 0.0
        %3081 = vadd.xlane.f32.xlu0 %v3080
        %v3082 = vpop.xlane.xlu0 %3081
        %v3083 = vsel %vm2867, %v3037, 0.0
        %3084 = vadd.xlane.f32.xlu0 %v3083
        %v3085 = vpop.xlane.xlu0 %3084
        %v3086 = vrcp.pop 32.0
        %v3087 = vmul.f32 32.0, %v3086
        %v3088 = vsub.f32 1.0, %v3087
        %v3089 = vmul.f32 %v3086, %v3088
        %v3090 = vadd.f32 %v3086, %v3089
        %vm3091 = vweird.f32 %v3086
        %v3092 = vsel %vm3091, %v3086, %v3090
        %v3093 = vmul.f32 %v3040, %v3092
        %v3094 = vmul.f32 %v3043, %v3092
        %v3095 = vmul.f32 %v3046, %v3092
        %v3096 = vmul.f32 %v3049, %v3092
        %v3097 = vmul.f32 %v3052, %v3092
        %v3098 = vmul.f32 %v3055, %v3092
        %v3099 = vmul.f32 %v3058, %v3092
        %v3100 = vmul.f32 %v3061, %v3092
        %v3101 = vmul.f32 %v3064, %v3092
        %v3102 = vmul.f32 %v3067, %v3092
        %v3103 = vmul.f32 %v3070, %v3092
        %v3104 = vmul.f32 %v3073, %v3092
        %v3105 = vmul.f32 %v3076, %v3092
        %v3106 = vmul.f32 %v3079, %v3092
        %v3107 = vmul.f32 %v3082, %v3092
        %v3108 = vmul.f32 %v3085, %v3092
        %v3109 = vmul.f32 %v3093, 0.33333334
        %v3110 = vmul.f32 %v3094, 0.33333334
        %v3111 = vmul.f32 %v3095, 0.33333334
        %v3112 = vmul.f32 %v3096, 0.33333334
        %v3113 = vmul.f32 %v3097, 0.33333334
        %v3114 = vmul.f32 %v3098, 0.33333334
        %v3115 = vmul.f32 %v3099, 0.33333334
        %v3116 = vmul.f32 %v3100, 0.33333334
        %v3117 = vmul.f32 %v3101, 0.33333334
        %v3118 = vmul.f32 %v3102, 0.33333334
        %v3119 = vmul.f32 %v3103, 0.33333334
        %v3120 = vmul.f32 %v3104, 0.33333334
        %v3121 = vmul.f32 %v3105, 0.33333334
        %v3122 = vmul.f32 %v3106, 0.33333334
        %v3123 = vmul.f32 %v3107, 0.33333334
        %v3124 = vmul.f32 %v3108, 0.33333334
        %v3125 = vmax.f32 %v2771, %v2787
        %v3126 = vmax.f32 %v2772, %v2788
        %v3127 = vmax.f32 %v2773, %v2789
        %v3128 = vmax.f32 %v2774, %v2790
        %v3129 = vmax.f32 %v2775, %v2791
        %v3130 = vmax.f32 %v2776, %v2792
        %v3131 = vmax.f32 %v2777, %v2793
        %v3132 = vmax.f32 %v2778, %v2794
        %v3133 = vmax.f32 %v2779, %v2795
        %v3134 = vmax.f32 %v2780, %v2796
        %v3135 = vmax.f32 %v2781, %v2797
        %v3136 = vmax.f32 %v2782, %v2798
        %v3137 = vmax.f32 %v2783, %v2799
        %v3138 = vmax.f32 %v2784, %v2800
        %v3139 = vmax.f32 %v2785, %v2801
        %v3140 = vmax.f32 %v2786, %v2802
        %v3141 = vmax.f32 %v3125, %v2803
        %v3142 = vmax.f32 %v3126, %v2804
        %v3143 = vmax.f32 %v3127, %v2805
        %v3144 = vmax.f32 %v3128, %v2806
        %v3145 = vmax.f32 %v3129, %v2807
        %v3146 = vmax.f32 %v3130, %v2808
        %v3147 = vmax.f32 %v3131, %v2809
        %v3148 = vmax.f32 %v3132, %v2810
        %v3149 = vmax.f32 %v3133, %v2811
        %v3150 = vmax.f32 %v3134, %v2812
        %v3151 = vmax.f32 %v3135, %v2813
        %v3152 = vmax.f32 %v3136, %v2814
        %v3153 = vmax.f32 %v3137, %v2815
        %v3154 = vmax.f32 %v3138, %v2816
        %v3155 = vmax.f32 %v3139, %v2817
        %v3156 = vmax.f32 %v3140, %v2818
        %v3157 = vsel %vm2867, %v3141, -inf
        %3158 = vmax.xlane.f32.xlu0 %v3157
        %v3159 = vpop.xlane.xlu0 %3158
        %v3160 = vsel %vm2867, %v3142, -inf
        %3161 = vmax.xlane.f32.xlu0 %v3160
        %v3162 = vpop.xlane.xlu0 %3161
        %v3163 = vsel %vm2867, %v3143, -inf
        %3164 = vmax.xlane.f32.xlu0 %v3163
        %v3165 = vpop.xlane.xlu0 %3164
        %v3166 = vsel %vm2867, %v3144, -inf
        %3167 = vmax.xlane.f32.xlu0 %v3166
        %v3168 = vpop.xlane.xlu0 %3167
        %v3169 = vsel %vm2867, %v3145, -inf
        %3170 = vmax.xlane.f32.xlu0 %v3169
        %v3171 = vpop.xlane.xlu0 %3170
        %v3172 = vsel %vm2867, %v3146, -inf
        %3173 = vmax.xlane.f32.xlu0 %v3172
        %v3174 = vpop.xlane.xlu0 %3173
        %v3175 = vsel %vm2867, %v3147, -inf
        %3176 = vmax.xlane.f32.xlu0 %v3175
        %v3177 = vpop.xlane.xlu0 %3176
        %v3178 = vsel %vm2867, %v3148, -inf
        %3179 = vmax.xlane.f32.xlu0 %v3178
        %v3180 = vpop.xlane.xlu0 %3179
        %v3181 = vsel %vm2867, %v3149, -inf
        %3182 = vmax.xlane.f32.xlu0 %v3181
        %v3183 = vpop.xlane.xlu0 %3182
        %v3184 = vsel %vm2867, %v3150, -inf
        %3185 = vmax.xlane.f32.xlu0 %v3184
        %v3186 = vpop.xlane.xlu0 %3185
        %v3187 = vsel %vm2867, %v3151, -inf
        %3188 = vmax.xlane.f32.xlu0 %v3187
        %v3189 = vpop.xlane.xlu0 %3188
        %v3190 = vsel %vm2867, %v3152, -inf
        %3191 = vmax.xlane.f32.xlu0 %v3190
        %v3192 = vpop.xlane.xlu0 %3191
        %v3193 = vsel %vm2867, %v3153, -inf
        %3194 = vmax.xlane.f32.xlu0 %v3193
        %v3195 = vpop.xlane.xlu0 %3194
        %v3196 = vsel %vm2867, %v3154, -inf
        %3197 = vmax.xlane.f32.xlu0 %v3196
        %v3198 = vpop.xlane.xlu0 %3197
        %v3199 = vsel %vm2867, %v3155, -inf
        %3200 = vmax.xlane.f32.xlu0 %v3199
        %v3201 = vpop.xlane.xlu0 %3200
        %v3202 = vsel %vm2867, %v3156, -inf
        %3203 = vmax.xlane.f32.xlu0 %v3202
        %v3204 = vpop.xlane.xlu0 %3203
        %v3205 = vld [vmem:[%s821] sm:$0x1]
        %v3206 = vld [vmem:[%s821 + $0x1] sm:$0x1]
        %v3207 = vld [vmem:[%s821 + $0x2] sm:$0x1]
        %v3209 = vperm.slane %v3205, 0
        %3210 = vset.pattern.permute.xlu0 0
        %3211 = vperm.xlu0 %3210, %v3209
        %v3212 = vpop.permute.xlu0 %3211
        %v3214 = vmul.f32 %v3212, %v3109
        %v3215 = vmul.f32 %v3212, %v3110
        %v3216 = vmul.f32 %v3212, %v3111
        %v3217 = vmul.f32 %v3212, %v3112
        %v3218 = vmul.f32 %v3212, %v3113
        %v3219 = vmul.f32 %v3212, %v3114
        %v3220 = vmul.f32 %v3212, %v3115
        %v3221 = vmul.f32 %v3212, %v3116
        %v3222 = vmul.f32 %v3212, %v3117
        %v3223 = vmul.f32 %v3212, %v3118
        %v3224 = vmul.f32 %v3212, %v3119
        %v3225 = vmul.f32 %v3212, %v3120
        %v3226 = vmul.f32 %v3212, %v3121
        %v3227 = vmul.f32 %v3212, %v3122
        %v3228 = vmul.f32 %v3212, %v3123
        %v3229 = vmul.f32 %v3212, %v3124
        %v3231 = vperm.slane %v3206, 0
        %3232 = vset.pattern.permute.xlu0 0
        %3233 = vperm.xlu0 %3232, %v3231
        %v3234 = vpop.permute.xlu0 %3233
        %v3236 = vmul.f32 %v3234, %v3159
        %v3237 = vmul.f32 %v3234, %v3162
        %v3238 = vmul.f32 %v3234, %v3165
        %v3239 = vmul.f32 %v3234, %v3168
        %v3240 = vmul.f32 %v3234, %v3171
        %v3241 = vmul.f32 %v3234, %v3174
        %v3242 = vmul.f32 %v3234, %v3177
        %v3243 = vmul.f32 %v3234, %v3180
        %v3244 = vmul.f32 %v3234, %v3183
        %v3245 = vmul.f32 %v3234, %v3186
        %v3246 = vmul.f32 %v3234, %v3189
        %v3247 = vmul.f32 %v3234, %v3192
        %v3248 = vmul.f32 %v3234, %v3195
        %v3249 = vmul.f32 %v3234, %v3198
        %v3250 = vmul.f32 %v3234, %v3201
        %v3251 = vmul.f32 %v3234, %v3204
        %v3252 = vadd.f32 %v3214, %v3236
        %v3253 = vadd.f32 %v3215, %v3237
        %v3254 = vadd.f32 %v3216, %v3238
        %v3255 = vadd.f32 %v3217, %v3239
        %v3256 = vadd.f32 %v3218, %v3240
        %v3257 = vadd.f32 %v3219, %v3241
        %v3258 = vadd.f32 %v3220, %v3242
        %v3259 = vadd.f32 %v3221, %v3243
        %v3260 = vadd.f32 %v3222, %v3244
        %v3261 = vadd.f32 %v3223, %v3245
        %v3262 = vadd.f32 %v3224, %v3246
        %v3263 = vadd.f32 %v3225, %v3247
        %v3264 = vadd.f32 %v3226, %v3248
        %v3265 = vadd.f32 %v3227, %v3249
        %v3266 = vadd.f32 %v3228, %v3250
        %v3267 = vadd.f32 %v3229, %v3251
        %v3269 = vperm.slane %v3207, 0
        %3270 = vset.pattern.permute.xlu0 0
        %3271 = vperm.xlu0 %3270, %v3269
        %v3272 = vpop.permute.xlu0 %3271
        %v3274 = vadd.f32 %v3252, %v3272
        %v3275 = vadd.f32 %v3253, %v3272
        %v3276 = vadd.f32 %v3254, %v3272
        %v3277 = vadd.f32 %v3255, %v3272
        %v3278 = vadd.f32 %v3256, %v3272
        %v3279 = vadd.f32 %v3257, %v3272
        %v3280 = vadd.f32 %v3258, %v3272
        %v3281 = vadd.f32 %v3259, %v3272
        %v3282 = vadd.f32 %v3260, %v3272
        %v3283 = vadd.f32 %v3261, %v3272
        %v3284 = vadd.f32 %v3262, %v3272
        %v3285 = vadd.f32 %v3263, %v3272
        %v3286 = vadd.f32 %v3264, %v3272
        %v3287 = vadd.f32 %v3265, %v3272
        %v3288 = vadd.f32 %v3266, %v3272
        %v3289 = vadd.f32 %v3267, %v3272
        %v3290 = vxor.u32 %v3274, 2147483648
        %v3291 = vxor.u32 %v3275, 2147483648
        %v3292 = vxor.u32 %v3276, 2147483648
        %v3293 = vxor.u32 %v3277, 2147483648
        %v3294 = vxor.u32 %v3278, 2147483648
        %v3295 = vxor.u32 %v3279, 2147483648
        %v3296 = vxor.u32 %v3280, 2147483648
        %v3297 = vxor.u32 %v3281, 2147483648
        %v3298 = vxor.u32 %v3282, 2147483648
        %v3299 = vxor.u32 %v3283, 2147483648
        %v3300 = vxor.u32 %v3284, 2147483648
        %v3301 = vxor.u32 %v3285, 2147483648
        %v3302 = vxor.u32 %v3286, 2147483648
        %v3303 = vxor.u32 %v3287, 2147483648
        %v3304 = vxor.u32 %v3288, 2147483648
        %v3305 = vxor.u32 %v3289, 2147483648
        %v3306 = vmul.f32 %v3290, 1.442695
        %v3307 = vpow.pop %v3306
        %v3308 = vmul.f32 %v3291, 1.442695
        %v3309 = vpow.pop %v3308
        %v3310 = vmul.f32 %v3292, 1.442695
        %v3311 = vpow.pop %v3310
        %v3312 = vmul.f32 %v3293, 1.442695
        %v3313 = vpow.pop %v3312
        %v3314 = vmul.f32 %v3294, 1.442695
        %v3315 = vpow.pop %v3314
        %v3316 = vmul.f32 %v3295, 1.442695
        %v3317 = vpow.pop %v3316
        %v3318 = vmul.f32 %v3296, 1.442695
        %v3319 = vpow.pop %v3318
        %v3320 = vmul.f32 %v3297, 1.442695
        %v3321 = vpow.pop %v3320
        %v3322 = vmul.f32 %v3298, 1.442695
        %v3323 = vpow.pop %v3322
        %v3324 = vmul.f32 %v3299, 1.442695
        %v3325 = vpow.pop %v3324
        %v3326 = vmul.f32 %v3300, 1.442695
        %v3327 = vpow.pop %v3326
        %v3328 = vmul.f32 %v3301, 1.442695
        %v3329 = vpow.pop %v3328
        %v3330 = vmul.f32 %v3302, 1.442695
        %v3331 = vpow.pop %v3330
        %v3332 = vmul.f32 %v3303, 1.442695
        %v3333 = vpow.pop %v3332
        %v3334 = vmul.f32 %v3304, 1.442695
        %v3335 = vpow.pop %v3334
        %v3336 = vmul.f32 %v3305, 1.442695
        %v3337 = vpow.pop %v3336
        %v3338 = vadd.f32 %v3307, 1.0
        %v3339 = vadd.f32 %v3309, 1.0
        %v3340 = vadd.f32 %v3311, 1.0
        %v3341 = vadd.f32 %v3313, 1.0
        %v3342 = vadd.f32 %v3315, 1.0
        %v3343 = vadd.f32 %v3317, 1.0
        %v3344 = vadd.f32 %v3319, 1.0
        %v3345 = vadd.f32 %v3321, 1.0
        %v3346 = vadd.f32 %v3323, 1.0
        %v3347 = vadd.f32 %v3325, 1.0
        %v3348 = vadd.f32 %v3327, 1.0
        %v3349 = vadd.f32 %v3329, 1.0
        %v3350 = vadd.f32 %v3331, 1.0
        %v3351 = vadd.f32 %v3333, 1.0
        %v3352 = vadd.f32 %v3335, 1.0
        %v3353 = vadd.f32 %v3337, 1.0
        %v3354 = vrcp.pop %v3338
        %v3355 = vmul.f32 %v3338, %v3354
        %v3356 = vsub.f32 1.0, %v3355
        %v3357 = vmul.f32 %v3354, %v3356
        %v3358 = vadd.f32 %v3354, %v3357
        %vm3359 = vweird.f32 %v3338
        %vm3360 = vweird.f32 %v3354
        %vm3361 = vmor %vm3359, %vm3360
        %v3362 = vsel %vm3361, %v3354, %v3358
        %v3363 = vand.u32 2147483647, %v3338
        %vm3364 = vcmp.eq.f32.partialorder %v3363, 8.507059e+37
        %v3365 = vand.u32 %v3338, 2147483648
        %v3366 = vor.u32 1.1754944e-38, %v3365
        %v3367 = vsel %vm3364, %v3366, %v3362
        %v3368 = vmul.f32 1.0, %v3367
        %v3369 = vrcp.pop %v3339
        %v3370 = vmul.f32 %v3339, %v3369
        %v3371 = vsub.f32 1.0, %v3370
        %v3372 = vmul.f32 %v3369, %v3371
        %v3373 = vadd.f32 %v3369, %v3372
        %vm3374 = vweird.f32 %v3339
        %vm3375 = vweird.f32 %v3369
        %vm3376 = vmor %vm3374, %vm3375
        %v3377 = vsel %vm3376, %v3369, %v3373
        %v3378 = vand.u32 2147483647, %v3339
        %vm3379 = vcmp.eq.f32.partialorder %v3378, 8.507059e+37
        %v3380 = vand.u32 %v3339, 2147483648
        %v3381 = vor.u32 1.1754944e-38, %v3380
        %v3382 = vsel %vm3379, %v3381, %v3377
        %v3383 = vmul.f32 1.0, %v3382
        %v3384 = vrcp.pop %v3340
        %v3385 = vmul.f32 %v3340, %v3384
        %v3386 = vsub.f32 1.0, %v3385
        %v3387 = vmul.f32 %v3384, %v3386
        %v3388 = vadd.f32 %v3384, %v3387
        %vm3389 = vweird.f32 %v3340
        %vm3390 = vweird.f32 %v3384
        %vm3391 = vmor %vm3389, %vm3390
        %v3392 = vsel %vm3391, %v3384, %v3388
        %v3393 = vand.u32 2147483647, %v3340
        %vm3394 = vcmp.eq.f32.partialorder %v3393, 8.507059e+37
        %v3395 = vand.u32 %v3340, 2147483648
        %v3396 = vor.u32 1.1754944e-38, %v3395
        %v3397 = vsel %vm3394, %v3396, %v3392
        %v3398 = vmul.f32 1.0, %v3397
        %v3399 = vrcp.pop %v3341
        %v3400 = vmul.f32 %v3341, %v3399
        %v3401 = vsub.f32 1.0, %v3400
        %v3402 = vmul.f32 %v3399, %v3401
        %v3403 = vadd.f32 %v3399, %v3402
        %vm3404 = vweird.f32 %v3341
        %vm3405 = vweird.f32 %v3399
        %vm3406 = vmor %vm3404, %vm3405
        %v3407 = vsel %vm3406, %v3399, %v3403
        %v3408 = vand.u32 2147483647, %v3341
        %vm3409 = vcmp.eq.f32.partialorder %v3408, 8.507059e+37
        %v3410 = vand.u32 %v3341, 2147483648
        %v3411 = vor.u32 1.1754944e-38, %v3410
        %v3412 = vsel %vm3409, %v3411, %v3407
        %v3413 = vmul.f32 1.0, %v3412
        %v3414 = vrcp.pop %v3342
        %v3415 = vmul.f32 %v3342, %v3414
        %v3416 = vsub.f32 1.0, %v3415
        %v3417 = vmul.f32 %v3414, %v3416
        %v3418 = vadd.f32 %v3414, %v3417
        %vm3419 = vweird.f32 %v3342
        %vm3420 = vweird.f32 %v3414
        %vm3421 = vmor %vm3419, %vm3420
        %v3422 = vsel %vm3421, %v3414, %v3418
        %v3423 = vand.u32 2147483647, %v3342
        %vm3424 = vcmp.eq.f32.partialorder %v3423, 8.507059e+37
        %v3425 = vand.u32 %v3342, 2147483648
        %v3426 = vor.u32 1.1754944e-38, %v3425
        %v3427 = vsel %vm3424, %v3426, %v3422
        %v3428 = vmul.f32 1.0, %v3427
        %v3429 = vrcp.pop %v3343
        %v3430 = vmul.f32 %v3343, %v3429
        %v3431 = vsub.f32 1.0, %v3430
        %v3432 = vmul.f32 %v3429, %v3431
        %v3433 = vadd.f32 %v3429, %v3432
        %vm3434 = vweird.f32 %v3343
        %vm3435 = vweird.f32 %v3429
        %vm3436 = vmor %vm3434, %vm3435
        %v3437 = vsel %vm3436, %v3429, %v3433
        %v3438 = vand.u32 2147483647, %v3343
        %vm3439 = vcmp.eq.f32.partialorder %v3438, 8.507059e+37
        %v3440 = vand.u32 %v3343, 2147483648
        %v3441 = vor.u32 1.1754944e-38, %v3440
        %v3442 = vsel %vm3439, %v3441, %v3437
        %v3443 = vmul.f32 1.0, %v3442
        %v3444 = vrcp.pop %v3344
        %v3445 = vmul.f32 %v3344, %v3444
        %v3446 = vsub.f32 1.0, %v3445
        %v3447 = vmul.f32 %v3444, %v3446
        %v3448 = vadd.f32 %v3444, %v3447
        %vm3449 = vweird.f32 %v3344
        %vm3450 = vweird.f32 %v3444
        %vm3451 = vmor %vm3449, %vm3450
        %v3452 = vsel %vm3451, %v3444, %v3448
        %v3453 = vand.u32 2147483647, %v3344
        %vm3454 = vcmp.eq.f32.partialorder %v3453, 8.507059e+37
        %v3455 = vand.u32 %v3344, 2147483648
        %v3456 = vor.u32 1.1754944e-38, %v3455
        %v3457 = vsel %vm3454, %v3456, %v3452
        %v3458 = vmul.f32 1.0, %v3457
        %v3459 = vrcp.pop %v3345
        %v3460 = vmul.f32 %v3345, %v3459
        %v3461 = vsub.f32 1.0, %v3460
        %v3462 = vmul.f32 %v3459, %v3461
        %v3463 = vadd.f32 %v3459, %v3462
        %vm3464 = vweird.f32 %v3345
        %vm3465 = vweird.f32 %v3459
        %vm3466 = vmor %vm3464, %vm3465
        %v3467 = vsel %vm3466, %v3459, %v3463
        %v3468 = vand.u32 2147483647, %v3345
        %vm3469 = vcmp.eq.f32.partialorder %v3468, 8.507059e+37
        %v3470 = vand.u32 %v3345, 2147483648
        %v3471 = vor.u32 1.1754944e-38, %v3470
        %v3472 = vsel %vm3469, %v3471, %v3467
        %v3473 = vmul.f32 1.0, %v3472
        %v3474 = vrcp.pop %v3346
        %v3475 = vmul.f32 %v3346, %v3474
        %v3476 = vsub.f32 1.0, %v3475
        %v3477 = vmul.f32 %v3474, %v3476
        %v3478 = vadd.f32 %v3474, %v3477
        %vm3479 = vweird.f32 %v3346
        %vm3480 = vweird.f32 %v3474
        %vm3481 = vmor %vm3479, %vm3480
        %v3482 = vsel %vm3481, %v3474, %v3478
        %v3483 = vand.u32 2147483647, %v3346
        %vm3484 = vcmp.eq.f32.partialorder %v3483, 8.507059e+37
        %v3485 = vand.u32 %v3346, 2147483648
        %v3486 = vor.u32 1.1754944e-38, %v3485
        %v3487 = vsel %vm3484, %v3486, %v3482
        %v3488 = vmul.f32 1.0, %v3487
        %v3489 = vrcp.pop %v3347
        %v3490 = vmul.f32 %v3347, %v3489
        %v3491 = vsub.f32 1.0, %v3490
        %v3492 = vmul.f32 %v3489, %v3491
        %v3493 = vadd.f32 %v3489, %v3492
        %vm3494 = vweird.f32 %v3347
        %vm3495 = vweird.f32 %v3489
        %vm3496 = vmor %vm3494, %vm3495
        %v3497 = vsel %vm3496, %v3489, %v3493
        %v3498 = vand.u32 2147483647, %v3347
        %vm3499 = vcmp.eq.f32.partialorder %v3498, 8.507059e+37
        %v3500 = vand.u32 %v3347, 2147483648
        %v3501 = vor.u32 1.1754944e-38, %v3500
        %v3502 = vsel %vm3499, %v3501, %v3497
        %v3503 = vmul.f32 1.0, %v3502
        %v3504 = vrcp.pop %v3348
        %v3505 = vmul.f32 %v3348, %v3504
        %v3506 = vsub.f32 1.0, %v3505
        %v3507 = vmul.f32 %v3504, %v3506
        %v3508 = vadd.f32 %v3504, %v3507
        %vm3509 = vweird.f32 %v3348
        %vm3510 = vweird.f32 %v3504
        %vm3511 = vmor %vm3509, %vm3510
        %v3512 = vsel %vm3511, %v3504, %v3508
        %v3513 = vand.u32 2147483647, %v3348
        %vm3514 = vcmp.eq.f32.partialorder %v3513, 8.507059e+37
        %v3515 = vand.u32 %v3348, 2147483648
        %v3516 = vor.u32 1.1754944e-38, %v3515
        %v3517 = vsel %vm3514, %v3516, %v3512
        %v3518 = vmul.f32 1.0, %v3517
        %v3519 = vrcp.pop %v3349
        %v3520 = vmul.f32 %v3349, %v3519
        %v3521 = vsub.f32 1.0, %v3520
        %v3522 = vmul.f32 %v3519, %v3521
        %v3523 = vadd.f32 %v3519, %v3522
        %vm3524 = vweird.f32 %v3349
        %vm3525 = vweird.f32 %v3519
        %vm3526 = vmor %vm3524, %vm3525
        %v3527 = vsel %vm3526, %v3519, %v3523
        %v3528 = vand.u32 2147483647, %v3349
        %vm3529 = vcmp.eq.f32.partialorder %v3528, 8.507059e+37
        %v3530 = vand.u32 %v3349, 2147483648
        %v3531 = vor.u32 1.1754944e-38, %v3530
        %v3532 = vsel %vm3529, %v3531, %v3527
        %v3533 = vmul.f32 1.0, %v3532
        %v3534 = vrcp.pop %v3350
        %v3535 = vmul.f32 %v3350, %v3534
        %v3536 = vsub.f32 1.0, %v3535
        %v3537 = vmul.f32 %v3534, %v3536
        %v3538 = vadd.f32 %v3534, %v3537
        %vm3539 = vweird.f32 %v3350
        %vm3540 = vweird.f32 %v3534
        %vm3541 = vmor %vm3539, %vm3540
        %v3542 = vsel %vm3541, %v3534, %v3538
        %v3543 = vand.u32 2147483647, %v3350
        %vm3544 = vcmp.eq.f32.partialorder %v3543, 8.507059e+37
        %v3545 = vand.u32 %v3350, 2147483648
        %v3546 = vor.u32 1.1754944e-38, %v3545
        %v3547 = vsel %vm3544, %v3546, %v3542
        %v3548 = vmul.f32 1.0, %v3547
        %v3549 = vrcp.pop %v3351
        %v3550 = vmul.f32 %v3351, %v3549
        %v3551 = vsub.f32 1.0, %v3550
        %v3552 = vmul.f32 %v3549, %v3551
        %v3553 = vadd.f32 %v3549, %v3552
        %vm3554 = vweird.f32 %v3351
        %vm3555 = vweird.f32 %v3549
        %vm3556 = vmor %vm3554, %vm3555
        %v3557 = vsel %vm3556, %v3549, %v3553
        %v3558 = vand.u32 2147483647, %v3351
        %vm3559 = vcmp.eq.f32.partialorder %v3558, 8.507059e+37
        %v3560 = vand.u32 %v3351, 2147483648
        %v3561 = vor.u32 1.1754944e-38, %v3560
        %v3562 = vsel %vm3559, %v3561, %v3557
        %v3563 = vmul.f32 1.0, %v3562
        %v3564 = vrcp.pop %v3352
        %v3565 = vmul.f32 %v3352, %v3564
        %v3566 = vsub.f32 1.0, %v3565
        %v3567 = vmul.f32 %v3564, %v3566
        %v3568 = vadd.f32 %v3564, %v3567
        %vm3569 = vweird.f32 %v3352
        %vm3570 = vweird.f32 %v3564
        %vm3571 = vmor %vm3569, %vm3570
        %v3572 = vsel %vm3571, %v3564, %v3568
        %v3573 = vand.u32 2147483647, %v3352
        %vm3574 = vcmp.eq.f32.partialorder %v3573, 8.507059e+37
        %v3575 = vand.u32 %v3352, 2147483648
        %v3576 = vor.u32 1.1754944e-38, %v3575
        %v3577 = vsel %vm3574, %v3576, %v3572
        %v3578 = vmul.f32 1.0, %v3577
        %v3579 = vrcp.pop %v3353
        %v3580 = vmul.f32 %v3353, %v3579
        %v3581 = vsub.f32 1.0, %v3580
        %v3582 = vmul.f32 %v3579, %v3581
        %v3583 = vadd.f32 %v3579, %v3582
        %vm3584 = vweird.f32 %v3353
        %vm3585 = vweird.f32 %v3579
        %vm3586 = vmor %vm3584, %vm3585
        %v3587 = vsel %vm3586, %v3579, %v3583
        %v3588 = vand.u32 2147483647, %v3353
        %vm3589 = vcmp.eq.f32.partialorder %v3588, 8.507059e+37
        %v3590 = vand.u32 %v3353, 2147483648
        %v3591 = vor.u32 1.1754944e-38, %v3590
        %v3592 = vsel %vm3589, %v3591, %v3587
        %v3593 = vmul.f32 1.0, %v3592
        %v3594 = vld [vmem:[%s10] sm:$0xff]
        %v3595 = vld [vmem:[%s9] sm:$0xff]
        %v3596 = vld [vmem:[%s9 + $0x8] sm:$0xff]
        %v3605 = vlaneseq
        %v3606 = vand.u32 %v3605, 127
        %v3607 = vperm.slane %v3368, %v3606
        %v3608 = vperm.slane %v3383, %v3606
        %v3609 = vperm.slane %v3398, %v3606
        %v3610 = vperm.slane %v3413, %v3606
        %v3611 = vperm.slane %v3428, %v3606
        %v3612 = vperm.slane %v3443, %v3606
        %v3613 = vperm.slane %v3458, %v3606
        %v3614 = vperm.slane %v3473, %v3606
        %v3615 = vsel %vm2929, %v3608, %v3607
        %vm3616 = vcmask 1042434
        %v3617 = vsel %vm3616, %v3609, %v3615
        %vm3618 = vcmask 1043459
        %v3619 = vsel %vm3618, %v3610, %v3617
        %vm3620 = vcmask 1044484
        %v3621 = vsel %vm3620, %v3611, %v3619
        %vm3622 = vcmask 1045509
        %v3623 = vsel %vm3622, %v3612, %v3621
        %vm3624 = vcmask 1046534
        %v3625 = vsel %vm3624, %v3613, %v3623
        %vm3626 = vcmask 1047559
        %v3627 = vsel %vm3626, %v3614, %v3625
        %vm3628 = vcmask 64512
        %v3629 = vsel %vm3628, %v3627, 0
        %3631 = vmatpush.msra.mxu0 0.0
        %3632 = vmatpush.msra.mxu0 0.0
        %3633 = vmatpush.msra.mxu0 0.0
        %3634 = vmatpush.msra.mxu0 0.0
        %3635 = vmatpush.msra.mxu0 0.0
        %3636 = vmatpush.msra.mxu0 0.0
        %3637 = vmatpush.msra.mxu0 0.0
        %3638 = vmatpush.msra.mxu0 0.0
        %3639 = vmatpush.msra.mxu0 0.0
        %3640 = vmatpush.msra.mxu0 0.0
        %3641 = vmatpush.msra.mxu0 0.0
        %3642 = vmatpush.msra.mxu0 0.0
        %3643 = vmatpush.msra.mxu0 0.0
        %3644 = vmatpush.msra.mxu0 0.0
        %3645 = vmatpush.msra.mxu0 0.0
        %3646 = vmatpush.msra.mxu0 %v3594
        %3647 = vmatmul.f32.gmra.mxu0 %v3629
        %v3648 = vpop.f32.mrf.mxu0
        %v3649 = vadd.f32 0.0, %v3648
        %3650 = vdwg.mxu0
        %v3659 = vperm.slane %v3488, %v3606
        %v3660 = vperm.slane %v3503, %v3606
        %v3661 = vperm.slane %v3518, %v3606
        %v3662 = vperm.slane %v3533, %v3606
        %v3663 = vperm.slane %v3548, %v3606
        %v3664 = vperm.slane %v3563, %v3606
        %v3665 = vperm.slane %v3578, %v3606
        %v3666 = vperm.slane %v3593, %v3606
        %v3667 = vsel %vm2929, %v3660, %v3659
        %v3668 = vsel %vm3616, %v3661, %v3667
        %v3669 = vsel %vm3618, %v3662, %v3668
        %v3670 = vsel %vm3620, %v3663, %v3669
        %v3671 = vsel %vm3622, %v3664, %v3670
        %v3672 = vsel %vm3624, %v3665, %v3671
        %v3673 = vsel %vm3626, %v3666, %v3672
        %v3674 = vsel %vm3628, %v3673, 0
        %3676 = vmatpush.msra.mxu0 0.0
        %3677 = vmatpush.msra.mxu0 0.0
        %3678 = vmatpush.msra.mxu0 0.0
        %3679 = vmatpush.msra.mxu0 0.0
        %3680 = vmatpush.msra.mxu0 0.0
        %3681 = vmatpush.msra.mxu0 0.0
        %3682 = vmatpush.msra.mxu0 0.0
        %3683 = vmatpush.msra.mxu0 0.0
        %3684 = vmatpush.msra.mxu0 0.0
        %3685 = vmatpush.msra.mxu0 0.0
        %3686 = vmatpush.msra.mxu0 0.0
        %3687 = vmatpush.msra.mxu0 0.0
        %3688 = vmatpush.msra.mxu0 0.0
        %3689 = vmatpush.msra.mxu0 0.0
        %3690 = vmatpush.msra.mxu0 0.0
        %3691 = vmatpush.msra.mxu0 %v3594
        %3692 = vmatmul.f32.gmra.mxu0 %v3674
        %v3693 = vpop.f32.mrf.mxu0
        %v3694 = vadd.f32 0.0, %v3693
        %3695 = vdwg.mxu0
        %v3697 = vsel %vm3628, %v3595, 0
        %v3700 = vsel %vm3628, %v3596, 0
        %3702 = vmatpush.msra.mxu0 0.0
        %3703 = vmatpush.msra.mxu0 0.0
        %3704 = vmatpush.msra.mxu0 0.0
        %3705 = vmatpush.msra.mxu0 0.0
        %3706 = vmatpush.msra.mxu0 0.0
        %3707 = vmatpush.msra.mxu0 0.0
        %3708 = vmatpush.msra.mxu0 0.0
        %3709 = vmatpush.msra.mxu0 0.0
        %3710 = vmatpush.msra.mxu0 0.0
        %3711 = vmatpush.msra.mxu0 0.0
        %3712 = vmatpush.msra.mxu0 0.0
        %3713 = vmatpush.msra.mxu0 0.0
        %3714 = vmatpush.msra.mxu0 0.0
        %3715 = vmatpush.msra.mxu0 0.0
        %3716 = vmatpush.msra.mxu0 0.0
        %3717 = vmatpush.msra.mxu0 %v3649
        %3718 = vmatmul.f32.gmra.mxu0 %v3697
        %v3719 = vpop.f32.mrf.mxu0
        %v3720 = vadd.f32 0.0, %v3719
        %3721 = vmatmul.f32.gmra.mxu0 %v3700
        %v3722 = vpop.f32.mrf.mxu0
        %v3723 = vadd.f32 0.0, %v3722
        %3724 = vdwg.mxu0
        %3725 = vmatpush.msra.mxu0 0.0
        %3726 = vmatpush.msra.mxu0 0.0
        %3727 = vmatpush.msra.mxu0 0.0
        %3728 = vmatpush.msra.mxu0 0.0
        %3729 = vmatpush.msra.mxu0 0.0
        %3730 = vmatpush.msra.mxu0 0.0
        %3731 = vmatpush.msra.mxu0 0.0
        %3732 = vmatpush.msra.mxu0 0.0
        %3733 = vmatpush.msra.mxu0 0.0
        %3734 = vmatpush.msra.mxu0 0.0
        %3735 = vmatpush.msra.mxu0 0.0
        %3736 = vmatpush.msra.mxu0 0.0
        %3737 = vmatpush.msra.mxu0 0.0
        %3738 = vmatpush.msra.mxu0 0.0
        %3739 = vmatpush.msra.mxu0 0.0
        %3740 = vmatpush.msra.mxu0 %v3694
        %3741 = vmatmul.f32.gmra.mxu0 %v3697
        %v3742 = vpop.f32.mrf.mxu0
        %v3743 = vadd.f32 0.0, %v3742
        %3744 = vmatmul.f32.gmra.mxu0 %v3700
        %v3745 = vpop.f32.mrf.mxu0
        %v3746 = vadd.f32 0.0, %v3745
        %3747 = vdwg.mxu0
        %v3748 = vperm.slane %v3720, 0
        %v3749 = vlaneseq
        %v3750 = vshrl.u32 %v3749, 7
        %3752 = vset.pattern.permute.xlu0 %v3750
        %3753 = vperm.xlu0 %3752, %v3748
        %v3754 = vpop.permute.xlu0 %3753
        %v3755 = vlaneseq
        %v3756 = vshrl.u32 %v3755, 7
        %v3757 = vadd.s32 %v3756, 8
        %3758 = vset.pattern.permute.xlu0 %v3757
        %3759 = vperm.xlu0 %3758, %v3748
        %v3760 = vpop.permute.xlu0 %3759
        %v3761 = vperm.slane %v3720, 1
        %v3762 = vlaneseq
        %v3763 = vshrl.u32 %v3762, 7
        %3765 = vset.pattern.permute.xlu0 %v3763
        %3766 = vperm.xlu0 %3765, %v3761
        %v3767 = vpop.permute.xlu0 %3766
        %v3768 = vlaneseq
        %v3769 = vshrl.u32 %v3768, 7
        %v3770 = vadd.s32 %v3769, 8
        %3771 = vset.pattern.permute.xlu0 %v3770
        %3772 = vperm.xlu0 %3771, %v3761
        %v3773 = vpop.permute.xlu0 %3772
        %v3774 = vperm.slane %v3720, 2
        %v3775 = vlaneseq
        %v3776 = vshrl.u32 %v3775, 7
        %3778 = vset.pattern.permute.xlu0 %v3776
        %3779 = vperm.xlu0 %3778, %v3774
        %v3780 = vpop.permute.xlu0 %3779
        %v3781 = vlaneseq
        %v3782 = vshrl.u32 %v3781, 7
        %v3783 = vadd.s32 %v3782, 8
        %3784 = vset.pattern.permute.xlu0 %v3783
        %3785 = vperm.xlu0 %3784, %v3774
        %v3786 = vpop.permute.xlu0 %3785
        %v3787 = vperm.slane %v3720, 3
        %v3788 = vlaneseq
        %v3789 = vshrl.u32 %v3788, 7
        %3791 = vset.pattern.permute.xlu0 %v3789
        %3792 = vperm.xlu0 %3791, %v3787
        %v3793 = vpop.permute.xlu0 %3792
        %v3794 = vlaneseq
        %v3795 = vshrl.u32 %v3794, 7
        %v3796 = vadd.s32 %v3795, 8
        %3797 = vset.pattern.permute.xlu0 %v3796
        %3798 = vperm.xlu0 %3797, %v3787
        %v3799 = vpop.permute.xlu0 %3798
        %v3800 = vperm.slane %v3720, 4
        %v3801 = vlaneseq
        %v3802 = vshrl.u32 %v3801, 7
        %3804 = vset.pattern.permute.xlu0 %v3802
        %3805 = vperm.xlu0 %3804, %v3800
        %v3806 = vpop.permute.xlu0 %3805
        %v3807 = vlaneseq
        %v3808 = vshrl.u32 %v3807, 7
        %v3809 = vadd.s32 %v3808, 8
        %3810 = vset.pattern.permute.xlu0 %v3809
        %3811 = vperm.xlu0 %3810, %v3800
        %v3812 = vpop.permute.xlu0 %3811
        %v3813 = vperm.slane %v3720, 5
        %v3814 = vlaneseq
        %v3815 = vshrl.u32 %v3814, 7
        %3817 = vset.pattern.permute.xlu0 %v3815
        %3818 = vperm.xlu0 %3817, %v3813
        %v3819 = vpop.permute.xlu0 %3818
        %v3820 = vlaneseq
        %v3821 = vshrl.u32 %v3820, 7
        %v3822 = vadd.s32 %v3821, 8
        %3823 = vset.pattern.permute.xlu0 %v3822
        %3824 = vperm.xlu0 %3823, %v3813
        %v3825 = vpop.permute.xlu0 %3824
        %v3826 = vperm.slane %v3720, 6
        %v3827 = vlaneseq
        %v3828 = vshrl.u32 %v3827, 7
        %3830 = vset.pattern.permute.xlu0 %v3828
        %3831 = vperm.xlu0 %3830, %v3826
        %v3832 = vpop.permute.xlu0 %3831
        %v3833 = vlaneseq
        %v3834 = vshrl.u32 %v3833, 7
        %v3835 = vadd.s32 %v3834, 8
        %3836 = vset.pattern.permute.xlu0 %v3835
        %3837 = vperm.xlu0 %3836, %v3826
        %v3838 = vpop.permute.xlu0 %3837
        %v3839 = vperm.slane %v3720, 7
        %v3840 = vlaneseq
        %v3841 = vshrl.u32 %v3840, 7
        %3843 = vset.pattern.permute.xlu0 %v3841
        %3844 = vperm.xlu0 %3843, %v3839
        %v3845 = vpop.permute.xlu0 %3844
        %v3846 = vlaneseq
        %v3847 = vshrl.u32 %v3846, 7
        %v3848 = vadd.s32 %v3847, 8
        %3849 = vset.pattern.permute.xlu0 %v3848
        %3850 = vperm.xlu0 %3849, %v3839
        %v3851 = vpop.permute.xlu0 %3850
        %v3852 = vperm.slane %v3723, 0
        %v3853 = vlaneseq
        %v3854 = vshrl.u32 %v3853, 7
        %3856 = vset.pattern.permute.xlu0 %v3854
        %3857 = vperm.xlu0 %3856, %v3852
        %v3858 = vpop.permute.xlu0 %3857
        %v3859 = vlaneseq
        %v3860 = vshrl.u32 %v3859, 7
        %v3861 = vadd.s32 %v3860, 8
        %3862 = vset.pattern.permute.xlu0 %v3861
        %3863 = vperm.xlu0 %3862, %v3852
        %v3864 = vpop.permute.xlu0 %3863
        %v3865 = vperm.slane %v3723, 1
        %v3866 = vlaneseq
        %v3867 = vshrl.u32 %v3866, 7
        %3869 = vset.pattern.permute.xlu0 %v3867
        %3870 = vperm.xlu0 %3869, %v3865
        %v3871 = vpop.permute.xlu0 %3870
        %v3872 = vlaneseq
        %v3873 = vshrl.u32 %v3872, 7
        %v3874 = vadd.s32 %v3873, 8
        %3875 = vset.pattern.permute.xlu0 %v3874
        %3876 = vperm.xlu0 %3875, %v3865
        %v3877 = vpop.permute.xlu0 %3876
        %v3878 = vperm.slane %v3723, 2
        %v3879 = vlaneseq
        %v3880 = vshrl.u32 %v3879, 7
        %3882 = vset.pattern.permute.xlu0 %v3880
        %3883 = vperm.xlu0 %3882, %v3878
        %v3884 = vpop.permute.xlu0 %3883
        %v3885 = vlaneseq
        %v3886 = vshrl.u32 %v3885, 7
        %v3887 = vadd.s32 %v3886, 8
        %3888 = vset.pattern.permute.xlu0 %v3887
        %3889 = vperm.xlu0 %3888, %v3878
        %v3890 = vpop.permute.xlu0 %3889
        %v3891 = vperm.slane %v3723, 3
        %v3892 = vlaneseq
        %v3893 = vshrl.u32 %v3892, 7
        %3895 = vset.pattern.permute.xlu0 %v3893
        %3896 = vperm.xlu0 %3895, %v3891
        %v3897 = vpop.permute.xlu0 %3896
        %v3898 = vlaneseq
        %v3899 = vshrl.u32 %v3898, 7
        %v3900 = vadd.s32 %v3899, 8
        %3901 = vset.pattern.permute.xlu0 %v3900
        %3902 = vperm.xlu0 %3901, %v3891
        %v3903 = vpop.permute.xlu0 %3902
        %v3904 = vperm.slane %v3723, 4
        %v3905 = vlaneseq
        %v3906 = vshrl.u32 %v3905, 7
        %3908 = vset.pattern.permute.xlu0 %v3906
        %3909 = vperm.xlu0 %3908, %v3904
        %v3910 = vpop.permute.xlu0 %3909
        %v3911 = vlaneseq
        %v3912 = vshrl.u32 %v3911, 7
        %v3913 = vadd.s32 %v3912, 8
        %3914 = vset.pattern.permute.xlu0 %v3913
        %3915 = vperm.xlu0 %3914, %v3904
        %v3916 = vpop.permute.xlu0 %3915
        %v3917 = vperm.slane %v3723, 5
        %v3918 = vlaneseq
        %v3919 = vshrl.u32 %v3918, 7
        %3921 = vset.pattern.permute.xlu0 %v3919
        %3922 = vperm.xlu0 %3921, %v3917
        %v3923 = vpop.permute.xlu0 %3922
        %v3924 = vlaneseq
        %v3925 = vshrl.u32 %v3924, 7
        %v3926 = vadd.s32 %v3925, 8
        %3927 = vset.pattern.permute.xlu0 %v3926
        %3928 = vperm.xlu0 %3927, %v3917
        %v3929 = vpop.permute.xlu0 %3928
        %v3930 = vperm.slane %v3723, 6
        %v3931 = vlaneseq
        %v3932 = vshrl.u32 %v3931, 7
        %3934 = vset.pattern.permute.xlu0 %v3932
        %3935 = vperm.xlu0 %3934, %v3930
        %v3936 = vpop.permute.xlu0 %3935
        %v3937 = vlaneseq
        %v3938 = vshrl.u32 %v3937, 7
        %v3939 = vadd.s32 %v3938, 8
        %3940 = vset.pattern.permute.xlu0 %v3939
        %3941 = vperm.xlu0 %3940, %v3930
        %v3942 = vpop.permute.xlu0 %3941
        %v3943 = vperm.slane %v3723, 7
        %v3944 = vlaneseq
        %v3945 = vshrl.u32 %v3944, 7
        %3947 = vset.pattern.permute.xlu0 %v3945
        %3948 = vperm.xlu0 %3947, %v3943
        %v3949 = vpop.permute.xlu0 %3948
        %v3950 = vlaneseq
        %v3951 = vshrl.u32 %v3950, 7
        %v3952 = vadd.s32 %v3951, 8
        %3953 = vset.pattern.permute.xlu0 %v3952
        %3954 = vperm.xlu0 %3953, %v3943
        %v3955 = vpop.permute.xlu0 %3954
        %v3956 = vperm.slane %v3743, 0
        %v3957 = vlaneseq
        %v3958 = vshrl.u32 %v3957, 7
        %3960 = vset.pattern.permute.xlu0 %v3958
        %3961 = vperm.xlu0 %3960, %v3956
        %v3962 = vpop.permute.xlu0 %3961
        %v3963 = vlaneseq
        %v3964 = vshrl.u32 %v3963, 7
        %v3965 = vadd.s32 %v3964, 8
        %3966 = vset.pattern.permute.xlu0 %v3965
        %3967 = vperm.xlu0 %3966, %v3956
        %v3968 = vpop.permute.xlu0 %3967
        %v3969 = vperm.slane %v3743, 1
        %v3970 = vlaneseq
        %v3971 = vshrl.u32 %v3970, 7
        %3973 = vset.pattern.permute.xlu0 %v3971
        %3974 = vperm.xlu0 %3973, %v3969
        %v3975 = vpop.permute.xlu0 %3974
        %v3976 = vlaneseq
        %v3977 = vshrl.u32 %v3976, 7
        %v3978 = vadd.s32 %v3977, 8
        %3979 = vset.pattern.permute.xlu0 %v3978
        %3980 = vperm.xlu0 %3979, %v3969
        %v3981 = vpop.permute.xlu0 %3980
        %v3982 = vperm.slane %v3743, 2
        %v3983 = vlaneseq
        %v3984 = vshrl.u32 %v3983, 7
        %3986 = vset.pattern.permute.xlu0 %v3984
        %3987 = vperm.xlu0 %3986, %v3982
        %v3988 = vpop.permute.xlu0 %3987
        %v3989 = vlaneseq
        %v3990 = vshrl.u32 %v3989, 7
        %v3991 = vadd.s32 %v3990, 8
        %3992 = vset.pattern.permute.xlu0 %v3991
        %3993 = vperm.xlu0 %3992, %v3982
        %v3994 = vpop.permute.xlu0 %3993
        %v3995 = vperm.slane %v3743, 3
        %v3996 = vlaneseq
        %v3997 = vshrl.u32 %v3996, 7
        %3999 = vset.pattern.permute.xlu0 %v3997
        %4000 = vperm.xlu0 %3999, %v3995
        %v4001 = vpop.permute.xlu0 %4000
        %v4002 = vlaneseq
        %v4003 = vshrl.u32 %v4002, 7
        %v4004 = vadd.s32 %v4003, 8
        %4005 = vset.pattern.permute.xlu0 %v4004
        %4006 = vperm.xlu0 %4005, %v3995
        %v4007 = vpop.permute.xlu0 %4006
        %v4008 = vperm.slane %v3743, 4
        %v4009 = vlaneseq
        %v4010 = vshrl.u32 %v4009, 7
        %4012 = vset.pattern.permute.xlu0 %v4010
        %4013 = vperm.xlu0 %4012, %v4008
        %v4014 = vpop.permute.xlu0 %4013
        %v4015 = vlaneseq
        %v4016 = vshrl.u32 %v4015, 7
        %v4017 = vadd.s32 %v4016, 8
        %4018 = vset.pattern.permute.xlu0 %v4017
        %4019 = vperm.xlu0 %4018, %v4008
        %v4020 = vpop.permute.xlu0 %4019
        %v4021 = vperm.slane %v3743, 5
        %v4022 = vlaneseq
        %v4023 = vshrl.u32 %v4022, 7
        %4025 = vset.pattern.permute.xlu0 %v4023
        %4026 = vperm.xlu0 %4025, %v4021
        %v4027 = vpop.permute.xlu0 %4026
        %v4028 = vlaneseq
        %v4029 = vshrl.u32 %v4028, 7
        %v4030 = vadd.s32 %v4029, 8
        %4031 = vset.pattern.permute.xlu0 %v4030
        %4032 = vperm.xlu0 %4031, %v4021
        %v4033 = vpop.permute.xlu0 %4032
        %v4034 = vperm.slane %v3743, 6
        %v4035 = vlaneseq
        %v4036 = vshrl.u32 %v4035, 7
        %4038 = vset.pattern.permute.xlu0 %v4036
        %4039 = vperm.xlu0 %4038, %v4034
        %v4040 = vpop.permute.xlu0 %4039
        %v4041 = vlaneseq
        %v4042 = vshrl.u32 %v4041, 7
        %v4043 = vadd.s32 %v4042, 8
        %4044 = vset.pattern.permute.xlu0 %v4043
        %4045 = vperm.xlu0 %4044, %v4034
        %v4046 = vpop.permute.xlu0 %4045
        %v4047 = vperm.slane %v3743, 7
        %v4048 = vlaneseq
        %v4049 = vshrl.u32 %v4048, 7
        %4051 = vset.pattern.permute.xlu0 %v4049
        %4052 = vperm.xlu0 %4051, %v4047
        %v4053 = vpop.permute.xlu0 %4052
        %v4054 = vlaneseq
        %v4055 = vshrl.u32 %v4054, 7
        %v4056 = vadd.s32 %v4055, 8
        %4057 = vset.pattern.permute.xlu0 %v4056
        %4058 = vperm.xlu0 %4057, %v4047
        %v4059 = vpop.permute.xlu0 %4058
        %v4060 = vperm.slane %v3746, 0
        %v4061 = vlaneseq
        %v4062 = vshrl.u32 %v4061, 7
        %4064 = vset.pattern.permute.xlu0 %v4062
        %4065 = vperm.xlu0 %4064, %v4060
        %v4066 = vpop.permute.xlu0 %4065
        %v4067 = vlaneseq
        %v4068 = vshrl.u32 %v4067, 7
        %v4069 = vadd.s32 %v4068, 8
        %4070 = vset.pattern.permute.xlu0 %v4069
        %4071 = vperm.xlu0 %4070, %v4060
        %v4072 = vpop.permute.xlu0 %4071
        %v4073 = vperm.slane %v3746, 1
        %v4074 = vlaneseq
        %v4075 = vshrl.u32 %v4074, 7
        %4077 = vset.pattern.permute.xlu0 %v4075
        %4078 = vperm.xlu0 %4077, %v4073
        %v4079 = vpop.permute.xlu0 %4078
        %v4080 = vlaneseq
        %v4081 = vshrl.u32 %v4080, 7
        %v4082 = vadd.s32 %v4081, 8
        %4083 = vset.pattern.permute.xlu0 %v4082
        %4084 = vperm.xlu0 %4083, %v4073
        %v4085 = vpop.permute.xlu0 %4084
        %v4086 = vperm.slane %v3746, 2
        %v4087 = vlaneseq
        %v4088 = vshrl.u32 %v4087, 7
        %4090 = vset.pattern.permute.xlu0 %v4088
        %4091 = vperm.xlu0 %4090, %v4086
        %v4092 = vpop.permute.xlu0 %4091
        %v4093 = vlaneseq
        %v4094 = vshrl.u32 %v4093, 7
        %v4095 = vadd.s32 %v4094, 8
        %4096 = vset.pattern.permute.xlu0 %v4095
        %4097 = vperm.xlu0 %4096, %v4086
        %v4098 = vpop.permute.xlu0 %4097
        %v4099 = vperm.slane %v3746, 3
        %v4100 = vlaneseq
        %v4101 = vshrl.u32 %v4100, 7
        %4103 = vset.pattern.permute.xlu0 %v4101
        %4104 = vperm.xlu0 %4103, %v4099
        %v4105 = vpop.permute.xlu0 %4104
        %v4106 = vlaneseq
        %v4107 = vshrl.u32 %v4106, 7
        %v4108 = vadd.s32 %v4107, 8
        %4109 = vset.pattern.permute.xlu0 %v4108
        %4110 = vperm.xlu0 %4109, %v4099
        %v4111 = vpop.permute.xlu0 %4110
        %v4112 = vperm.slane %v3746, 4
        %v4113 = vlaneseq
        %v4114 = vshrl.u32 %v4113, 7
        %4116 = vset.pattern.permute.xlu0 %v4114
        %4117 = vperm.xlu0 %4116, %v4112
        %v4118 = vpop.permute.xlu0 %4117
        %v4119 = vlaneseq
        %v4120 = vshrl.u32 %v4119, 7
        %v4121 = vadd.s32 %v4120, 8
        %4122 = vset.pattern.permute.xlu0 %v4121
        %4123 = vperm.xlu0 %4122, %v4112
        %v4124 = vpop.permute.xlu0 %4123
        %v4125 = vperm.slane %v3746, 5
        %v4126 = vlaneseq
        %v4127 = vshrl.u32 %v4126, 7
        %4129 = vset.pattern.permute.xlu0 %v4127
        %4130 = vperm.xlu0 %4129, %v4125
        %v4131 = vpop.permute.xlu0 %4130
        %v4132 = vlaneseq
        %v4133 = vshrl.u32 %v4132, 7
        %v4134 = vadd.s32 %v4133, 8
        %4135 = vset.pattern.permute.xlu0 %v4134
        %4136 = vperm.xlu0 %4135, %v4125
        %v4137 = vpop.permute.xlu0 %4136
        %v4138 = vperm.slane %v3746, 6
        %v4139 = vlaneseq
        %v4140 = vshrl.u32 %v4139, 7
        %4142 = vset.pattern.permute.xlu0 %v4140
        %4143 = vperm.xlu0 %4142, %v4138
        %v4144 = vpop.permute.xlu0 %4143
        %v4145 = vlaneseq
        %v4146 = vshrl.u32 %v4145, 7
        %v4147 = vadd.s32 %v4146, 8
        %4148 = vset.pattern.permute.xlu0 %v4147
        %4149 = vperm.xlu0 %4148, %v4138
        %v4150 = vpop.permute.xlu0 %4149
        %v4151 = vperm.slane %v3746, 7
        %v4152 = vlaneseq
        %v4153 = vshrl.u32 %v4152, 7
        %4155 = vset.pattern.permute.xlu0 %v4153
        %4156 = vperm.xlu0 %4155, %v4151
        %v4157 = vpop.permute.xlu0 %4156
        %v4158 = vlaneseq
        %v4159 = vshrl.u32 %v4158, 7
        %v4160 = vadd.s32 %v4159, 8
        %4161 = vset.pattern.permute.xlu0 %v4160
        %4162 = vperm.xlu0 %4161, %v4151
        %v4163 = vpop.permute.xlu0 %4162
        %v4164 = vmul.f32 %v1747, %v3754
        %v4165 = vmul.f32 %v1748, %v3760
        %v4166 = vmul.f32 %v1749, %v3767
        %v4167 = vmul.f32 %v1750, %v3773
        %v4168 = vmul.f32 %v1751, %v3780
        %v4169 = vmul.f32 %v1752, %v3786
        %v4170 = vmul.f32 %v1753, %v3793
        %v4171 = vmul.f32 %v1754, %v3799
        %v4172 = vmul.f32 %v1755, %v3806
        %v4173 = vmul.f32 %v1756, %v3812
        %v4174 = vmul.f32 %v1757, %v3819
        %v4175 = vmul.f32 %v1758, %v3825
        %v4176 = vmul.f32 %v1759, %v3832
        %v4177 = vmul.f32 %v1760, %v3838
        %v4178 = vmul.f32 %v1761, %v3845
        %v4179 = vmul.f32 %v1762, %v3851
        %v4180 = vmul.f32 %v1763, %v3858
        %v4181 = vmul.f32 %v1764, %v3864
        %v4182 = vmul.f32 %v1765, %v3871
        %v4183 = vmul.f32 %v1766, %v3877
        %v4184 = vmul.f32 %v1767, %v3884
        %v4185 = vmul.f32 %v1768, %v3890
        %v4186 = vmul.f32 %v1769, %v3897
        %v4187 = vmul.f32 %v1770, %v3903
        %v4188 = vmul.f32 %v1771, %v3910
        %v4189 = vmul.f32 %v1772, %v3916
        %v4190 = vmul.f32 %v1773, %v3923
        %v4191 = vmul.f32 %v1774, %v3929
        %v4192 = vmul.f32 %v1775, %v3936
        %v4193 = vmul.f32 %v1776, %v3942
        %v4194 = vmul.f32 %v1777, %v3949
        %v4195 = vmul.f32 %v1778, %v3955
        %v4196 = vmul.f32 %v1779, %v3962
        %v4197 = vmul.f32 %v1780, %v3968
        %v4198 = vmul.f32 %v1781, %v3975
        %v4199 = vmul.f32 %v1782, %v3981
        %v4200 = vmul.f32 %v1783, %v3988
        %v4201 = vmul.f32 %v1784, %v3994
        %v4202 = vmul.f32 %v1785, %v4001
        %v4203 = vmul.f32 %v1786, %v4007
        %v4204 = vmul.f32 %v1787, %v4014
        %v4205 = vmul.f32 %v1788, %v4020
        %v4206 = vmul.f32 %v1789, %v4027
        %v4207 = vmul.f32 %v1790, %v4033
        %v4208 = vmul.f32 %v1791, %v4040
        %v4209 = vmul.f32 %v1792, %v4046
        %v4210 = vmul.f32 %v1793, %v4053
        %v4211 = vmul.f32 %v1794, %v4059
        %v4212 = vmul.f32 %v1795, %v4066
        %v4213 = vmul.f32 %v1796, %v4072
        %v4214 = vmul.f32 %v1797, %v4079
        %v4215 = vmul.f32 %v1798, %v4085
        %v4216 = vmul.f32 %v1799, %v4092
        %v4217 = vmul.f32 %v1800, %v4098
        %v4218 = vmul.f32 %v1801, %v4105
        %v4219 = vmul.f32 %v1802, %v4111
        %v4220 = vmul.f32 %v1803, %v4118
        %v4221 = vmul.f32 %v1804, %v4124
        %v4222 = vmul.f32 %v1805, %v4131
        %v4223 = vmul.f32 %v1806, %v4137
        %v4224 = vmul.f32 %v1807, %v4144
        %v4225 = vmul.f32 %v1808, %v4150
        %v4226 = vmul.f32 %v1809, %v4157
        %v4227 = vmul.f32 %v1810, %v4163
        %v4228 = vsel %vm2867, %v4164, 0.0
        %v4229 = vsel %vm2867, %v4165, 0.0
        %v4230 = vadd.f32 %v4228, %v4229
        %v4231 = vsel %vm2867, %v4166, 0.0
        %v4232 = vadd.f32 %v4230, %v4231
        %v4233 = vsel %vm2867, %v4167, 0.0
        %v4234 = vadd.f32 %v4232, %v4233
        %v4235 = vsel %vm2867, %v4168, 0.0
        %v4236 = vadd.f32 %v4234, %v4235
        %v4237 = vsel %vm2867, %v4169, 0.0
        %v4238 = vadd.f32 %v4236, %v4237
        %v4239 = vsel %vm2867, %v4170, 0.0
        %v4240 = vadd.f32 %v4238, %v4239
        %v4241 = vsel %vm2867, %v4171, 0.0
        %v4242 = vadd.f32 %v4240, %v4241
        %v4243 = vsel %vm2867, %v4172, 0.0
        %v4244 = vadd.f32 %v4242, %v4243
        %v4245 = vsel %vm2867, %v4173, 0.0
        %v4246 = vadd.f32 %v4244, %v4245
        %v4247 = vsel %vm2867, %v4174, 0.0
        %v4248 = vadd.f32 %v4246, %v4247
        %v4249 = vsel %vm2867, %v4175, 0.0
        %v4250 = vadd.f32 %v4248, %v4249
        %v4251 = vsel %vm2867, %v4176, 0.0
        %v4252 = vadd.f32 %v4250, %v4251
        %v4253 = vsel %vm2867, %v4177, 0.0
        %v4254 = vadd.f32 %v4252, %v4253
        %v4255 = vsel %vm2867, %v4178, 0.0
        %v4256 = vadd.f32 %v4254, %v4255
        %v4257 = vsel %vm2867, %v4179, 0.0
        %v4258 = vadd.f32 %v4256, %v4257
        %v4259 = vsel %vm2867, %v4180, 0.0
        %v4260 = vadd.f32 %v4258, %v4259
        %v4261 = vsel %vm2867, %v4181, 0.0
        %v4262 = vadd.f32 %v4260, %v4261
        %v4263 = vsel %vm2867, %v4182, 0.0
        %v4264 = vadd.f32 %v4262, %v4263
        %v4265 = vsel %vm2867, %v4183, 0.0
        %v4266 = vadd.f32 %v4264, %v4265
        %v4267 = vsel %vm2867, %v4184, 0.0
        %v4268 = vadd.f32 %v4266, %v4267
        %v4269 = vsel %vm2867, %v4185, 0.0
        %v4270 = vadd.f32 %v4268, %v4269
        %v4271 = vsel %vm2867, %v4186, 0.0
        %v4272 = vadd.f32 %v4270, %v4271
        %v4273 = vsel %vm2867, %v4187, 0.0
        %v4274 = vadd.f32 %v4272, %v4273
        %v4275 = vsel %vm2867, %v4188, 0.0
        %v4276 = vadd.f32 %v4274, %v4275
        %v4277 = vsel %vm2867, %v4189, 0.0
        %v4278 = vadd.f32 %v4276, %v4277
        %v4279 = vsel %vm2867, %v4190, 0.0
        %v4280 = vadd.f32 %v4278, %v4279
        %v4281 = vsel %vm2867, %v4191, 0.0
        %v4282 = vadd.f32 %v4280, %v4281
        %v4283 = vsel %vm2867, %v4192, 0.0
        %v4284 = vadd.f32 %v4282, %v4283
        %v4285 = vsel %vm2867, %v4193, 0.0
        %v4286 = vadd.f32 %v4284, %v4285
        %v4287 = vsel %vm2867, %v4194, 0.0
        %v4288 = vadd.f32 %v4286, %v4287
        %v4289 = vsel %vm2867, %v4195, 0.0
        %v4290 = vadd.f32 %v4288, %v4289
        %v4291 = vrot.slane %v4290, 4
        %v4292 = vadd.f32 %v4290, %v4291
        %v4293 = vrot.slane %v4292, 2
        %v4294 = vadd.f32 %v4292, %v4293
        %v4295 = vrot.slane %v4294, 1
        %v4296 = vadd.f32 %v4294, %v4295
        %v4297 = vsel %vm2867, %v4196, 0.0
        %v4298 = vsel %vm2867, %v4197, 0.0
        %v4299 = vadd.f32 %v4297, %v4298
        %v4300 = vsel %vm2867, %v4198, 0.0
        %v4301 = vadd.f32 %v4299, %v4300
        %v4302 = vsel %vm2867, %v4199, 0.0
        %v4303 = vadd.f32 %v4301, %v4302
        %v4304 = vsel %vm2867, %v4200, 0.0
        %v4305 = vadd.f32 %v4303, %v4304
        %v4306 = vsel %vm2867, %v4201, 0.0
        %v4307 = vadd.f32 %v4305, %v4306
        %v4308 = vsel %vm2867, %v4202, 0.0
        %v4309 = vadd.f32 %v4307, %v4308
        %v4310 = vsel %vm2867, %v4203, 0.0
        %v4311 = vadd.f32 %v4309, %v4310
        %v4312 = vsel %vm2867, %v4204, 0.0
        %v4313 = vadd.f32 %v4311, %v4312
        %v4314 = vsel %vm2867, %v4205, 0.0
        %v4315 = vadd.f32 %v4313, %v4314
        %v4316 = vsel %vm2867, %v4206, 0.0
        %v4317 = vadd.f32 %v4315, %v4316
        %v4318 = vsel %vm2867, %v4207, 0.0
        %v4319 = vadd.f32 %v4317, %v4318
        %v4320 = vsel %vm2867, %v4208, 0.0
        %v4321 = vadd.f32 %v4319, %v4320
        %v4322 = vsel %vm2867, %v4209, 0.0
        %v4323 = vadd.f32 %v4321, %v4322
        %v4324 = vsel %vm2867, %v4210, 0.0
        %v4325 = vadd.f32 %v4323, %v4324
        %v4326 = vsel %vm2867, %v4211, 0.0
        %v4327 = vadd.f32 %v4325, %v4326
        %v4328 = vsel %vm2867, %v4212, 0.0
        %v4329 = vadd.f32 %v4327, %v4328
        %v4330 = vsel %vm2867, %v4213, 0.0
        %v4331 = vadd.f32 %v4329, %v4330
        %v4332 = vsel %vm2867, %v4214, 0.0
        %v4333 = vadd.f32 %v4331, %v4332
        %v4334 = vsel %vm2867, %v4215, 0.0
        %v4335 = vadd.f32 %v4333, %v4334
        %v4336 = vsel %vm2867, %v4216, 0.0
        %v4337 = vadd.f32 %v4335, %v4336
        %v4338 = vsel %vm2867, %v4217, 0.0
        %v4339 = vadd.f32 %v4337, %v4338
        %v4340 = vsel %vm2867, %v4218, 0.0
        %v4341 = vadd.f32 %v4339, %v4340
        %v4342 = vsel %vm2867, %v4219, 0.0
        %v4343 = vadd.f32 %v4341, %v4342
        %v4344 = vsel %vm2867, %v4220, 0.0
        %v4345 = vadd.f32 %v4343, %v4344
        %v4346 = vsel %vm2867, %v4221, 0.0
        %v4347 = vadd.f32 %v4345, %v4346
        %v4348 = vsel %vm2867, %v4222, 0.0
        %v4349 = vadd.f32 %v4347, %v4348
        %v4350 = vsel %vm2867, %v4223, 0.0
        %v4351 = vadd.f32 %v4349, %v4350
        %v4352 = vsel %vm2867, %v4224, 0.0
        %v4353 = vadd.f32 %v4351, %v4352
        %v4354 = vsel %vm2867, %v4225, 0.0
        %v4355 = vadd.f32 %v4353, %v4354
        %v4356 = vsel %vm2867, %v4226, 0.0
        %v4357 = vadd.f32 %v4355, %v4356
        %v4358 = vsel %vm2867, %v4227, 0.0
        %v4359 = vadd.f32 %v4357, %v4358
        %v4360 = vrot.slane %v4359, 4
        %v4361 = vadd.f32 %v4359, %v4360
        %v4362 = vrot.slane %v4361, 2
        %v4363 = vadd.f32 %v4361, %v4362
        %v4364 = vrot.slane %v4363, 1
        %v4365 = vadd.f32 %v4363, %v4364
        %v4366 = vrcp.pop 256.0
        %v4367 = vmul.f32 256.0, %v4366
        %v4368 = vsub.f32 1.0, %v4367
        %v4369 = vmul.f32 %v4366, %v4368
        %v4370 = vadd.f32 %v4366, %v4369
        %vm4371 = vweird.f32 %v4366
        %v4372 = vsel %vm4371, %v4366, %v4370
        %v4373 = vmul.f32 %v4296, %v4372
        %v4374 = vmul.f32 %v4365, %v4372
        %v4377 = vsel %vm2929, %v4374, %v4373
        %v4379 = vmul.f32 %v3005, %v4377
        %p4380 = scmp.eq.s32.totalorder %s34, 0
        // Predicated region
        $region97: #{forward.1} parent=95 // pred_check
          %p4381 = pneg %p4380
        $region98: #{forward.1} parent=95 // pred_check_branch
          %4383 = sbr.rel (%p4381) target = $region100
        $region99: #{forward.1} parent=95 // pred_region
          %v4384 = vld [vmem:[%s12] sm:$0x1]
          %v4386 = vperm.slane %v4384, 0
          %vm4388 = vcmask 25600
          %4389 = vst.msk [vmem:[#allocation2] sm:$0x3] %vm4388, %v4386
          %v4390 = vld [vmem:[%s14] sm:$0x1]
          %v4392 = vperm.slane %v4390, 0
          %4394 = vst.msk [vmem:[#allocation4] sm:$0x3] %vm4388, %v4392
        $region100: #{forward.1} parent=95 // pred_fallthru
          _
        %v4395 = vld [vmem:[#allocation2] sm:$0x3]
        %v4396 = vld [vmem:[%s826] sm:$0xff]
        %v4397 = vld [vmem:[%s826 + $0x8] sm:$0xff]
        %v4398 = vld [vmem:[%s826 + $0x10] sm:$0xff]
        %v4399 = vld [vmem:[%s826 + $0x18] sm:$0xff]
        %v4401 = vsel %vm2867, %v4379, 0
        %4403 = vmatpush.msra.mxu0 0.0
        %4404 = vmatpush.msra.mxu0 0.0
        %4405 = vmatpush.msra.mxu0 0.0
        %4406 = vmatpush.msra.mxu0 0.0
        %4407 = vmatpush.msra.mxu0 0.0
        %4408 = vmatpush.msra.mxu0 0.0
        %4409 = vmatpush.msra.mxu0 0.0
        %4410 = vmatpush.msra.mxu0 0.0
        %4411 = vmatpush.msra.mxu0 0.0
        %4412 = vmatpush.msra.mxu0 0.0
        %4413 = vmatpush.msra.mxu0 0.0
        %4414 = vmatpush.msra.mxu0 0.0
        %4415 = vmatpush.msra.mxu0 %v4399
        %4416 = vmatpush.msra.mxu0 %v4398
        %4417 = vmatpush.msra.mxu0 %v4397
        %4418 = vmatpush.msra.mxu0 %v4396
        %4419 = vmatmul.f32.gmra.mxu0 %v4401
        %v4420 = vpop.f32.mrf.mxu0
        %v4421 = vadd.f32 0.0, %v4420
        %4422 = vdwg.mxu0
        %v4423 = vadd.f32 %v4395, %v4421
        %vm4424 = vcmask 25600
        %4425 = vst.msk [vmem:[#allocation2] sm:$0x3] %vm4424, %v4423
        %v4426 = vld [vmem:[%s840] sm:$0x1]
        %v4428 = vperm.slane %v4426, 0
        %v4430 = vsub.f32 %v4379, %v4428
        %v4431 = vld [vmem:[%s843] sm:$0x1]
        %v4432 = vadd.f32 %v4431, 1e-05
        %v4433 = vrsqrt.pop %v4432
        %v4434 = vmul.f32 %v4433, %v4432
        %v4435 = vmul.f32 %v4434, %v4433
        %v4436 = vmul.f32 0.5, %v4435
        %v4437 = vsub.f32 1.5, %v4436
        %v4438 = vmul.f32 %v4433, %v4437
        %vm4439 = vweird.f32 %v4432
        %vm4440 = vweird.f32 %v4433
        %vm4441 = vmor %vm4439, %vm4440
        %v4442 = vsel %vm4441, %v4433, %v4438
        %v4444 = vperm.slane %v4442, 0
        %v4446 = vmul.f32 %v4430, %v4444
        %v4447 = vld [vmem:[%s834] sm:$0x1]
        %v4449 = vperm.slane %v4447, 0
        %v4451 = vmul.f32 %v4446, %v4449
        %v4452 = vld [vmem:[%s837] sm:$0x1]
        %v4454 = vperm.slane %v4452, 0
        %v4456 = vadd.f32 %v4451, %v4454
        %v4457 = vld [vmem:[#allocation4] sm:$0x3]
        %v4458 = vld [vmem:[%s831] sm:$0xff]
        %v4459 = vld [vmem:[%s831 + $0x8] sm:$0xff]
        %v4460 = vld [vmem:[%s831 + $0x10] sm:$0xff]
        %v4461 = vld [vmem:[%s831 + $0x18] sm:$0xff]
        %v4463 = vsel %vm2867, %v4456, 0
        %4465 = vmatpush.msra.mxu0 0.0
        %4466 = vmatpush.msra.mxu0 0.0
        %4467 = vmatpush.msra.mxu0 0.0
        %4468 = vmatpush.msra.mxu0 0.0
        %4469 = vmatpush.msra.mxu0 0.0
        %4470 = vmatpush.msra.mxu0 0.0
        %4471 = vmatpush.msra.mxu0 0.0
        %4472 = vmatpush.msra.mxu0 0.0
        %4473 = vmatpush.msra.mxu0 0.0
        %4474 = vmatpush.msra.mxu0 0.0
        %4475 = vmatpush.msra.mxu0 0.0
        %4476 = vmatpush.msra.mxu0 0.0
        %4477 = vmatpush.msra.mxu0 %v4461
        %4478 = vmatpush.msra.mxu0 %v4460
        %4479 = vmatpush.msra.mxu0 %v4459
        %4480 = vmatpush.msra.mxu0 %v4458
        %4481 = vmatmul.f32.gmra.mxu0 %v4463
        %v4482 = vpop.f32.mrf.mxu0
        %v4483 = vadd.f32 0.0, %v4482
        %4484 = vdwg.mxu0
        %v4485 = vadd.f32 %v4457, %v4483
        %4486 = vst.msk [vmem:[#allocation4] sm:$0x3] %vm4424, %v4485
        // Predicated region
        $region101: #{forward.1} parent=95 // pred_check
          %p4487 = pneg %p521
        $region102: #{forward.1} parent=95 // pred_check_branch
          %4489 = sbr.rel (%p4487) target = $region104
        $region103: #{forward.1} parent=95 // pred_region
          %4491 = vsyncadd [#allocation3], 0
          %s4493 = sshll.u32 [#allocation2], 4
          %s4494 = int_to_ptr.vmem [resolvable:$true] %s4493
          %s4495 = sshll.u32 %s19, 4
          %s4496 = int_to_ptr.hbm [resolvable:$true] %s4495
          %4498 = dma.vmem_to_hbm [thread:$0]  %s4494, 32, %s4496, [#allocation3]
        $region104: #{forward.1} parent=95 // pred_fallthru
          _
        // Predicated region
        $region105: #{forward.1} parent=95 // pred_check
          %p4499 = pneg %p542
        $region106: #{forward.1} parent=95 // pred_check_branch
          %4501 = sbr.rel (%p4499) target = $region108
        $region107: #{forward.1} parent=95 // pred_region
          %4503 = vsyncadd [#allocation5], 0
          %s4505 = sshll.u32 [#allocation4], 4
          %s4506 = int_to_ptr.vmem [resolvable:$true] %s4505
          %s4507 = sshll.u32 %s20, 4
          %s4508 = int_to_ptr.hbm [resolvable:$true] %s4507
          %4510 = dma.vmem_to_hbm [thread:$0]  %s4506, 32, %s4508, [#allocation5]
        $region108: #{forward.1} parent=95 // pred_fallthru
          _
        // Predicated region
        $region109: #{forward.1} parent=95 // pred_check
          %p4511 = pneg %p521
        $region110: #{forward.1} parent=95 // pred_check_branch
          %4513 = sbr.rel (%p4511) target = $region112
        $region111: #{forward.1} parent=95 // pred_region
          %4515 = dma.done [#allocation3], 32
        $region112: #{forward.1} parent=95 // pred_fallthru
          _
        // Predicated region
        $region113: #{forward.1} parent=95 // pred_check
          %p4516 = pneg %p542
        $region114: #{forward.1} parent=95 // pred_check_branch
          %4518 = sbr.rel (%p4516) target = $region116
        $region115: #{forward.1} parent=95 // pred_region
          %4520 = dma.done [#allocation5], 32
        $region116: #{forward.1} parent=95 // pred_fallthru
          _
      $region96: #{forward.1} parent=5 // pred_fallthru
        _
      %p4521 = scmp.le.s32.totalorder 2, %s29
      // Predicated region
      $region117: #{forward.1} parent=5 // pred_check
        %p4522 = pneg %p4521
      $region118: #{forward.1} parent=5 // pred_check_branch
        %4524 = sbr.rel (%p4522) target = $region120
      $region119: #{forward.1} parent=5 // pred_region
        %s4525 = ssub.s32 %s29, 2
      $region120: #{forward.1} parent=5 // pred_fallthru
        _
    $region6: #{forward.1} parent=1 // loop_footer
      %s33 = sadd.s32 1, %s29
    $region7: #{forward.1} parent=1 // loop_footer_branch
      %28 = sbr.rel target = $region3
    $region8: #{forward.1} parent=1 // loop_exit
      _
    %4526 = vsyncpa [#allocation3], 1
    %s4527 = scalar_lea.sflag [#allocation3], 1
    %4528 = vsyncpa %s4527, 1
    %4529 = vsyncpa [#allocation5], 1

</llo_original>
